<compile_context>
chip_gen: v6e
topology: v6e:2x2x1
jax: 0.10.0
libtpu: 0.0.40
codegen_flags: <defaults>
</compile_context>

<pallas_src>
import jax
import jax.numpy as jnp
from jax.experimental import pallas as pl
from jax.experimental.pallas import tpu as pltpu


# ----------------------------------------------------------------------------
# Pallas kernels
# ----------------------------------------------------------------------------
def gemm_kernel(a_ref, b_ref, o_ref):
    """P = A @ B  (bf16 MXU inputs, f32 accumulation)."""
    a = a_ref[...].astype(jnp.bfloat16)
    o_ref[...] = jnp.dot(a, b_ref[...], preferred_element_type=jnp.float32)


def bn_relu_gemm_kernel(a_ref, scale_ref, shift_ref, b_ref, o_ref):
    """P = relu(A * scale + shift) @ B — the previous layer's BatchNorm+ReLU
    fused as an f32 prologue on the GEMM's A operand."""
    a = jnp.maximum(a_ref[...] * scale_ref[...] + shift_ref[...], 0.0)
    o_ref[...] = jnp.dot(a.astype(jnp.bfloat16), b_ref[...],
                         preferred_element_type=jnp.float32)


def tanh_kernel(x_ref, o_ref):
    o_ref[...] = jnp.tanh(x_ref[...])


# ----------------------------------------------------------------------------
# Small helpers
# ----------------------------------------------------------------------------
def _cdiv(a, b):
    return (a + b - 1) // b


def _round_up(a, m):
    return _cdiv(a, m) * m


def _row_tile(m, n_pad):
    """Whole-M tile when the f32 output tile stays <= ~4 MiB, else an
    8-aligned cap (fewer, fatter grid steps amortize per-step overhead and
    keep double-buffered tiles well under every generation's VMEM limit)."""
    cap = max(128, (1 << 20) // n_pad)
    cap = (cap // 8) * 8
    return m if m <= cap else cap


# ----------------------------------------------------------------------------
# Pallas wrappers
# ----------------------------------------------------------------------------
def convt_gemm(x_flat, b_mat, scale=None, shift=None):
    """P = prologue(X) @ B, with B's N dim zero-padded to a multiple of 128.

    prologue = identity (first layer) or BatchNorm(scale/shift)+ReLU of the
    previous layer, applied on the fly to the A tiles.  Rows are zero-padded
    to the tile size (padded rows are sliced off afterwards), so any M works.
    """
    M, K = x_flat.shape
    Kb, n_raw = b_mat.shape
    assert Kb == K

    n_pad = _round_up(n_raw, 128)
    if n_pad != n_raw:
        b_mat = jnp.pad(b_mat, ((0, 0), (0, n_pad - n_raw)))
    b_bf = b_mat.astype(jnp.bfloat16)

    m8 = _round_up(M, 8)
    tm = _row_tile(m8, n_pad)
    mp = _round_up(m8, tm)
    if mp != M:
        x_flat = jnp.pad(x_flat, ((0, mp - M), (0, 0)))

    grid = (mp // tm,)
    a_spec = pl.BlockSpec((tm, K), lambda i: (i, 0))
    b_spec = pl.BlockSpec((K, n_pad), lambda i: (0, 0))
    o_spec = pl.BlockSpec((tm, n_pad), lambda i: (i, 0))
    out_shape = jax.ShapeDtypeStruct((mp, n_pad), jnp.float32)
    cparams = pltpu.CompilerParams(dimension_semantics=("parallel",))

    if scale is None:
        p = pl.pallas_call(
            gemm_kernel,
            out_shape=out_shape,
            grid=grid,
            in_specs=[a_spec, b_spec],
            out_specs=o_spec,
            compiler_params=cparams,
        )(x_flat, b_bf)
    else:
        v_spec = pl.BlockSpec((1, K), lambda i: (0, 0))
        p = pl.pallas_call(
            bn_relu_gemm_kernel,
            out_shape=out_shape,
            grid=grid,
            in_specs=[a_spec, v_spec, v_spec, b_spec],
            out_specs=o_spec,
            compiler_params=cparams,
        )(x_flat, scale.reshape(1, K), shift.reshape(1, K), b_bf)

    return p[:M, :n_raw]


def tanh_pallas(x):
    """Elementwise tanh over a lane-dense (rows, 128) view of x."""
    shape = x.shape
    flat = x.reshape(-1)
    total = flat.shape[0]
    lanes = 128
    rows = _round_up(_cdiv(total, lanes), 8)
    tm = rows if rows <= 2048 else 1024
    rows = _round_up(rows, tm)
    pad = rows * lanes - total
    if pad:
        flat = jnp.pad(flat, (0, pad))
    x2 = flat.reshape(rows, lanes)
    y2 = pl.pallas_call(
        tanh_kernel,
        out_shape=jax.ShapeDtypeStruct((rows, lanes), jnp.float32),
        grid=(rows // tm,),
        in_specs=[pl.BlockSpec((tm, lanes), lambda i: (i, 0))],
        out_specs=pl.BlockSpec((tm, lanes), lambda i: (i, 0)),
        compiler_params=pltpu.CompilerParams(
            dimension_semantics=("parallel",)),
    )(x2)
    return y2.reshape(-1)[:total].reshape(shape)


# ----------------------------------------------------------------------------
# Plain-JAX glue: col2im scatter-add and BatchNorm batch statistics
# ----------------------------------------------------------------------------
def col2im(p, N, H, W, K, Cout, stride, padding):
    """Scatter-add the (M, Cout*K*K) GEMM output into the NHWC conv-transpose
    output: out[n, h*s+kh-p, w*s+kw-p, co] += P[n,h,w,co,kh,kw]."""
    p = p.reshape(N, H, W, Cout, K, K)
    h_full = (H - 1) * stride + K
    w_full = (W - 1) * stride + K
    out = jnp.zeros((N, h_full, w_full, Cout), jnp.float32)
    hs = stride * (H - 1) + 1
    ws = stride * (W - 1) + 1
    for kh in range(K):
        for kw in range(K):
            out = out.at[:, kh:kh + hs:stride, kw:kw + ws:stride, :].add(
                p[:, :, :, :, kh, kw])
    h_out = h_full - 2 * padding
    w_out = w_full - 2 * padding
    return out[:, padding:padding + h_out, padding:padding + w_out, :]


def batch_stats_scale_shift(out_nhwc, gamma, beta, eps=1e-5):
    """Training-mode BatchNorm2d batch stats -> fused scale/shift vectors."""
    mean = jnp.mean(out_nhwc, axis=(0, 1, 2))
    var = jnp.mean(jnp.square(out_nhwc - mean), axis=(0, 1, 2))  # biased
    scale = gamma * jax.lax.rsqrt(var + eps)
    shift = beta - mean * scale
    return scale, shift


def conv_transpose_layer(x_nhwc, w_ct, stride, padding, scale=None, shift=None):
    """[fused prev-layer BN+ReLU] -> ConvTranspose2d (input-side GEMM + col2im)."""
    N, H, W, Cin = x_nhwc.shape
    Cin_w, Cout, K, _ = w_ct.shape
    assert Cin_w == Cin
    b_mat = w_ct.reshape(Cin, Cout * K * K)          # (Cin, Cout*K*K)
    x_flat = x_nhwc.reshape(N * H * W, Cin)
    p = convt_gemm(x_flat, b_mat, scale, shift)      # Pallas GEMM (MXU)
    return col2im(p, N, H, W, K, Cout, stride, padding)


# ----------------------------------------------------------------------------
# Generator
# ----------------------------------------------------------------------------
def init_generator_params(key, nz=32, ngf=8, nc=3):
    """DCGAN-style deterministic init (ConvTranspose2d weight: (Cin,Cout,4,4))."""
    chans = [nz, ngf * 8, ngf * 4, ngf * 2, ngf, nc]
    keys = jax.random.split(key, 5)
    params = {"w": [], "gamma": [], "beta": []}
    for i in range(5):
        w = 0.02 * jax.random.normal(
            keys[i], (chans[i], chans[i + 1], 4, 4), dtype=jnp.float32)
        params["w"].append(w)
        if i < 4:  # BatchNorm2d default init: weight=1, bias=0
            params["gamma"].append(jnp.ones((chans[i + 1],), jnp.float32))
            params["beta"].append(jnp.zeros((chans[i + 1],), jnp.float32))
    return params


@jax.jit
def generator_forward(z_nchw, params):
    """Matches Generator.forward: 4x (ConvT + BN + ReLU) then ConvT + Tanh.

    Layer i's BatchNorm+ReLU is applied inside layer i+1's GEMM kernel as a
    scale/shift/relu prologue — numerically identical to the sequential form.
    """
    x = jnp.transpose(z_nchw, (0, 2, 3, 1)).astype(jnp.float32)  # NCHW -> NHWC

    strides = [1, 2, 2, 2, 2]
    pads = [0, 1, 1, 1, 1]
    scale = shift = None
    for i in range(5):
        x = conv_transpose_layer(x, params["w"][i], strides[i], pads[i],
                                 scale, shift)
        if i < 4:
            scale, shift = batch_stats_scale_shift(
                x, params["gamma"][i], params["beta"][i])

    x = tanh_pallas(x)                                          # final Tanh
    return jnp.transpose(x, (0, 3, 1, 2))                       # NHWC -> NCHW


if __name__ == "__main__":
    # Small but shape-consistent configuration:
    #   latent_vector_length=32, feature_map_size=8, color_channels=3, batch=2
    key = jax.random.PRNGKey(0)
    k_param, k_z = jax.random.split(key)

    nz, ngf, nc, batch = 32, 8, 3, 2
    params = init_generator_params(k_param, nz=nz, ngf=ngf, nc=nc)

    z = jax.random.normal(k_z, (batch, nz, 1, 1), dtype=jnp.float32)

    out = generator_forward(z, params)
    out = jax.block_until_ready(out)

    assert out.shape == (batch, nc, 64, 64), out.shape
    assert bool(jnp.all(jnp.isfinite(out)))
    print("KERNEL_OK")
</pallas_src>

<mosaic_0001>
module attributes {stable_mosaic.version = 11 : i64} {
  func.func @gemm_kernel(%arg0: i32, %arg1: memref<8x32xf32, #tpu.memory_space<vmem>>, %arg2: memref<32x1024xbf16, #tpu.memory_space<vmem>>, %arg3: memref<8x1024xf32, #tpu.memory_space<vmem>>) attributes {dimension_semantics = [#tpu.dimension_semantics<parallel>], iteration_bounds = array<i64: 1>, scalar_prefetch = 0 : i64, scratch_operands = 0 : i64, tpu.core_type = #tpu.core_type<tc>, window_params = [{transform_indices = @transform_0, window_bounds = array<i64: 8, 32>}, {pipeline_mode = #tpu.pipeline_mode<synchronous>, transform_indices = @transform_1, window_bounds = array<i64: 32, 1024>}, {transform_indices = @transform_2, window_bounds = array<i64: 8, 1024>}]} {
    %c0 = arith.constant 0 : index
    %c0_0 = arith.constant 0 : index
    %0 = vector.load %arg1[%c0, %c0_0] : memref<8x32xf32, #tpu.memory_space<vmem>>, vector<8x32xf32>
    %1 = arith.truncf %0 : vector<8x32xf32> to vector<8x32xbf16>
    %c0_1 = arith.constant 0 : index
    %c0_2 = arith.constant 0 : index
    %2 = vector.load %arg2[%c0_1, %c0_2] : memref<32x1024xbf16, #tpu.memory_space<vmem>>, vector<32x1024xbf16>
    %cst = arith.constant dense<0.000000e+00> : vector<8x1024xf32>
    %3 = tpu.matmul %1, %2, %cst {dimension_numbers = #tpu.dot_dimension_numbers<[1], [0], [0], [1], [0, 0, 1, 1], [], []>} : vector<8x32xbf16>, vector<32x1024xbf16>, vector<8x1024xf32> -> vector<8x1024xf32>
    %c0_3 = arith.constant 0 : index
    %c0_4 = arith.constant 0 : index
    %4 = vector.load %arg3[%c0_3, %c0_4] : memref<8x1024xf32, #tpu.memory_space<vmem>>, vector<8x1024xf32>
    tpu.vector_store %arg3[%c0_3, %c0_4], %3 {strides = array<i32>} : memref<8x1024xf32, #tpu.memory_space<vmem>>, vector<8x1024xf32>,
    return
  }
  func.func @transform_0(%arg0: i32) -> (i32, i32) {
    %c0_i32 = arith.constant 0 : i32
    %c0_i32_0 = arith.constant 0 : i32
    return %arg0, %c0_i32 : i32, i32
  }
  func.func @transform_1(%arg0: i32) -> (i32, i32) {
    %c0_i32 = arith.constant 0 : i32
    %c0_i32_0 = arith.constant 0 : i32
    %c0_i32_1 = arith.constant 0 : i32
    return %c0_i32, %c0_i32_0 : i32, i32
  }
  func.func @transform_2(%arg0: i32) -> (i32, i32) {
    %c0_i32 = arith.constant 0 : i32
    %c0_i32_0 = arith.constant 0 : i32
    return %arg0, %c0_i32 : i32, i32
  }
}

module attributes {stable_mosaic.version = 11 : i64} {
  func.func @bn_relu_gemm_kernel(%arg0: i32, %arg1: memref<32x64xf32, #tpu.memory_space<vmem>>, %arg2: memref<1x64xf32, #tpu.memory_space<vmem>>, %arg3: memref<1x64xf32, #tpu.memory_space<vmem>>, %arg4: memref<64x512xbf16, #tpu.memory_space<vmem>>, %arg5: memref<32x512xf32, #tpu.memory_space<vmem>>) attributes {dimension_semantics = [#tpu.dimension_semantics<parallel>], iteration_bounds = array<i64: 1>, scalar_prefetch = 0 : i64, scratch_operands = 0 : i64, tpu.core_type = #tpu.core_type<tc>, window_params = [{transform_indices = @transform_0, window_bounds = array<i64: 32, 64>}, {pipeline_mode = #tpu.pipeline_mode<synchronous>, transform_indices = @transform_1, window_bounds = array<i64: 1, 64>}, {pipeline_mode = #tpu.pipeline_mode<synchronous>, transform_indices = @transform_2, window_bounds = array<i64: 1, 64>}, {pipeline_mode = #tpu.pipeline_mode<synchronous>, transform_indices = @transform_3, window_bounds = array<i64: 64, 512>}, {transform_indices = @transform_4, window_bounds = array<i64: 32, 512>}]} {
    %c0 = arith.constant 0 : index
    %c0_0 = arith.constant 0 : index
    %0 = vector.load %arg1[%c0, %c0_0] : memref<32x64xf32, #tpu.memory_space<vmem>>, vector<32x64xf32>
    %c0_1 = arith.constant 0 : index
    %c0_2 = arith.constant 0 : index
    %1 = vector.load %arg2[%c0_1, %c0_2] : memref<1x64xf32, #tpu.memory_space<vmem>>, vector<1x64xf32>
    %2 = vector.broadcast %1 : vector<1x64xf32> to vector<32x64xf32>
    %3 = arith.mulf %0, %2 : vector<32x64xf32>
    %c0_3 = arith.constant 0 : index
    %c0_4 = arith.constant 0 : index
    %4 = vector.load %arg3[%c0_3, %c0_4] : memref<1x64xf32, #tpu.memory_space<vmem>>, vector<1x64xf32>
    %5 = vector.broadcast %4 : vector<1x64xf32> to vector<32x64xf32>
    %6 = arith.addf %3, %5 : vector<32x64xf32>
    %cst = arith.constant 0.000000e+00 : f32
    %7 = vector.broadcast %cst : f32 to vector<32x64xf32>
    %8 = arith.maximumf %6, %7 : vector<32x64xf32>
    %9 = arith.truncf %8 : vector<32x64xf32> to vector<32x64xbf16>
    %c0_5 = arith.constant 0 : index
    %c0_6 = arith.constant 0 : index
    %10 = vector.load %arg4[%c0_5, %c0_6] : memref<64x512xbf16, #tpu.memory_space<vmem>>, vector<64x512xbf16>
    %cst_7 = arith.constant dense<0.000000e+00> : vector<32x512xf32>
    %11 = tpu.matmul %9, %10, %cst_7 {dimension_numbers = #tpu.dot_dimension_numbers<[1], [0], [0], [1], [0, 0, 1, 1], [], []>} : vector<32x64xbf16>, vector<64x512xbf16>, vector<32x512xf32> -> vector<32x512xf32>
    %c0_8 = arith.constant 0 : index
    %c0_9 = arith.constant 0 : index
    %12 = vector.load %arg5[%c0_8, %c0_9] : memref<32x512xf32, #tpu.memory_space<vmem>>, vector<32x512xf32>
    tpu.vector_store %arg5[%c0_8, %c0_9], %11 {strides = array<i32>} : memref<32x512xf32, #tpu.memory_space<vmem>>, vector<32x512xf32>,
    return
  }
  func.func @transform_0(%arg0: i32) -> (i32, i32) {
    %c0_i32 = arith.constant 0 : i32
    %c0_i32_0 = arith.constant 0 : i32
    return %arg0, %c0_i32 : i32, i32
  }
  func.func @transform_1(%arg0: i32) -> (i32, i32) {
    %c0_i32 = arith.constant 0 : i32
    %c0_i32_0 = arith.constant 0 : i32
    %c0_i32_1 = arith.constant 0 : i32
    return %c0_i32, %c0_i32_0 : i32, i32
  }
  func.func @transform_2(%arg0: i32) -> (i32, i32) {
    %c0_i32 = arith.constant 0 : i32
    %c0_i32_0 = arith.constant 0 : i32
    %c0_i32_1 = arith.constant 0 : i32
    return %c0_i32, %c0_i32_0 : i32, i32
  }
  func.func @transform_3(%arg0: i32) -> (i32, i32) {
    %c0_i32 = arith.constant 0 : i32
    %c0_i32_0 = arith.constant 0 : i32
    %c0_i32_1 = arith.constant 0 : i32
    return %c0_i32, %c0_i32_0 : i32, i32
  }
  func.func @transform_4(%arg0: i32) -> (i32, i32) {
    %c0_i32 = arith.constant 0 : i32
    %c0_i32_0 = arith.constant 0 : i32
    return %arg0, %c0_i32 : i32, i32
  }
}

module attributes {stable_mosaic.version = 11 : i64} {
  func.func @bn_relu_gemm_kernel(%arg0: i32, %arg1: memref<128x32xf32, #tpu.memory_space<vmem>>, %arg2: memref<1x32xf32, #tpu.memory_space<vmem>>, %arg3: memref<1x32xf32, #tpu.memory_space<vmem>>, %arg4: memref<32x256xbf16, #tpu.memory_space<vmem>>, %arg5: memref<128x256xf32, #tpu.memory_space<vmem>>) attributes {dimension_semantics = [#tpu.dimension_semantics<parallel>], iteration_bounds = array<i64: 1>, scalar_prefetch = 0 : i64, scratch_operands = 0 : i64, tpu.core_type = #tpu.core_type<tc>, window_params = [{transform_indices = @transform_0, window_bounds = array<i64: 128, 32>}, {pipeline_mode = #tpu.pipeline_mode<synchronous>, transform_indices = @transform_1, window_bounds = array<i64: 1, 32>}, {pipeline_mode = #tpu.pipeline_mode<synchronous>, transform_indices = @transform_2, window_bounds = array<i64: 1, 32>}, {pipeline_mode = #tpu.pipeline_mode<synchronous>, transform_indices = @transform_3, window_bounds = array<i64: 32, 256>}, {transform_indices = @transform_4, window_bounds = array<i64: 128, 256>}]} {
    %c0 = arith.constant 0 : index
    %c0_0 = arith.constant 0 : index
    %0 = vector.load %arg1[%c0, %c0_0] : memref<128x32xf32, #tpu.memory_space<vmem>>, vector<128x32xf32>
    %c0_1 = arith.constant 0 : index
    %c0_2 = arith.constant 0 : index
    %1 = vector.load %arg2[%c0_1, %c0_2] : memref<1x32xf32, #tpu.memory_space<vmem>>, vector<1x32xf32>
    %2 = vector.broadcast %1 : vector<1x32xf32> to vector<128x32xf32>
    %3 = arith.mulf %0, %2 : vector<128x32xf32>
    %c0_3 = arith.constant 0 : index
    %c0_4 = arith.constant 0 : index
    %4 = vector.load %arg3[%c0_3, %c0_4] : memref<1x32xf32, #tpu.memory_space<vmem>>, vector<1x32xf32>
    %5 = vector.broadcast %4 : vector<1x32xf32> to vector<128x32xf32>
    %6 = arith.addf %3, %5 : vector<128x32xf32>
    %cst = arith.constant 0.000000e+00 : f32
    %7 = vector.broadcast %cst : f32 to vector<128x32xf32>
    %8 = arith.maximumf %6, %7 : vector<128x32xf32>
    %9 = arith.truncf %8 : vector<128x32xf32> to vector<128x32xbf16>
    %c0_5 = arith.constant 0 : index
    %c0_6 = arith.constant 0 : index
    %10 = vector.load %arg4[%c0_5, %c0_6] : memref<32x256xbf16, #tpu.memory_space<vmem>>, vector<32x256xbf16>
    %cst_7 = arith.constant dense<0.000000e+00> : vector<128x256xf32>
    %11 = tpu.matmul %9, %10, %cst_7 {dimension_numbers = #tpu.dot_dimension_numbers<[1], [0], [0], [1], [0, 0, 1, 1], [], []>} : vector<128x32xbf16>, vector<32x256xbf16>, vector<128x256xf32> -> vector<128x256xf32>
    %c0_8 = arith.constant 0 : index
    %c0_9 = arith.constant 0 : index
    %12 = vector.load %arg5[%c0_8, %c0_9] : memref<128x256xf32, #tpu.memory_space<vmem>>, vector<128x256xf32>
    tpu.vector_store %arg5[%c0_8, %c0_9], %11 {strides = array<i32>} : memref<128x256xf32, #tpu.memory_space<vmem>>, vector<128x256xf32>,
    return
  }
  func.func @transform_0(%arg0: i32) -> (i32, i32) {
    %c0_i32 = arith.constant 0 : i32
    %c0_i32_0 = arith.constant 0 : i32
    return %arg0, %c0_i32 : i32, i32
  }
  func.func @transform_1(%arg0: i32) -> (i32, i32) {
    %c0_i32 = arith.constant 0 : i32
    %c0_i32_0 = arith.constant 0 : i32
    %c0_i32_1 = arith.constant 0 : i32
    return %c0_i32, %c0_i32_0 : i32, i32
  }
  func.func @transform_2(%arg0: i32) -> (i32, i32) {
    %c0_i32 = arith.constant 0 : i32
    %c0_i32_0 = arith.constant 0 : i32
    %c0_i32_1 = arith.constant 0 : i32
    return %c0_i32, %c0_i32_0 : i32, i32
  }
  func.func @transform_3(%arg0: i32) -> (i32, i32) {
    %c0_i32 = arith.constant 0 : i32
    %c0_i32_0 = arith.constant 0 : i32
    %c0_i32_1 = arith.constant 0 : i32
    return %c0_i32, %c0_i32_0 : i32, i32
  }
  func.func @transform_4(%arg0: i32) -> (i32, i32) {
    %c0_i32 = arith.constant 0 : i32
    %c0_i32_0 = arith.constant 0 : i32
    return %arg0, %c0_i32 : i32, i32
  }
}

module attributes {stable_mosaic.version = 11 : i64} {
  func.func @bn_relu_gemm_kernel(%arg0: i32, %arg1: memref<512x16xf32, #tpu.memory_space<vmem>>, %arg2: memref<1x16xf32, #tpu.memory_space<vmem>>, %arg3: memref<1x16xf32, #tpu.memory_space<vmem>>, %arg4: memref<16x128xbf16, #tpu.memory_space<vmem>>, %arg5: memref<512x128xf32, #tpu.memory_space<vmem>>) attributes {dimension_semantics = [#tpu.dimension_semantics<parallel>], iteration_bounds = array<i64: 1>, scalar_prefetch = 0 : i64, scratch_operands = 0 : i64, tpu.core_type = #tpu.core_type<tc>, window_params = [{transform_indices = @transform_0, window_bounds = array<i64: 512, 16>}, {pipeline_mode = #tpu.pipeline_mode<synchronous>, transform_indices = @transform_1, window_bounds = array<i64: 1, 16>}, {pipeline_mode = #tpu.pipeline_mode<synchronous>, transform_indices = @transform_2, window_bounds = array<i64: 1, 16>}, {pipeline_mode = #tpu.pipeline_mode<synchronous>, transform_indices = @transform_3, window_bounds = array<i64: 16, 128>}, {transform_indices = @transform_4, window_bounds = array<i64: 512, 128>}]} {
    %c0 = arith.constant 0 : index
    %c0_0 = arith.constant 0 : index
    %0 = vector.load %arg1[%c0, %c0_0] : memref<512x16xf32, #tpu.memory_space<vmem>>, vector<512x16xf32>
    %c0_1 = arith.constant 0 : index
    %c0_2 = arith.constant 0 : index
    %1 = vector.load %arg2[%c0_1, %c0_2] : memref<1x16xf32, #tpu.memory_space<vmem>>, vector<1x16xf32>
    %2 = vector.broadcast %1 : vector<1x16xf32> to vector<512x16xf32>
    %3 = arith.mulf %0, %2 : vector<512x16xf32>
    %c0_3 = arith.constant 0 : index
    %c0_4 = arith.constant 0 : index
    %4 = vector.load %arg3[%c0_3, %c0_4] : memref<1x16xf32, #tpu.memory_space<vmem>>, vector<1x16xf32>
    %5 = vector.broadcast %4 : vector<1x16xf32> to vector<512x16xf32>
    %6 = arith.addf %3, %5 : vector<512x16xf32>
    %cst = arith.constant 0.000000e+00 : f32
    %7 = vector.broadcast %cst : f32 to vector<512x16xf32>
    %8 = arith.maximumf %6, %7 : vector<512x16xf32>
    %9 = arith.truncf %8 : vector<512x16xf32> to vector<512x16xbf16>
    %c0_5 = arith.constant 0 : index
    %c0_6 = arith.constant 0 : index
    %10 = vector.load %arg4[%c0_5, %c0_6] : memref<16x128xbf16, #tpu.memory_space<vmem>>, vector<16x128xbf16>
    %cst_7 = arith.constant dense<0.000000e+00> : vector<512x128xf32>
    %11 = tpu.matmul %9, %10, %cst_7 {dimension_numbers = #tpu.dot_dimension_numbers<[1], [0], [0], [1], [0, 0, 1, 1], [], []>} : vector<512x16xbf16>, vector<16x128xbf16>, vector<512x128xf32> -> vector<512x128xf32>
    %c0_8 = arith.constant 0 : index
    %c0_9 = arith.constant 0 : index
    %12 = vector.load %arg5[%c0_8, %c0_9] : memref<512x128xf32, #tpu.memory_space<vmem>>, vector<512x128xf32>
    tpu.vector_store %arg5[%c0_8, %c0_9], %11 {strides = array<i32>} : memref<512x128xf32, #tpu.memory_space<vmem>>, vector<512x128xf32>,
    return
  }
  func.func @transform_0(%arg0: i32) -> (i32, i32) {
    %c0_i32 = arith.constant 0 : i32
    %c0_i32_0 = arith.constant 0 : i32
    return %arg0, %c0_i32 : i32, i32
  }
  func.func @transform_1(%arg0: i32) -> (i32, i32) {
    %c0_i32 = arith.constant 0 : i32
    %c0_i32_0 = arith.constant 0 : i32
    %c0_i32_1 = arith.constant 0 : i32
    return %c0_i32, %c0_i32_0 : i32, i32
  }
  func.func @transform_2(%arg0: i32) -> (i32, i32) {
    %c0_i32 = arith.constant 0 : i32
    %c0_i32_0 = arith.constant 0 : i32
    %c0_i32_1 = arith.constant 0 : i32
    return %c0_i32, %c0_i32_0 : i32, i32
  }
  func.func @transform_3(%arg0: i32) -> (i32, i32) {
    %c0_i32 = arith.constant 0 : i32
    %c0_i32_0 = arith.constant 0 : i32
    %c0_i32_1 = arith.constant 0 : i32
    return %c0_i32, %c0_i32_0 : i32, i32
  }
  func.func @transform_4(%arg0: i32) -> (i32, i32) {
    %c0_i32 = arith.constant 0 : i32
    %c0_i32_0 = arith.constant 0 : i32
    return %arg0, %c0_i32 : i32, i32
  }
}

module attributes {stable_mosaic.version = 11 : i64} {
  func.func @bn_relu_gemm_kernel(%arg0: i32, %arg1: memref<2048x8xf32, #tpu.memory_space<vmem>>, %arg2: memref<1x8xf32, #tpu.memory_space<vmem>>, %arg3: memref<1x8xf32, #tpu.memory_space<vmem>>, %arg4: memref<8x128xbf16, #tpu.memory_space<vmem>>, %arg5: memref<2048x128xf32, #tpu.memory_space<vmem>>) attributes {dimension_semantics = [#tpu.dimension_semantics<parallel>], iteration_bounds = array<i64: 1>, scalar_prefetch = 0 : i64, scratch_operands = 0 : i64, tpu.core_type = #tpu.core_type<tc>, window_params = [{transform_indices = @transform_0, window_bounds = array<i64: 2048, 8>}, {pipeline_mode = #tpu.pipeline_mode<synchronous>, transform_indices = @transform_1, window_bounds = array<i64: 1, 8>}, {pipeline_mode = #tpu.pipeline_mode<synchronous>, transform_indices = @transform_2, window_bounds = array<i64: 1, 8>}, {pipeline_mode = #tpu.pipeline_mode<synchronous>, transform_indices = @transform_3, window_bounds = array<i64: 8, 128>}, {transform_indices = @transform_4, window_bounds = array<i64: 2048, 128>}]} {
    %c0 = arith.constant 0 : index
    %c0_0 = arith.constant 0 : index
    %0 = vector.load %arg1[%c0, %c0_0] : memref<2048x8xf32, #tpu.memory_space<vmem>>, vector<2048x8xf32>
    %c0_1 = arith.constant 0 : index
    %c0_2 = arith.constant 0 : index
    %1 = vector.load %arg2[%c0_1, %c0_2] : memref<1x8xf32, #tpu.memory_space<vmem>>, vector<1x8xf32>
    %2 = vector.broadcast %1 : vector<1x8xf32> to vector<2048x8xf32>
    %3 = arith.mulf %0, %2 : vector<2048x8xf32>
    %c0_3 = arith.constant 0 : index
    %c0_4 = arith.constant 0 : index
    %4 = vector.load %arg3[%c0_3, %c0_4] : memref<1x8xf32, #tpu.memory_space<vmem>>, vector<1x8xf32>
    %5 = vector.broadcast %4 : vector<1x8xf32> to vector<2048x8xf32>
    %6 = arith.addf %3, %5 : vector<2048x8xf32>
    %cst = arith.constant 0.000000e+00 : f32
    %7 = vector.broadcast %cst : f32 to vector<2048x8xf32>
    %8 = arith.maximumf %6, %7 : vector<2048x8xf32>
    %9 = arith.truncf %8 : vector<2048x8xf32> to vector<2048x8xbf16>
    %c0_5 = arith.constant 0 : index
    %c0_6 = arith.constant 0 : index
    %10 = vector.load %arg4[%c0_5, %c0_6] : memref<8x128xbf16, #tpu.memory_space<vmem>>, vector<8x128xbf16>
    %cst_7 = arith.constant dense<0.000000e+00> : vector<2048x128xf32>
    %11 = tpu.matmul %9, %10, %cst_7 {dimension_numbers = #tpu.dot_dimension_numbers<[1], [0], [0], [1], [0, 0, 1, 1], [], []>} : vector<2048x8xbf16>, vector<8x128xbf16>, vector<2048x128xf32> -> vector<2048x128xf32>
    %c0_8 = arith.constant 0 : index
    %c0_9 = arith.constant 0 : index
    %12 = vector.load %arg5[%c0_8, %c0_9] : memref<2048x128xf32, #tpu.memory_space<vmem>>, vector<2048x128xf32>
    tpu.vector_store %arg5[%c0_8, %c0_9], %11 {strides = array<i32>} : memref<2048x128xf32, #tpu.memory_space<vmem>>, vector<2048x128xf32>,
    return
  }
  func.func @transform_0(%arg0: i32) -> (i32, i32) {
    %c0_i32 = arith.constant 0 : i32
    %c0_i32_0 = arith.constant 0 : i32
    return %arg0, %c0_i32 : i32, i32
  }
  func.func @transform_1(%arg0: i32) -> (i32, i32) {
    %c0_i32 = arith.constant 0 : i32
    %c0_i32_0 = arith.constant 0 : i32
    %c0_i32_1 = arith.constant 0 : i32
    return %c0_i32, %c0_i32_0 : i32, i32
  }
  func.func @transform_2(%arg0: i32) -> (i32, i32) {
    %c0_i32 = arith.constant 0 : i32
    %c0_i32_0 = arith.constant 0 : i32
    %c0_i32_1 = arith.constant 0 : i32
    return %c0_i32, %c0_i32_0 : i32, i32
  }
  func.func @transform_3(%arg0: i32) -> (i32, i32) {
    %c0_i32 = arith.constant 0 : i32
    %c0_i32_0 = arith.constant 0 : i32
    %c0_i32_1 = arith.constant 0 : i32
    return %c0_i32, %c0_i32_0 : i32, i32
  }
  func.func @transform_4(%arg0: i32) -> (i32, i32) {
    %c0_i32 = arith.constant 0 : i32
    %c0_i32_0 = arith.constant 0 : i32
    return %arg0, %c0_i32 : i32, i32
  }
}

module attributes {stable_mosaic.version = 11 : i64} {
  func.func @tanh_kernel(%arg0: i32, %arg1: memref<192x128xf32, #tpu.memory_space<vmem>>, %arg2: memref<192x128xf32, #tpu.memory_space<vmem>>) attributes {dimension_semantics = [#tpu.dimension_semantics<parallel>], iteration_bounds = array<i64: 1>, scalar_prefetch = 0 : i64, scratch_operands = 0 : i64, tpu.core_type = #tpu.core_type<tc>, window_params = [{transform_indices = @transform_0, window_bounds = array<i64: 192, 128>}, {transform_indices = @transform_1, window_bounds = array<i64: 192, 128>}]} {
    %c0 = arith.constant 0 : index
    %c0_0 = arith.constant 0 : index
    %0 = vector.load %arg1[%c0, %c0_0] : memref<192x128xf32, #tpu.memory_space<vmem>>, vector<192x128xf32>
    %1 = math.tanh %0 : vector<192x128xf32>
    %c0_1 = arith.constant 0 : index
    %c0_2 = arith.constant 0 : index
    %2 = vector.load %arg2[%c0_1, %c0_2] : memref<192x128xf32, #tpu.memory_space<vmem>>, vector<192x128xf32>
    tpu.vector_store %arg2[%c0_1, %c0_2], %1 {strides = array<i32>} : memref<192x128xf32, #tpu.memory_space<vmem>>, vector<192x128xf32>,
    return
  }
  func.func @transform_0(%arg0: i32) -> (i32, i32) {
    %c0_i32 = arith.constant 0 : i32
    %c0_i32_0 = arith.constant 0 : i32
    return %arg0, %c0_i32 : i32, i32
  }
  func.func @transform_1(%arg0: i32) -> (i32, i32) {
    %c0_i32 = arith.constant 0 : i32
    %c0_i32_0 = arith.constant 0 : i32
    return %arg0, %c0_i32 : i32, i32
  }
}

</mosaic_0001>

<llo_original>
// kernel: generator_forward.6
$region0: #{generator_forward.6}
  #allocation0 [shape = 'u32[]', space=smem, size = 0x4, offset = 0x4, fixed_abs, tag = 'smem constant byte address 0x4 - core index']
  #allocation1 [shape = 'u32[144,128]{1,0:T(1,128)}', space=vmem, size = 0x12000, scoped, tag = 'internal scratch']
  %s0 = inlined_call_operand.vmem [shape: f32[8,32], index: 0, kind: input, shape index: {}]
  %s1 = inlined_call_operand.vmem [shape: bf16[32,1024], index: 1, kind: input, shape index: {}]
  %s2 = inlined_call_operand.vmem [shape: f32[8,1024], index: 2, kind: output, shape index: {}]
  %s3 = sld [smem:[#allocation0]]
  $region18: #{generator_forward.6} parent=0
    _
  %s5 = ssub.s32 1, %s3
  %s6 = scalar_select 0, %s5, %s3
  // Predicated region
  $region2: #{generator_forward.6} parent=0 // pred_check
    _
  $region3: #{generator_forward.6} parent=0 // pred_check_branch
    %8 = sbr.rel (0) target = $region5
  $region4: #{generator_forward.6} parent=0 // pred_region
    _
  $region5: #{generator_forward.6} parent=0 // pred_fallthru
    _
  // Predicated region
  $region6: #{generator_forward.6} parent=0 // pred_check
    _
  $region7: #{generator_forward.6} parent=0 // pred_check_branch
    %10 = sbr.rel (0) target = $region9
  $region8: #{generator_forward.6} parent=0 // pred_region
    _
  $region9: #{generator_forward.6} parent=0 // pred_fallthru
    _
  %v12 = vld [vmem:[%s0] sm:$0xff]
  %v13 = vpack.c.bf16 %v12, %v12
  %v14 = vld [vmem:[%s1] sm:$0xff]
  %v15 = vld [vmem:[%s1 + $0x8] sm:$0xff]
  %v16 = vld [vmem:[%s1 + $0x10] sm:$0xff]
  %v17 = vld [vmem:[%s1 + $0x18] sm:$0xff]
  %v18 = vld [vmem:[%s1 + $0x20] sm:$0xff]
  %v19 = vld [vmem:[%s1 + $0x28] sm:$0xff]
  %v20 = vld [vmem:[%s1 + $0x30] sm:$0xff]
  %v21 = vld [vmem:[%s1 + $0x38] sm:$0xff]
  %v22 = vld [vmem:[%s1 + $0x40] sm:$0xff]
  %v23 = vld [vmem:[%s1 + $0x48] sm:$0xff]
  %v24 = vld [vmem:[%s1 + $0x50] sm:$0xff]
  %v25 = vld [vmem:[%s1 + $0x58] sm:$0xff]
  %v26 = vld [vmem:[%s1 + $0x60] sm:$0xff]
  %v27 = vld [vmem:[%s1 + $0x68] sm:$0xff]
  %v28 = vld [vmem:[%s1 + $0x70] sm:$0xff]
  %v29 = vld [vmem:[%s1 + $0x78] sm:$0xff]
  %v46 = vunpack.c.l.b16 %v14
  %v47 = vunpack.c.h.b16 %v14
  %v48 = vunpack.c.l.b16 %v15
  %v49 = vunpack.c.h.b16 %v15
  %v50 = vunpack.c.l.b16 %v16
  %v51 = vunpack.c.h.b16 %v16
  %v52 = vunpack.c.l.b16 %v17
  %v53 = vunpack.c.h.b16 %v17
  %v54 = vunpack.c.l.b16 %v18
  %v55 = vunpack.c.h.b16 %v18
  %v56 = vunpack.c.l.b16 %v19
  %v57 = vunpack.c.h.b16 %v19
  %v58 = vunpack.c.l.b16 %v20
  %v59 = vunpack.c.h.b16 %v20
  %v60 = vunpack.c.l.b16 %v21
  %v61 = vunpack.c.h.b16 %v21
  %v62 = vunpack.c.l.b16 %v22
  %v63 = vunpack.c.h.b16 %v22
  %v64 = vunpack.c.l.b16 %v23
  %v65 = vunpack.c.h.b16 %v23
  %v66 = vunpack.c.l.b16 %v24
  %v67 = vunpack.c.h.b16 %v24
  %v68 = vunpack.c.l.b16 %v25
  %v69 = vunpack.c.h.b16 %v25
  %v70 = vunpack.c.l.b16 %v26
  %v71 = vunpack.c.h.b16 %v26
  %v72 = vunpack.c.l.b16 %v27
  %v73 = vunpack.c.h.b16 %v27
  %v74 = vunpack.c.l.b16 %v28
  %v75 = vunpack.c.h.b16 %v28
  %v76 = vunpack.c.l.b16 %v29
  %v77 = vunpack.c.h.b16 %v29
  %v78 = vpack.c.b16 %v54, %v46
  %v79 = vpack.c.b16 %v55, %v47
  %v80 = vpack.c.b16 %v56, %v48
  %v81 = vpack.c.b16 %v57, %v49
  %v82 = vpack.c.b16 %v58, %v50
  %v83 = vpack.c.b16 %v59, %v51
  %v84 = vpack.c.b16 %v60, %v52
  %v85 = vpack.c.b16 %v61, %v53
  %v86 = vpack.c.b16 %v70, %v62
  %v87 = vpack.c.b16 %v71, %v63
  %v88 = vpack.c.b16 %v72, %v64
  %v89 = vpack.c.b16 %v73, %v65
  %v90 = vpack.c.b16 %v74, %v66
  %v91 = vpack.c.b16 %v75, %v67
  %v92 = vpack.c.b16 %v76, %v68
  %v93 = vpack.c.b16 %v77, %v69
  %vm110 = vcmask 261120
  %v112 = vsel %vm110, %v13, 0
  %114 = vmatprep.subr.bf16.mxu0 0
  %115 = vmatpush1.bf16.msra.mxu0 0
  %116 = vmatprep.subr.bf16.mxu0 0
  %117 = vmatpush1.bf16.msra.mxu0 0
  %118 = vmatprep.subr.bf16.mxu0 0
  %119 = vmatpush1.bf16.msra.mxu0 0
  %120 = vmatprep.subr.bf16.mxu0 0
  %121 = vmatpush1.bf16.msra.mxu0 0
  %122 = vmatprep.subr.bf16.mxu0 0
  %123 = vmatpush1.bf16.msra.mxu0 0
  %124 = vmatprep.subr.bf16.mxu0 0
  %125 = vmatpush1.bf16.msra.mxu0 0
  %126 = vmatprep.subr.bf16.mxu0 %v87
  %127 = vmatpush1.bf16.msra.mxu0 %v86
  %128 = vmatprep.subr.bf16.mxu0 %v79
  %129 = vmatpush1.bf16.msra.mxu0 %v78
  %130 = vmatprep.subr.bf16.mxu0 0
  %131 = vmatpush2.bf16.msra.mxu0 0
  %132 = vmatprep.subr.bf16.mxu0 0
  %133 = vmatpush2.bf16.msra.mxu0 0
  %134 = vmatprep.subr.bf16.mxu0 0
  %135 = vmatpush2.bf16.msra.mxu0 0
  %136 = vmatprep.subr.bf16.mxu0 0
  %137 = vmatpush2.bf16.msra.mxu0 0
  %138 = vmatprep.subr.bf16.mxu0 0
  %139 = vmatpush2.bf16.msra.mxu0 0
  %140 = vmatprep.subr.bf16.mxu0 0
  %141 = vmatpush2.bf16.msra.mxu0 0
  %142 = vmatprep.subr.bf16.mxu0 0
  %143 = vmatpush2.bf16.msra.mxu0 0
  %144 = vmatprep.subr.bf16.mxu0 0
  %145 = vmatpush2.bf16.msra.mxu0 0
  %146 = vmatprep.mubr.bf16.mxu0 0
  %147 = vmatmul.mubr.bf16.gmra.mxu0 %v112
  %v148 = vpop.f32.mrf.mxu0
  %v149 = vadd.f32 0.0, %v148
  %v150 = vpop.f32.mrf.mxu0
  %v151 = vadd.f32 0.0, %v150
  %v152 = vpop.f32.mrf.mxu0
  %v153 = vpop.f32.mrf.mxu0
  %154 = vdwg.mxu0
  %155 = vmatprep.subr.bf16.mxu0 0
  %156 = vmatpush1.bf16.msra.mxu0 0
  %157 = vmatprep.subr.bf16.mxu0 0
  %158 = vmatpush1.bf16.msra.mxu0 0
  %159 = vmatprep.subr.bf16.mxu0 0
  %160 = vmatpush1.bf16.msra.mxu0 0
  %161 = vmatprep.subr.bf16.mxu0 0
  %162 = vmatpush1.bf16.msra.mxu0 0
  %163 = vmatprep.subr.bf16.mxu0 0
  %164 = vmatpush1.bf16.msra.mxu0 0
  %165 = vmatprep.subr.bf16.mxu0 0
  %166 = vmatpush1.bf16.msra.mxu0 0
  %167 = vmatprep.subr.bf16.mxu0 %v89
  %168 = vmatpush1.bf16.msra.mxu0 %v88
  %169 = vmatprep.subr.bf16.mxu0 %v81
  %170 = vmatpush1.bf16.msra.mxu0 %v80
  %171 = vmatprep.subr.bf16.mxu0 0
  %172 = vmatpush2.bf16.msra.mxu0 0
  %173 = vmatprep.subr.bf16.mxu0 0
  %174 = vmatpush2.bf16.msra.mxu0 0
  %175 = vmatprep.subr.bf16.mxu0 0
  %176 = vmatpush2.bf16.msra.mxu0 0
  %177 = vmatprep.subr.bf16.mxu0 0
  %178 = vmatpush2.bf16.msra.mxu0 0
  %179 = vmatprep.subr.bf16.mxu0 0
  %180 = vmatpush2.bf16.msra.mxu0 0
  %181 = vmatprep.subr.bf16.mxu0 0
  %182 = vmatpush2.bf16.msra.mxu0 0
  %183 = vmatprep.subr.bf16.mxu0 0
  %184 = vmatpush2.bf16.msra.mxu0 0
  %185 = vmatprep.subr.bf16.mxu0 0
  %186 = vmatpush2.bf16.msra.mxu0 0
  %187 = vmatprep.mubr.bf16.mxu0 0
  %188 = vmatmul.mubr.bf16.gmra.mxu0 %v112
  %v189 = vpop.f32.mrf.mxu0
  %v190 = vadd.f32 0.0, %v189
  %v191 = vpop.f32.mrf.mxu0
  %v192 = vadd.f32 0.0, %v191
  %v193 = vpop.f32.mrf.mxu0
  %v194 = vpop.f32.mrf.mxu0
  %195 = vdwg.mxu0
  %196 = vmatprep.subr.bf16.mxu0 0
  %197 = vmatpush1.bf16.msra.mxu0 0
  %198 = vmatprep.subr.bf16.mxu0 0
  %199 = vmatpush1.bf16.msra.mxu0 0
  %200 = vmatprep.subr.bf16.mxu0 0
  %201 = vmatpush1.bf16.msra.mxu0 0
  %202 = vmatprep.subr.bf16.mxu0 0
  %203 = vmatpush1.bf16.msra.mxu0 0
  %204 = vmatprep.subr.bf16.mxu0 0
  %205 = vmatpush1.bf16.msra.mxu0 0
  %206 = vmatprep.subr.bf16.mxu0 0
  %207 = vmatpush1.bf16.msra.mxu0 0
  %208 = vmatprep.subr.bf16.mxu0 %v91
  %209 = vmatpush1.bf16.msra.mxu0 %v90
  %210 = vmatprep.subr.bf16.mxu0 %v83
  %211 = vmatpush1.bf16.msra.mxu0 %v82
  %212 = vmatprep.subr.bf16.mxu0 0
  %213 = vmatpush2.bf16.msra.mxu0 0
  %214 = vmatprep.subr.bf16.mxu0 0
  %215 = vmatpush2.bf16.msra.mxu0 0
  %216 = vmatprep.subr.bf16.mxu0 0
  %217 = vmatpush2.bf16.msra.mxu0 0
  %218 = vmatprep.subr.bf16.mxu0 0
  %219 = vmatpush2.bf16.msra.mxu0 0
  %220 = vmatprep.subr.bf16.mxu0 0
  %221 = vmatpush2.bf16.msra.mxu0 0
  %222 = vmatprep.subr.bf16.mxu0 0
  %223 = vmatpush2.bf16.msra.mxu0 0
  %224 = vmatprep.subr.bf16.mxu0 0
  %225 = vmatpush2.bf16.msra.mxu0 0
  %226 = vmatprep.subr.bf16.mxu0 0
  %227 = vmatpush2.bf16.msra.mxu0 0
  %228 = vmatprep.mubr.bf16.mxu0 0
  %229 = vmatmul.mubr.bf16.gmra.mxu0 %v112
  %v230 = vpop.f32.mrf.mxu0
  %v231 = vadd.f32 0.0, %v230
  %v232 = vpop.f32.mrf.mxu0
  %v233 = vadd.f32 0.0, %v232
  %v234 = vpop.f32.mrf.mxu0
  %v235 = vpop.f32.mrf.mxu0
  %236 = vdwg.mxu0
  %237 = vmatprep.subr.bf16.mxu0 0
  %238 = vmatpush1.bf16.msra.mxu0 0
  %239 = vmatprep.subr.bf16.mxu0 0
  %240 = vmatpush1.bf16.msra.mxu0 0
  %241 = vmatprep.subr.bf16.mxu0 0
  %242 = vmatpush1.bf16.msra.mxu0 0
  %243 = vmatprep.subr.bf16.mxu0 0
  %244 = vmatpush1.bf16.msra.mxu0 0
  %245 = vmatprep.subr.bf16.mxu0 0
  %246 = vmatpush1.bf16.msra.mxu0 0
  %247 = vmatprep.subr.bf16.mxu0 0
  %248 = vmatpush1.bf16.msra.mxu0 0
  %249 = vmatprep.subr.bf16.mxu0 %v93
  %250 = vmatpush1.bf16.msra.mxu0 %v92
  %251 = vmatprep.subr.bf16.mxu0 %v85
  %252 = vmatpush1.bf16.msra.mxu0 %v84
  %253 = vmatprep.subr.bf16.mxu0 0
  %254 = vmatpush2.bf16.msra.mxu0 0
  %255 = vmatprep.subr.bf16.mxu0 0
  %256 = vmatpush2.bf16.msra.mxu0 0
  %257 = vmatprep.subr.bf16.mxu0 0
  %258 = vmatpush2.bf16.msra.mxu0 0
  %259 = vmatprep.subr.bf16.mxu0 0
  %260 = vmatpush2.bf16.msra.mxu0 0
  %261 = vmatprep.subr.bf16.mxu0 0
  %262 = vmatpush2.bf16.msra.mxu0 0
  %263 = vmatprep.subr.bf16.mxu0 0
  %264 = vmatpush2.bf16.msra.mxu0 0
  %265 = vmatprep.subr.bf16.mxu0 0
  %266 = vmatpush2.bf16.msra.mxu0 0
  %267 = vmatprep.subr.bf16.mxu0 0
  %268 = vmatpush2.bf16.msra.mxu0 0
  %269 = vmatprep.mubr.bf16.mxu0 0
  %270 = vmatmul.mubr.bf16.gmra.mxu0 %v112
  %v271 = vpop.f32.mrf.mxu0
  %v272 = vadd.f32 0.0, %v271
  %v273 = vpop.f32.mrf.mxu0
  %v274 = vadd.f32 0.0, %v273
  %v275 = vpop.f32.mrf.mxu0
  %v276 = vpop.f32.mrf.mxu0
  %277 = vdwg.mxu0
  %278 = vst [vmem:[%s2] sm:$0xff] %v149
  %279 = vst [vmem:[%s2 + $0x8] sm:$0xff] %v151
  %280 = vst [vmem:[%s2 + $0x10] sm:$0xff] %v190
  %281 = vst [vmem:[%s2 + $0x18] sm:$0xff] %v192
  %282 = vst [vmem:[%s2 + $0x20] sm:$0xff] %v231
  %283 = vst [vmem:[%s2 + $0x28] sm:$0xff] %v233
  %284 = vst [vmem:[%s2 + $0x30] sm:$0xff] %v272
  %285 = vst [vmem:[%s2 + $0x38] sm:$0xff] %v274
  // Predicated region
  $region10: #{generator_forward.6} parent=0 // pred_check
    _
  $region11: #{generator_forward.6} parent=0 // pred_check_branch
    %287 = sbr.rel (0) target = $region13
  $region12: #{generator_forward.6} parent=0 // pred_region
    _
  $region13: #{generator_forward.6} parent=0 // pred_fallthru
    _
  // Predicated region
  $region14: #{generator_forward.6} parent=0 // pred_check
    _
  $region15: #{generator_forward.6} parent=0 // pred_check_branch
    %289 = sbr.rel (0) target = $region17
  $region16: #{generator_forward.6} parent=0 // pred_region
    _
  $region17: #{generator_forward.6} parent=0 // pred_fallthru
    _

// kernel: generator_forward.7
$region0: #{generator_forward.7}
  #allocation0 [shape = 'u32[]', space=smem, size = 0x4, offset = 0x4, fixed_abs, tag = 'smem constant byte address 0x4 - core index']
  #allocation1 [shape = 'u32[144,128]{1,0:T(1,128)}', space=vmem, size = 0x12000, scoped, tag = 'internal scratch']
  %s0 = inlined_call_operand.vmem [shape: f32[32,64], index: 0, kind: input, shape index: {}]
  %s1 = inlined_call_operand.vmem [shape: f32[1,64], index: 1, kind: input, shape index: {}]
  %s2 = inlined_call_operand.vmem [shape: f32[1,64], index: 2, kind: input, shape index: {}]
  %s3 = inlined_call_operand.vmem [shape: bf16[64,512], index: 3, kind: input, shape index: {}]
  %s4 = inlined_call_operand.vmem [shape: f32[32,512], index: 4, kind: output, shape index: {}]
  %s5 = sld [smem:[#allocation0]]
  $region26: #{generator_forward.7} parent=0
    _
  %s7 = ssub.s32 1, %s5
  %s8 = scalar_select 0, %s7, %s5
  // Predicated region
  $region2: #{generator_forward.7} parent=0 // pred_check
    _
  $region3: #{generator_forward.7} parent=0 // pred_check_branch
    %10 = sbr.rel (0) target = $region5
  $region4: #{generator_forward.7} parent=0 // pred_region
    _
  $region5: #{generator_forward.7} parent=0 // pred_fallthru
    _
  // Predicated region
  $region6: #{generator_forward.7} parent=0 // pred_check
    _
  $region7: #{generator_forward.7} parent=0 // pred_check_branch
    %12 = sbr.rel (0) target = $region9
  $region8: #{generator_forward.7} parent=0 // pred_region
    _
  $region9: #{generator_forward.7} parent=0 // pred_fallthru
    _
  // Predicated region
  $region10: #{generator_forward.7} parent=0 // pred_check
    _
  $region11: #{generator_forward.7} parent=0 // pred_check_branch
    %14 = sbr.rel (0) target = $region13
  $region12: #{generator_forward.7} parent=0 // pred_region
    _
  $region13: #{generator_forward.7} parent=0 // pred_fallthru
    _
  // Predicated region
  $region14: #{generator_forward.7} parent=0 // pred_check
    _
  $region15: #{generator_forward.7} parent=0 // pred_check_branch
    %16 = sbr.rel (0) target = $region17
  $region16: #{generator_forward.7} parent=0 // pred_region
    _
  $region17: #{generator_forward.7} parent=0 // pred_fallthru
    _
  %v18 = vld [vmem:[%s0] sm:$0xff]
  %v19 = vld [vmem:[%s0 + $0x8] sm:$0xff]
  %v20 = vld [vmem:[%s0 + $0x10] sm:$0xff]
  %v21 = vld [vmem:[%s0 + $0x18] sm:$0xff]
  %v22 = vld [vmem:[%s1] sm:$0x1]
  %v24 = vlaneseq
  %v25 = vshrl.u32 %v24, 7
  %v26 = vsub.s32 0, %v25
  %v27 = vrot.slane %v22, %v26
  %v29 = vmul.f32 %v18, %v27
  %v30 = vmul.f32 %v19, %v27
  %v31 = vmul.f32 %v20, %v27
  %v32 = vmul.f32 %v21, %v27
  %v33 = vld [vmem:[%s2] sm:$0x1]
  %v35 = vlaneseq
  %v36 = vshrl.u32 %v35, 7
  %v37 = vsub.s32 0, %v36
  %v38 = vrot.slane %v33, %v37
  %v40 = vadd.f32 %v29, %v38
  %v41 = vadd.f32 %v30, %v38
  %v42 = vadd.f32 %v31, %v38
  %v43 = vadd.f32 %v32, %v38
  %v44 = vmax.f32 %v40, 0.0
  %v45 = vmax.f32 %v41, 0.0
  %v46 = vmax.f32 %v42, 0.0
  %v47 = vmax.f32 %v43, 0.0
  %v48 = vpack.c.bf16 %v45, %v44
  %v49 = vpack.c.bf16 %v47, %v46
  %v50 = vld [vmem:[%s3] sm:$0xff]
  %v51 = vld [vmem:[%s3 + $0x8] sm:$0xff]
  %v52 = vld [vmem:[%s3 + $0x10] sm:$0xff]
  %v53 = vld [vmem:[%s3 + $0x18] sm:$0xff]
  %v54 = vld [vmem:[%s3 + $0x20] sm:$0xff]
  %v55 = vld [vmem:[%s3 + $0x28] sm:$0xff]
  %v56 = vld [vmem:[%s3 + $0x30] sm:$0xff]
  %v57 = vld [vmem:[%s3 + $0x38] sm:$0xff]
  %v58 = vld [vmem:[%s3 + $0x40] sm:$0xff]
  %v59 = vld [vmem:[%s3 + $0x48] sm:$0xff]
  %v60 = vld [vmem:[%s3 + $0x50] sm:$0xff]
  %v61 = vld [vmem:[%s3 + $0x58] sm:$0xff]
  %v62 = vld [vmem:[%s3 + $0x60] sm:$0xff]
  %v63 = vld [vmem:[%s3 + $0x68] sm:$0xff]
  %v64 = vld [vmem:[%s3 + $0x70] sm:$0xff]
  %v65 = vld [vmem:[%s3 + $0x78] sm:$0xff]
  %v82 = vunpack.c.l.b16 %v50
  %v83 = vunpack.c.h.b16 %v50
  %v84 = vunpack.c.l.b16 %v51
  %v85 = vunpack.c.h.b16 %v51
  %v86 = vunpack.c.l.b16 %v52
  %v87 = vunpack.c.h.b16 %v52
  %v88 = vunpack.c.l.b16 %v53
  %v89 = vunpack.c.h.b16 %v53
  %v90 = vunpack.c.l.b16 %v54
  %v91 = vunpack.c.h.b16 %v54
  %v92 = vunpack.c.l.b16 %v55
  %v93 = vunpack.c.h.b16 %v55
  %v94 = vunpack.c.l.b16 %v56
  %v95 = vunpack.c.h.b16 %v56
  %v96 = vunpack.c.l.b16 %v57
  %v97 = vunpack.c.h.b16 %v57
  %v98 = vunpack.c.l.b16 %v58
  %v99 = vunpack.c.h.b16 %v58
  %v100 = vunpack.c.l.b16 %v59
  %v101 = vunpack.c.h.b16 %v59
  %v102 = vunpack.c.l.b16 %v60
  %v103 = vunpack.c.h.b16 %v60
  %v104 = vunpack.c.l.b16 %v61
  %v105 = vunpack.c.h.b16 %v61
  %v106 = vunpack.c.l.b16 %v62
  %v107 = vunpack.c.h.b16 %v62
  %v108 = vunpack.c.l.b16 %v63
  %v109 = vunpack.c.h.b16 %v63
  %v110 = vunpack.c.l.b16 %v64
  %v111 = vunpack.c.h.b16 %v64
  %v112 = vunpack.c.l.b16 %v65
  %v113 = vunpack.c.h.b16 %v65
  %v114 = vpack.c.b16 %v86, %v82
  %v115 = vpack.c.b16 %v87, %v83
  %v116 = vpack.c.b16 %v88, %v84
  %v117 = vpack.c.b16 %v89, %v85
  %v118 = vpack.c.b16 %v94, %v90
  %v119 = vpack.c.b16 %v95, %v91
  %v120 = vpack.c.b16 %v96, %v92
  %v121 = vpack.c.b16 %v97, %v93
  %v122 = vpack.c.b16 %v102, %v98
  %v123 = vpack.c.b16 %v103, %v99
  %v124 = vpack.c.b16 %v104, %v100
  %v125 = vpack.c.b16 %v105, %v101
  %v126 = vpack.c.b16 %v110, %v106
  %v127 = vpack.c.b16 %v111, %v107
  %v128 = vpack.c.b16 %v112, %v108
  %v129 = vpack.c.b16 %v113, %v109
  %vm146 = vcmask 523264
  %v148 = vsel %vm146, %v48, 0
  %v151 = vsel %vm146, %v49, 0
  %153 = vmatprep.subr.bf16.mxu0 0
  %154 = vmatpush1.bf16.msra.mxu0 0
  %155 = vmatprep.subr.bf16.mxu0 0
  %156 = vmatpush1.bf16.msra.mxu0 0
  %157 = vmatprep.subr.bf16.mxu0 0
  %158 = vmatpush1.bf16.msra.mxu0 0
  %159 = vmatprep.subr.bf16.mxu0 0
  %160 = vmatpush1.bf16.msra.mxu0 0
  %161 = vmatprep.subr.bf16.mxu0 %v127
  %162 = vmatpush1.bf16.msra.mxu0 %v126
  %163 = vmatprep.subr.bf16.mxu0 %v123
  %164 = vmatpush1.bf16.msra.mxu0 %v122
  %165 = vmatprep.subr.bf16.mxu0 %v119
  %166 = vmatpush1.bf16.msra.mxu0 %v118
  %167 = vmatprep.subr.bf16.mxu0 %v115
  %168 = vmatpush1.bf16.msra.mxu0 %v114
  %169 = vmatprep.subr.bf16.mxu0 0
  %170 = vmatpush2.bf16.msra.mxu0 0
  %171 = vmatprep.subr.bf16.mxu0 0
  %172 = vmatpush2.bf16.msra.mxu0 0
  %173 = vmatprep.subr.bf16.mxu0 0
  %174 = vmatpush2.bf16.msra.mxu0 0
  %175 = vmatprep.subr.bf16.mxu0 0
  %176 = vmatpush2.bf16.msra.mxu0 0
  %177 = vmatprep.subr.bf16.mxu0 0
  %178 = vmatpush2.bf16.msra.mxu0 0
  %179 = vmatprep.subr.bf16.mxu0 0
  %180 = vmatpush2.bf16.msra.mxu0 0
  %181 = vmatprep.subr.bf16.mxu0 0
  %182 = vmatpush2.bf16.msra.mxu0 0
  %183 = vmatprep.subr.bf16.mxu0 0
  %184 = vmatpush2.bf16.msra.mxu0 0
  %185 = vmatprep.mubr.bf16.mxu0 0
  %186 = vmatmul.mubr.bf16.gmra.mxu0 %v148
  %v187 = vpop.f32.mrf.mxu0
  %v188 = vadd.f32 0.0, %v187
  %v189 = vpop.f32.mrf.mxu0
  %v190 = vadd.f32 0.0, %v189
  %v191 = vpop.f32.mrf.mxu0
  %v192 = vadd.f32 0.0, %v191
  %v193 = vpop.f32.mrf.mxu0
  %v194 = vadd.f32 0.0, %v193
  %195 = vmatprep.mubr.bf16.mxu0 0
  %196 = vmatmul.mubr.bf16.gmra.mxu0 %v151
  %v197 = vpop.f32.mrf.mxu0
  %v198 = vadd.f32 0.0, %v197
  %v199 = vpop.f32.mrf.mxu0
  %v200 = vadd.f32 0.0, %v199
  %v201 = vpop.f32.mrf.mxu0
  %v202 = vadd.f32 0.0, %v201
  %v203 = vpop.f32.mrf.mxu0
  %v204 = vadd.f32 0.0, %v203
  %205 = vdwg.mxu0
  %206 = vmatprep.subr.bf16.mxu0 0
  %207 = vmatpush1.bf16.msra.mxu0 0
  %208 = vmatprep.subr.bf16.mxu0 0
  %209 = vmatpush1.bf16.msra.mxu0 0
  %210 = vmatprep.subr.bf16.mxu0 0
  %211 = vmatpush1.bf16.msra.mxu0 0
  %212 = vmatprep.subr.bf16.mxu0 0
  %213 = vmatpush1.bf16.msra.mxu0 0
  %214 = vmatprep.subr.bf16.mxu0 %v129
  %215 = vmatpush1.bf16.msra.mxu0 %v128
  %216 = vmatprep.subr.bf16.mxu0 %v125
  %217 = vmatpush1.bf16.msra.mxu0 %v124
  %218 = vmatprep.subr.bf16.mxu0 %v121
  %219 = vmatpush1.bf16.msra.mxu0 %v120
  %220 = vmatprep.subr.bf16.mxu0 %v117
  %221 = vmatpush1.bf16.msra.mxu0 %v116
  %222 = vmatprep.subr.bf16.mxu0 0
  %223 = vmatpush2.bf16.msra.mxu0 0
  %224 = vmatprep.subr.bf16.mxu0 0
  %225 = vmatpush2.bf16.msra.mxu0 0
  %226 = vmatprep.subr.bf16.mxu0 0
  %227 = vmatpush2.bf16.msra.mxu0 0
  %228 = vmatprep.subr.bf16.mxu0 0
  %229 = vmatpush2.bf16.msra.mxu0 0
  %230 = vmatprep.subr.bf16.mxu0 0
  %231 = vmatpush2.bf16.msra.mxu0 0
  %232 = vmatprep.subr.bf16.mxu0 0
  %233 = vmatpush2.bf16.msra.mxu0 0
  %234 = vmatprep.subr.bf16.mxu0 0
  %235 = vmatpush2.bf16.msra.mxu0 0
  %236 = vmatprep.subr.bf16.mxu0 0
  %237 = vmatpush2.bf16.msra.mxu0 0
  %238 = vmatprep.mubr.bf16.mxu0 0
  %239 = vmatmul.mubr.bf16.gmra.mxu0 %v148
  %v240 = vpop.f32.mrf.mxu0
  %v241 = vadd.f32 0.0, %v240
  %v242 = vpop.f32.mrf.mxu0
  %v243 = vadd.f32 0.0, %v242
  %v244 = vpop.f32.mrf.mxu0
  %v245 = vadd.f32 0.0, %v244
  %v246 = vpop.f32.mrf.mxu0
  %v247 = vadd.f32 0.0, %v246
  %248 = vmatprep.mubr.bf16.mxu0 0
  %249 = vmatmul.mubr.bf16.gmra.mxu0 %v151
  %v250 = vpop.f32.mrf.mxu0
  %v251 = vadd.f32 0.0, %v250
  %v252 = vpop.f32.mrf.mxu0
  %v253 = vadd.f32 0.0, %v252
  %v254 = vpop.f32.mrf.mxu0
  %v255 = vadd.f32 0.0, %v254
  %v256 = vpop.f32.mrf.mxu0
  %v257 = vadd.f32 0.0, %v256
  %258 = vdwg.mxu0
  %259 = vst [vmem:[%s4] sm:$0xff] %v188
  %260 = vst [vmem:[%s4 + $0x8] sm:$0xff] %v190
  %261 = vst [vmem:[%s4 + $0x10] sm:$0xff] %v241
  %262 = vst [vmem:[%s4 + $0x18] sm:$0xff] %v243
  %263 = vst [vmem:[%s4 + $0x20] sm:$0xff] %v192
  %264 = vst [vmem:[%s4 + $0x28] sm:$0xff] %v194
  %265 = vst [vmem:[%s4 + $0x30] sm:$0xff] %v245
  %266 = vst [vmem:[%s4 + $0x38] sm:$0xff] %v247
  %267 = vst [vmem:[%s4 + $0x40] sm:$0xff] %v198
  %268 = vst [vmem:[%s4 + $0x48] sm:$0xff] %v200
  %269 = vst [vmem:[%s4 + $0x50] sm:$0xff] %v251
  %270 = vst [vmem:[%s4 + $0x58] sm:$0xff] %v253
  %271 = vst [vmem:[%s4 + $0x60] sm:$0xff] %v202
  %272 = vst [vmem:[%s4 + $0x68] sm:$0xff] %v204
  %273 = vst [vmem:[%s4 + $0x70] sm:$0xff] %v255
  %274 = vst [vmem:[%s4 + $0x78] sm:$0xff] %v257
  // Predicated region
  $region18: #{generator_forward.7} parent=0 // pred_check
    _
  $region19: #{generator_forward.7} parent=0 // pred_check_branch
    %276 = sbr.rel (0) target = $region21
  $region20: #{generator_forward.7} parent=0 // pred_region
    _
  $region21: #{generator_forward.7} parent=0 // pred_fallthru
    _
  // Predicated region
  $region22: #{generator_forward.7} parent=0 // pred_check
    _
  $region23: #{generator_forward.7} parent=0 // pred_check_branch
    %278 = sbr.rel (0) target = $region25
  $region24: #{generator_forward.7} parent=0 // pred_region
    _
  $region25: #{generator_forward.7} parent=0 // pred_fallthru
    _

// kernel: generator_forward.8
$region0: #{generator_forward.8}
  #allocation0 [shape = 'u32[]', space=smem, size = 0x4, offset = 0x4, fixed_abs, tag = 'smem constant byte address 0x4 - core index']
  #allocation1 [shape = 'u32[144,128]{1,0:T(1,128)}', space=vmem, size = 0x12000, scoped, tag = 'internal scratch']
  %s0 = inlined_call_operand.vmem [shape: f32[128,32], index: 0, kind: input, shape index: {}]
  %s1 = inlined_call_operand.vmem [shape: f32[1,32], index: 1, kind: input, shape index: {}]
  %s2 = inlined_call_operand.vmem [shape: f32[1,32], index: 2, kind: input, shape index: {}]
  %s3 = inlined_call_operand.vmem [shape: bf16[32,256], index: 3, kind: input, shape index: {}]
  %s4 = inlined_call_operand.vmem [shape: f32[128,256], index: 4, kind: output, shape index: {}]
  %s5 = sld [smem:[#allocation0]]
  $region26: #{generator_forward.8} parent=0
    _
  %s7 = ssub.s32 1, %s5
  %s8 = scalar_select 0, %s7, %s5
  // Predicated region
  $region2: #{generator_forward.8} parent=0 // pred_check
    _
  $region3: #{generator_forward.8} parent=0 // pred_check_branch
    %10 = sbr.rel (0) target = $region5
  $region4: #{generator_forward.8} parent=0 // pred_region
    _
  $region5: #{generator_forward.8} parent=0 // pred_fallthru
    _
  // Predicated region
  $region6: #{generator_forward.8} parent=0 // pred_check
    _
  $region7: #{generator_forward.8} parent=0 // pred_check_branch
    %12 = sbr.rel (0) target = $region9
  $region8: #{generator_forward.8} parent=0 // pred_region
    _
  $region9: #{generator_forward.8} parent=0 // pred_fallthru
    _
  // Predicated region
  $region10: #{generator_forward.8} parent=0 // pred_check
    _
  $region11: #{generator_forward.8} parent=0 // pred_check_branch
    %14 = sbr.rel (0) target = $region13
  $region12: #{generator_forward.8} parent=0 // pred_region
    _
  $region13: #{generator_forward.8} parent=0 // pred_fallthru
    _
  // Predicated region
  $region14: #{generator_forward.8} parent=0 // pred_check
    _
  $region15: #{generator_forward.8} parent=0 // pred_check_branch
    %16 = sbr.rel (0) target = $region17
  $region16: #{generator_forward.8} parent=0 // pred_region
    _
  $region17: #{generator_forward.8} parent=0 // pred_fallthru
    _
  %v18 = vld [vmem:[%s0] sm:$0xff]
  %v19 = vld [vmem:[%s0 + $0x8] sm:$0xff]
  %v20 = vld [vmem:[%s0 + $0x10] sm:$0xff]
  %v21 = vld [vmem:[%s0 + $0x18] sm:$0xff]
  %v22 = vld [vmem:[%s0 + $0x20] sm:$0xff]
  %v23 = vld [vmem:[%s0 + $0x28] sm:$0xff]
  %v24 = vld [vmem:[%s0 + $0x30] sm:$0xff]
  %v25 = vld [vmem:[%s0 + $0x38] sm:$0xff]
  %v26 = vld [vmem:[%s0 + $0x40] sm:$0xff]
  %v27 = vld [vmem:[%s0 + $0x48] sm:$0xff]
  %v28 = vld [vmem:[%s0 + $0x50] sm:$0xff]
  %v29 = vld [vmem:[%s0 + $0x58] sm:$0xff]
  %v30 = vld [vmem:[%s0 + $0x60] sm:$0xff]
  %v31 = vld [vmem:[%s0 + $0x68] sm:$0xff]
  %v32 = vld [vmem:[%s0 + $0x70] sm:$0xff]
  %v33 = vld [vmem:[%s0 + $0x78] sm:$0xff]
  %v34 = vld [vmem:[%s1] sm:$0x1]
  %v36 = vlaneseq
  %v37 = vshrl.u32 %v36, 7
  %v38 = vsub.s32 0, %v37
  %v39 = vrot.slane %v34, %v38
  %v41 = vmul.f32 %v18, %v39
  %v42 = vmul.f32 %v19, %v39
  %v43 = vmul.f32 %v20, %v39
  %v44 = vmul.f32 %v21, %v39
  %v45 = vmul.f32 %v22, %v39
  %v46 = vmul.f32 %v23, %v39
  %v47 = vmul.f32 %v24, %v39
  %v48 = vmul.f32 %v25, %v39
  %v49 = vmul.f32 %v26, %v39
  %v50 = vmul.f32 %v27, %v39
  %v51 = vmul.f32 %v28, %v39
  %v52 = vmul.f32 %v29, %v39
  %v53 = vmul.f32 %v30, %v39
  %v54 = vmul.f32 %v31, %v39
  %v55 = vmul.f32 %v32, %v39
  %v56 = vmul.f32 %v33, %v39
  %v57 = vld [vmem:[%s2] sm:$0x1]
  %v59 = vlaneseq
  %v60 = vshrl.u32 %v59, 7
  %v61 = vsub.s32 0, %v60
  %v62 = vrot.slane %v57, %v61
  %v64 = vadd.f32 %v41, %v62
  %v65 = vadd.f32 %v42, %v62
  %v66 = vadd.f32 %v43, %v62
  %v67 = vadd.f32 %v44, %v62
  %v68 = vadd.f32 %v45, %v62
  %v69 = vadd.f32 %v46, %v62
  %v70 = vadd.f32 %v47, %v62
  %v71 = vadd.f32 %v48, %v62
  %v72 = vadd.f32 %v49, %v62
  %v73 = vadd.f32 %v50, %v62
  %v74 = vadd.f32 %v51, %v62
  %v75 = vadd.f32 %v52, %v62
  %v76 = vadd.f32 %v53, %v62
  %v77 = vadd.f32 %v54, %v62
  %v78 = vadd.f32 %v55, %v62
  %v79 = vadd.f32 %v56, %v62
  %v80 = vmax.f32 %v64, 0.0
  %v81 = vmax.f32 %v65, 0.0
  %v82 = vmax.f32 %v66, 0.0
  %v83 = vmax.f32 %v67, 0.0
  %v84 = vmax.f32 %v68, 0.0
  %v85 = vmax.f32 %v69, 0.0
  %v86 = vmax.f32 %v70, 0.0
  %v87 = vmax.f32 %v71, 0.0
  %v88 = vmax.f32 %v72, 0.0
  %v89 = vmax.f32 %v73, 0.0
  %v90 = vmax.f32 %v74, 0.0
  %v91 = vmax.f32 %v75, 0.0
  %v92 = vmax.f32 %v76, 0.0
  %v93 = vmax.f32 %v77, 0.0
  %v94 = vmax.f32 %v78, 0.0
  %v95 = vmax.f32 %v79, 0.0
  %v96 = vpack.c.bf16 %v81, %v80
  %v97 = vpack.c.bf16 %v83, %v82
  %v98 = vpack.c.bf16 %v85, %v84
  %v99 = vpack.c.bf16 %v87, %v86
  %v100 = vpack.c.bf16 %v89, %v88
  %v101 = vpack.c.bf16 %v91, %v90
  %v102 = vpack.c.bf16 %v93, %v92
  %v103 = vpack.c.bf16 %v95, %v94
  %v104 = vld [vmem:[%s3] sm:$0xff]
  %v105 = vld [vmem:[%s3 + $0x8] sm:$0xff]
  %v106 = vld [vmem:[%s3 + $0x10] sm:$0xff]
  %v107 = vld [vmem:[%s3 + $0x18] sm:$0xff]
  %v112 = vunpack.c.l.b16 %v104
  %v113 = vunpack.c.h.b16 %v104
  %v114 = vunpack.c.l.b16 %v105
  %v115 = vunpack.c.h.b16 %v105
  %v116 = vunpack.c.l.b16 %v106
  %v117 = vunpack.c.h.b16 %v106
  %v118 = vunpack.c.l.b16 %v107
  %v119 = vunpack.c.h.b16 %v107
  %v120 = vpack.c.b16 %v114, %v112
  %v121 = vpack.c.b16 %v115, %v113
  %v122 = vpack.c.b16 %v118, %v116
  %v123 = vpack.c.b16 %v119, %v117
  %vm128 = vcmask 261120
  %v130 = vsel %vm128, %v96, 0
  %v133 = vsel %vm128, %v97, 0
  %v136 = vsel %vm128, %v98, 0
  %v139 = vsel %vm128, %v99, 0
  %v142 = vsel %vm128, %v100, 0
  %v145 = vsel %vm128, %v101, 0
  %v148 = vsel %vm128, %v102, 0
  %v151 = vsel %vm128, %v103, 0
  %153 = vmatprep.subr.bf16.mxu0 0
  %154 = vmatpush1.bf16.msra.mxu0 0
  %155 = vmatprep.subr.bf16.mxu0 0
  %156 = vmatpush1.bf16.msra.mxu0 0
  %157 = vmatprep.subr.bf16.mxu0 0
  %158 = vmatpush1.bf16.msra.mxu0 0
  %159 = vmatprep.subr.bf16.mxu0 0
  %160 = vmatpush1.bf16.msra.mxu0 0
  %161 = vmatprep.subr.bf16.mxu0 0
  %162 = vmatpush1.bf16.msra.mxu0 0
  %163 = vmatprep.subr.bf16.mxu0 0
  %164 = vmatpush1.bf16.msra.mxu0 0
  %165 = vmatprep.subr.bf16.mxu0 %v123
  %166 = vmatpush1.bf16.msra.mxu0 %v122
  %167 = vmatprep.subr.bf16.mxu0 %v121
  %168 = vmatpush1.bf16.msra.mxu0 %v120
  %169 = vmatprep.subr.bf16.mxu0 0
  %170 = vmatpush2.bf16.msra.mxu0 0
  %171 = vmatprep.subr.bf16.mxu0 0
  %172 = vmatpush2.bf16.msra.mxu0 0
  %173 = vmatprep.subr.bf16.mxu0 0
  %174 = vmatpush2.bf16.msra.mxu0 0
  %175 = vmatprep.subr.bf16.mxu0 0
  %176 = vmatpush2.bf16.msra.mxu0 0
  %177 = vmatprep.subr.bf16.mxu0 0
  %178 = vmatpush2.bf16.msra.mxu0 0
  %179 = vmatprep.subr.bf16.mxu0 0
  %180 = vmatpush2.bf16.msra.mxu0 0
  %181 = vmatprep.subr.bf16.mxu0 0
  %182 = vmatpush2.bf16.msra.mxu0 0
  %183 = vmatprep.subr.bf16.mxu0 0
  %184 = vmatpush2.bf16.msra.mxu0 0
  %185 = vmatprep.mubr.bf16.mxu0 0
  %186 = vmatmul.mubr.bf16.gmra.mxu0 %v130
  %v187 = vpop.f32.mrf.mxu0
  %v188 = vadd.f32 0.0, %v187
  %v189 = vpop.f32.mrf.mxu0
  %v190 = vadd.f32 0.0, %v189
  %v191 = vpop.f32.mrf.mxu0
  %v192 = vadd.f32 0.0, %v191
  %v193 = vpop.f32.mrf.mxu0
  %v194 = vadd.f32 0.0, %v193
  %195 = vmatprep.mubr.bf16.mxu0 0
  %196 = vmatmul.mubr.bf16.gmra.mxu0 %v133
  %v197 = vpop.f32.mrf.mxu0
  %v198 = vadd.f32 0.0, %v197
  %v199 = vpop.f32.mrf.mxu0
  %v200 = vadd.f32 0.0, %v199
  %v201 = vpop.f32.mrf.mxu0
  %v202 = vadd.f32 0.0, %v201
  %v203 = vpop.f32.mrf.mxu0
  %v204 = vadd.f32 0.0, %v203
  %205 = vmatprep.mubr.bf16.mxu0 0
  %206 = vmatmul.mubr.bf16.gmra.mxu0 %v136
  %v207 = vpop.f32.mrf.mxu0
  %v208 = vadd.f32 0.0, %v207
  %v209 = vpop.f32.mrf.mxu0
  %v210 = vadd.f32 0.0, %v209
  %v211 = vpop.f32.mrf.mxu0
  %v212 = vadd.f32 0.0, %v211
  %v213 = vpop.f32.mrf.mxu0
  %v214 = vadd.f32 0.0, %v213
  %215 = vmatprep.mubr.bf16.mxu0 0
  %216 = vmatmul.mubr.bf16.gmra.mxu0 %v139
  %v217 = vpop.f32.mrf.mxu0
  %v218 = vadd.f32 0.0, %v217
  %v219 = vpop.f32.mrf.mxu0
  %v220 = vadd.f32 0.0, %v219
  %v221 = vpop.f32.mrf.mxu0
  %v222 = vadd.f32 0.0, %v221
  %v223 = vpop.f32.mrf.mxu0
  %v224 = vadd.f32 0.0, %v223
  %225 = vmatprep.mubr.bf16.mxu0 0
  %226 = vmatmul.mubr.bf16.gmra.mxu0 %v142
  %v227 = vpop.f32.mrf.mxu0
  %v228 = vadd.f32 0.0, %v227
  %v229 = vpop.f32.mrf.mxu0
  %v230 = vadd.f32 0.0, %v229
  %v231 = vpop.f32.mrf.mxu0
  %v232 = vadd.f32 0.0, %v231
  %v233 = vpop.f32.mrf.mxu0
  %v234 = vadd.f32 0.0, %v233
  %235 = vmatprep.mubr.bf16.mxu0 0
  %236 = vmatmul.mubr.bf16.gmra.mxu0 %v145
  %v237 = vpop.f32.mrf.mxu0
  %v238 = vadd.f32 0.0, %v237
  %v239 = vpop.f32.mrf.mxu0
  %v240 = vadd.f32 0.0, %v239
  %v241 = vpop.f32.mrf.mxu0
  %v242 = vadd.f32 0.0, %v241
  %v243 = vpop.f32.mrf.mxu0
  %v244 = vadd.f32 0.0, %v243
  %245 = vmatprep.mubr.bf16.mxu0 0
  %246 = vmatmul.mubr.bf16.gmra.mxu0 %v148
  %v247 = vpop.f32.mrf.mxu0
  %v248 = vadd.f32 0.0, %v247
  %v249 = vpop.f32.mrf.mxu0
  %v250 = vadd.f32 0.0, %v249
  %v251 = vpop.f32.mrf.mxu0
  %v252 = vadd.f32 0.0, %v251
  %v253 = vpop.f32.mrf.mxu0
  %v254 = vadd.f32 0.0, %v253
  %255 = vmatprep.mubr.bf16.mxu0 0
  %256 = vmatmul.mubr.bf16.gmra.mxu0 %v151
  %v257 = vpop.f32.mrf.mxu0
  %v258 = vadd.f32 0.0, %v257
  %v259 = vpop.f32.mrf.mxu0
  %v260 = vadd.f32 0.0, %v259
  %v261 = vpop.f32.mrf.mxu0
  %v262 = vadd.f32 0.0, %v261
  %v263 = vpop.f32.mrf.mxu0
  %v264 = vadd.f32 0.0, %v263
  %265 = vdwg.mxu0
  %266 = vst [vmem:[%s4] sm:$0xff] %v188
  %267 = vst [vmem:[%s4 + $0x8] sm:$0xff] %v190
  %268 = vst [vmem:[%s4 + $0x10] sm:$0xff] %v192
  %269 = vst [vmem:[%s4 + $0x18] sm:$0xff] %v194
  %270 = vst [vmem:[%s4 + $0x20] sm:$0xff] %v198
  %271 = vst [vmem:[%s4 + $0x28] sm:$0xff] %v200
  %272 = vst [vmem:[%s4 + $0x30] sm:$0xff] %v202
  %273 = vst [vmem:[%s4 + $0x38] sm:$0xff] %v204
  %274 = vst [vmem:[%s4 + $0x40] sm:$0xff] %v208
  %275 = vst [vmem:[%s4 + $0x48] sm:$0xff] %v210
  %276 = vst [vmem:[%s4 + $0x50] sm:$0xff] %v212
  %277 = vst [vmem:[%s4 + $0x58] sm:$0xff] %v214
  %278 = vst [vmem:[%s4 + $0x60] sm:$0xff] %v218
  %279 = vst [vmem:[%s4 + $0x68] sm:$0xff] %v220
  %280 = vst [vmem:[%s4 + $0x70] sm:$0xff] %v222
  %281 = vst [vmem:[%s4 + $0x78] sm:$0xff] %v224
  %282 = vst [vmem:[%s4 + $0x80] sm:$0xff] %v228
  %283 = vst [vmem:[%s4 + $0x88] sm:$0xff] %v230
  %284 = vst [vmem:[%s4 + $0x90] sm:$0xff] %v232
  %285 = vst [vmem:[%s4 + $0x98] sm:$0xff] %v234
  %286 = vst [vmem:[%s4 + $0xa0] sm:$0xff] %v238
  %287 = vst [vmem:[%s4 + $0xa8] sm:$0xff] %v240
  %288 = vst [vmem:[%s4 + $0xb0] sm:$0xff] %v242
  %289 = vst [vmem:[%s4 + $0xb8] sm:$0xff] %v244
  %290 = vst [vmem:[%s4 + $0xc0] sm:$0xff] %v248
  %291 = vst [vmem:[%s4 + $0xc8] sm:$0xff] %v250
  %292 = vst [vmem:[%s4 + $0xd0] sm:$0xff] %v252
  %293 = vst [vmem:[%s4 + $0xd8] sm:$0xff] %v254
  %294 = vst [vmem:[%s4 + $0xe0] sm:$0xff] %v258
  %295 = vst [vmem:[%s4 + $0xe8] sm:$0xff] %v260
  %296 = vst [vmem:[%s4 + $0xf0] sm:$0xff] %v262
  %297 = vst [vmem:[%s4 + $0xf8] sm:$0xff] %v264
  // Predicated region
  $region18: #{generator_forward.8} parent=0 // pred_check
    _
  $region19: #{generator_forward.8} parent=0 // pred_check_branch
    %299 = sbr.rel (0) target = $region21
  $region20: #{generator_forward.8} parent=0 // pred_region
    _
  $region21: #{generator_forward.8} parent=0 // pred_fallthru
    _
  // Predicated region
  $region22: #{generator_forward.8} parent=0 // pred_check
    _
  $region23: #{generator_forward.8} parent=0 // pred_check_branch
    %301 = sbr.rel (0) target = $region25
  $region24: #{generator_forward.8} parent=0 // pred_region
    _
  $region25: #{generator_forward.8} parent=0 // pred_fallthru
    _

// kernel: generator_forward.9
$region0: #{generator_forward.9}
  #allocation0 [shape = 'u32[]', space=smem, size = 0x4, offset = 0x4, fixed_abs, tag = 'smem constant byte address 0x4 - core index']
  #allocation1 [shape = 'u32[144,128]{1,0:T(1,128)}', space=vmem, size = 0x12000, scoped, tag = 'internal scratch']
  %s0 = inlined_call_operand.vmem [shape: f32[512,16], index: 0, kind: input, shape index: {}]
  %s1 = inlined_call_operand.vmem [shape: f32[1,16], index: 1, kind: input, shape index: {}]
  %s2 = inlined_call_operand.vmem [shape: f32[1,16], index: 2, kind: input, shape index: {}]
  %s3 = inlined_call_operand.vmem [shape: bf16[16,128], index: 3, kind: input, shape index: {}]
  %s4 = inlined_call_operand.vmem [shape: f32[512,128], index: 4, kind: output, shape index: {}]
  %s5 = sld [smem:[#allocation0]]
  $region26: #{generator_forward.9} parent=0
    _
  %s7 = ssub.s32 1, %s5
  %s8 = scalar_select 0, %s7, %s5
  // Predicated region
  $region2: #{generator_forward.9} parent=0 // pred_check
    _
  $region3: #{generator_forward.9} parent=0 // pred_check_branch
    %10 = sbr.rel (0) target = $region5
  $region4: #{generator_forward.9} parent=0 // pred_region
    _
  $region5: #{generator_forward.9} parent=0 // pred_fallthru
    _
  // Predicated region
  $region6: #{generator_forward.9} parent=0 // pred_check
    _
  $region7: #{generator_forward.9} parent=0 // pred_check_branch
    %12 = sbr.rel (0) target = $region9
  $region8: #{generator_forward.9} parent=0 // pred_region
    _
  $region9: #{generator_forward.9} parent=0 // pred_fallthru
    _
  // Predicated region
  $region10: #{generator_forward.9} parent=0 // pred_check
    _
  $region11: #{generator_forward.9} parent=0 // pred_check_branch
    %14 = sbr.rel (0) target = $region13
  $region12: #{generator_forward.9} parent=0 // pred_region
    _
  $region13: #{generator_forward.9} parent=0 // pred_fallthru
    _
  // Predicated region
  $region14: #{generator_forward.9} parent=0 // pred_check
    _
  $region15: #{generator_forward.9} parent=0 // pred_check_branch
    %16 = sbr.rel (0) target = $region17
  $region16: #{generator_forward.9} parent=0 // pred_region
    _
  $region17: #{generator_forward.9} parent=0 // pred_fallthru
    _
  %v18 = vld [vmem:[%s0] sm:$0xff]
  %v19 = vld [vmem:[%s0 + $0x8] sm:$0xff]
  %v20 = vld [vmem:[%s0 + $0x10] sm:$0xff]
  %v21 = vld [vmem:[%s0 + $0x18] sm:$0xff]
  %v22 = vld [vmem:[%s0 + $0x20] sm:$0xff]
  %v23 = vld [vmem:[%s0 + $0x28] sm:$0xff]
  %v24 = vld [vmem:[%s0 + $0x30] sm:$0xff]
  %v25 = vld [vmem:[%s0 + $0x38] sm:$0xff]
  %v26 = vld [vmem:[%s0 + $0x40] sm:$0xff]
  %v27 = vld [vmem:[%s0 + $0x48] sm:$0xff]
  %v28 = vld [vmem:[%s0 + $0x50] sm:$0xff]
  %v29 = vld [vmem:[%s0 + $0x58] sm:$0xff]
  %v30 = vld [vmem:[%s0 + $0x60] sm:$0xff]
  %v31 = vld [vmem:[%s0 + $0x68] sm:$0xff]
  %v32 = vld [vmem:[%s0 + $0x70] sm:$0xff]
  %v33 = vld [vmem:[%s0 + $0x78] sm:$0xff]
  %v34 = vld [vmem:[%s0 + $0x80] sm:$0xff]
  %v35 = vld [vmem:[%s0 + $0x88] sm:$0xff]
  %v36 = vld [vmem:[%s0 + $0x90] sm:$0xff]
  %v37 = vld [vmem:[%s0 + $0x98] sm:$0xff]
  %v38 = vld [vmem:[%s0 + $0xa0] sm:$0xff]
  %v39 = vld [vmem:[%s0 + $0xa8] sm:$0xff]
  %v40 = vld [vmem:[%s0 + $0xb0] sm:$0xff]
  %v41 = vld [vmem:[%s0 + $0xb8] sm:$0xff]
  %v42 = vld [vmem:[%s0 + $0xc0] sm:$0xff]
  %v43 = vld [vmem:[%s0 + $0xc8] sm:$0xff]
  %v44 = vld [vmem:[%s0 + $0xd0] sm:$0xff]
  %v45 = vld [vmem:[%s0 + $0xd8] sm:$0xff]
  %v46 = vld [vmem:[%s0 + $0xe0] sm:$0xff]
  %v47 = vld [vmem:[%s0 + $0xe8] sm:$0xff]
  %v48 = vld [vmem:[%s0 + $0xf0] sm:$0xff]
  %v49 = vld [vmem:[%s0 + $0xf8] sm:$0xff]
  %v50 = vld [vmem:[%s0 + $0x100] sm:$0xff]
  %v51 = vld [vmem:[%s0 + $0x108] sm:$0xff]
  %v52 = vld [vmem:[%s0 + $0x110] sm:$0xff]
  %v53 = vld [vmem:[%s0 + $0x118] sm:$0xff]
  %v54 = vld [vmem:[%s0 + $0x120] sm:$0xff]
  %v55 = vld [vmem:[%s0 + $0x128] sm:$0xff]
  %v56 = vld [vmem:[%s0 + $0x130] sm:$0xff]
  %v57 = vld [vmem:[%s0 + $0x138] sm:$0xff]
  %v58 = vld [vmem:[%s0 + $0x140] sm:$0xff]
  %v59 = vld [vmem:[%s0 + $0x148] sm:$0xff]
  %v60 = vld [vmem:[%s0 + $0x150] sm:$0xff]
  %v61 = vld [vmem:[%s0 + $0x158] sm:$0xff]
  %v62 = vld [vmem:[%s0 + $0x160] sm:$0xff]
  %v63 = vld [vmem:[%s0 + $0x168] sm:$0xff]
  %v64 = vld [vmem:[%s0 + $0x170] sm:$0xff]
  %v65 = vld [vmem:[%s0 + $0x178] sm:$0xff]
  %v66 = vld [vmem:[%s0 + $0x180] sm:$0xff]
  %v67 = vld [vmem:[%s0 + $0x188] sm:$0xff]
  %v68 = vld [vmem:[%s0 + $0x190] sm:$0xff]
  %v69 = vld [vmem:[%s0 + $0x198] sm:$0xff]
  %v70 = vld [vmem:[%s0 + $0x1a0] sm:$0xff]
  %v71 = vld [vmem:[%s0 + $0x1a8] sm:$0xff]
  %v72 = vld [vmem:[%s0 + $0x1b0] sm:$0xff]
  %v73 = vld [vmem:[%s0 + $0x1b8] sm:$0xff]
  %v74 = vld [vmem:[%s0 + $0x1c0] sm:$0xff]
  %v75 = vld [vmem:[%s0 + $0x1c8] sm:$0xff]
  %v76 = vld [vmem:[%s0 + $0x1d0] sm:$0xff]
  %v77 = vld [vmem:[%s0 + $0x1d8] sm:$0xff]
  %v78 = vld [vmem:[%s0 + $0x1e0] sm:$0xff]
  %v79 = vld [vmem:[%s0 + $0x1e8] sm:$0xff]
  %v80 = vld [vmem:[%s0 + $0x1f0] sm:$0xff]
  %v81 = vld [vmem:[%s0 + $0x1f8] sm:$0xff]
  %v82 = vld [vmem:[%s1] sm:$0x1]
  %v84 = vlaneseq
  %v85 = vshrl.u32 %v84, 7
  %v86 = vsub.s32 0, %v85
  %v87 = vrot.slane %v82, %v86
  %v89 = vmul.f32 %v18, %v87
  %v90 = vmul.f32 %v19, %v87
  %v91 = vmul.f32 %v20, %v87
  %v92 = vmul.f32 %v21, %v87
  %v93 = vmul.f32 %v22, %v87
  %v94 = vmul.f32 %v23, %v87
  %v95 = vmul.f32 %v24, %v87
  %v96 = vmul.f32 %v25, %v87
  %v97 = vmul.f32 %v26, %v87
  %v98 = vmul.f32 %v27, %v87
  %v99 = vmul.f32 %v28, %v87
  %v100 = vmul.f32 %v29, %v87
  %v101 = vmul.f32 %v30, %v87
  %v102 = vmul.f32 %v31, %v87
  %v103 = vmul.f32 %v32, %v87
  %v104 = vmul.f32 %v33, %v87
  %v105 = vmul.f32 %v34, %v87
  %v106 = vmul.f32 %v35, %v87
  %v107 = vmul.f32 %v36, %v87
  %v108 = vmul.f32 %v37, %v87
  %v109 = vmul.f32 %v38, %v87
  %v110 = vmul.f32 %v39, %v87
  %v111 = vmul.f32 %v40, %v87
  %v112 = vmul.f32 %v41, %v87
  %v113 = vmul.f32 %v42, %v87
  %v114 = vmul.f32 %v43, %v87
  %v115 = vmul.f32 %v44, %v87
  %v116 = vmul.f32 %v45, %v87
  %v117 = vmul.f32 %v46, %v87
  %v118 = vmul.f32 %v47, %v87
  %v119 = vmul.f32 %v48, %v87
  %v120 = vmul.f32 %v49, %v87
  %v121 = vmul.f32 %v50, %v87
  %v122 = vmul.f32 %v51, %v87
  %v123 = vmul.f32 %v52, %v87
  %v124 = vmul.f32 %v53, %v87
  %v125 = vmul.f32 %v54, %v87
  %v126 = vmul.f32 %v55, %v87
  %v127 = vmul.f32 %v56, %v87
  %v128 = vmul.f32 %v57, %v87
  %v129 = vmul.f32 %v58, %v87
  %v130 = vmul.f32 %v59, %v87
  %v131 = vmul.f32 %v60, %v87
  %v132 = vmul.f32 %v61, %v87
  %v133 = vmul.f32 %v62, %v87
  %v134 = vmul.f32 %v63, %v87
  %v135 = vmul.f32 %v64, %v87
  %v136 = vmul.f32 %v65, %v87
  %v137 = vmul.f32 %v66, %v87
  %v138 = vmul.f32 %v67, %v87
  %v139 = vmul.f32 %v68, %v87
  %v140 = vmul.f32 %v69, %v87
  %v141 = vmul.f32 %v70, %v87
  %v142 = vmul.f32 %v71, %v87
  %v143 = vmul.f32 %v72, %v87
  %v144 = vmul.f32 %v73, %v87
  %v145 = vmul.f32 %v74, %v87
  %v146 = vmul.f32 %v75, %v87
  %v147 = vmul.f32 %v76, %v87
  %v148 = vmul.f32 %v77, %v87
  %v149 = vmul.f32 %v78, %v87
  %v150 = vmul.f32 %v79, %v87
  %v151 = vmul.f32 %v80, %v87
  %v152 = vmul.f32 %v81, %v87
  %v153 = vld [vmem:[%s2] sm:$0x1]
  %v155 = vlaneseq
  %v156 = vshrl.u32 %v155, 7
  %v157 = vsub.s32 0, %v156
  %v158 = vrot.slane %v153, %v157
  %v160 = vadd.f32 %v89, %v158
  %v161 = vadd.f32 %v90, %v158
  %v162 = vadd.f32 %v91, %v158
  %v163 = vadd.f32 %v92, %v158
  %v164 = vadd.f32 %v93, %v158
  %v165 = vadd.f32 %v94, %v158
  %v166 = vadd.f32 %v95, %v158
  %v167 = vadd.f32 %v96, %v158
  %v168 = vadd.f32 %v97, %v158
  %v169 = vadd.f32 %v98, %v158
  %v170 = vadd.f32 %v99, %v158
  %v171 = vadd.f32 %v100, %v158
  %v172 = vadd.f32 %v101, %v158
  %v173 = vadd.f32 %v102, %v158
  %v174 = vadd.f32 %v103, %v158
  %v175 = vadd.f32 %v104, %v158
  %v176 = vadd.f32 %v105, %v158
  %v177 = vadd.f32 %v106, %v158
  %v178 = vadd.f32 %v107, %v158
  %v179 = vadd.f32 %v108, %v158
  %v180 = vadd.f32 %v109, %v158
  %v181 = vadd.f32 %v110, %v158
  %v182 = vadd.f32 %v111, %v158
  %v183 = vadd.f32 %v112, %v158
  %v184 = vadd.f32 %v113, %v158
  %v185 = vadd.f32 %v114, %v158
  %v186 = vadd.f32 %v115, %v158
  %v187 = vadd.f32 %v116, %v158
  %v188 = vadd.f32 %v117, %v158
  %v189 = vadd.f32 %v118, %v158
  %v190 = vadd.f32 %v119, %v158
  %v191 = vadd.f32 %v120, %v158
  %v192 = vadd.f32 %v121, %v158
  %v193 = vadd.f32 %v122, %v158
  %v194 = vadd.f32 %v123, %v158
  %v195 = vadd.f32 %v124, %v158
  %v196 = vadd.f32 %v125, %v158
  %v197 = vadd.f32 %v126, %v158
  %v198 = vadd.f32 %v127, %v158
  %v199 = vadd.f32 %v128, %v158
  %v200 = vadd.f32 %v129, %v158
  %v201 = vadd.f32 %v130, %v158
  %v202 = vadd.f32 %v131, %v158
  %v203 = vadd.f32 %v132, %v158
  %v204 = vadd.f32 %v133, %v158
  %v205 = vadd.f32 %v134, %v158
  %v206 = vadd.f32 %v135, %v158
  %v207 = vadd.f32 %v136, %v158
  %v208 = vadd.f32 %v137, %v158
  %v209 = vadd.f32 %v138, %v158
  %v210 = vadd.f32 %v139, %v158
  %v211 = vadd.f32 %v140, %v158
  %v212 = vadd.f32 %v141, %v158
  %v213 = vadd.f32 %v142, %v158
  %v214 = vadd.f32 %v143, %v158
  %v215 = vadd.f32 %v144, %v158
  %v216 = vadd.f32 %v145, %v158
  %v217 = vadd.f32 %v146, %v158
  %v218 = vadd.f32 %v147, %v158
  %v219 = vadd.f32 %v148, %v158
  %v220 = vadd.f32 %v149, %v158
  %v221 = vadd.f32 %v150, %v158
  %v222 = vadd.f32 %v151, %v158
  %v223 = vadd.f32 %v152, %v158
  %v224 = vmax.f32 %v160, 0.0
  %v225 = vmax.f32 %v161, 0.0
  %v226 = vmax.f32 %v162, 0.0
  %v227 = vmax.f32 %v163, 0.0
  %v228 = vmax.f32 %v164, 0.0
  %v229 = vmax.f32 %v165, 0.0
  %v230 = vmax.f32 %v166, 0.0
  %v231 = vmax.f32 %v167, 0.0
  %v232 = vmax.f32 %v168, 0.0
  %v233 = vmax.f32 %v169, 0.0
  %v234 = vmax.f32 %v170, 0.0
  %v235 = vmax.f32 %v171, 0.0
  %v236 = vmax.f32 %v172, 0.0
  %v237 = vmax.f32 %v173, 0.0
  %v238 = vmax.f32 %v174, 0.0
  %v239 = vmax.f32 %v175, 0.0
  %v240 = vmax.f32 %v176, 0.0
  %v241 = vmax.f32 %v177, 0.0
  %v242 = vmax.f32 %v178, 0.0
  %v243 = vmax.f32 %v179, 0.0
  %v244 = vmax.f32 %v180, 0.0
  %v245 = vmax.f32 %v181, 0.0
  %v246 = vmax.f32 %v182, 0.0
  %v247 = vmax.f32 %v183, 0.0
  %v248 = vmax.f32 %v184, 0.0
  %v249 = vmax.f32 %v185, 0.0
  %v250 = vmax.f32 %v186, 0.0
  %v251 = vmax.f32 %v187, 0.0
  %v252 = vmax.f32 %v188, 0.0
  %v253 = vmax.f32 %v189, 0.0
  %v254 = vmax.f32 %v190, 0.0
  %v255 = vmax.f32 %v191, 0.0
  %v256 = vmax.f32 %v192, 0.0
  %v257 = vmax.f32 %v193, 0.0
  %v258 = vmax.f32 %v194, 0.0
  %v259 = vmax.f32 %v195, 0.0
  %v260 = vmax.f32 %v196, 0.0
  %v261 = vmax.f32 %v197, 0.0
  %v262 = vmax.f32 %v198, 0.0
  %v263 = vmax.f32 %v199, 0.0
  %v264 = vmax.f32 %v200, 0.0
  %v265 = vmax.f32 %v201, 0.0
  %v266 = vmax.f32 %v202, 0.0
  %v267 = vmax.f32 %v203, 0.0
  %v268 = vmax.f32 %v204, 0.0
  %v269 = vmax.f32 %v205, 0.0
  %v270 = vmax.f32 %v206, 0.0
  %v271 = vmax.f32 %v207, 0.0
  %v272 = vmax.f32 %v208, 0.0
  %v273 = vmax.f32 %v209, 0.0
  %v274 = vmax.f32 %v210, 0.0
  %v275 = vmax.f32 %v211, 0.0
  %v276 = vmax.f32 %v212, 0.0
  %v277 = vmax.f32 %v213, 0.0
  %v278 = vmax.f32 %v214, 0.0
  %v279 = vmax.f32 %v215, 0.0
  %v280 = vmax.f32 %v216, 0.0
  %v281 = vmax.f32 %v217, 0.0
  %v282 = vmax.f32 %v218, 0.0
  %v283 = vmax.f32 %v219, 0.0
  %v284 = vmax.f32 %v220, 0.0
  %v285 = vmax.f32 %v221, 0.0
  %v286 = vmax.f32 %v222, 0.0
  %v287 = vmax.f32 %v223, 0.0
  %v288 = vpack.c.bf16 %v225, %v224
  %v289 = vpack.c.bf16 %v227, %v226
  %v290 = vpack.c.bf16 %v229, %v228
  %v291 = vpack.c.bf16 %v231, %v230
  %v292 = vpack.c.bf16 %v233, %v232
  %v293 = vpack.c.bf16 %v235, %v234
  %v294 = vpack.c.bf16 %v237, %v236
  %v295 = vpack.c.bf16 %v239, %v238
  %v296 = vpack.c.bf16 %v241, %v240
  %v297 = vpack.c.bf16 %v243, %v242
  %v298 = vpack.c.bf16 %v245, %v244
  %v299 = vpack.c.bf16 %v247, %v246
  %v300 = vpack.c.bf16 %v249, %v248
  %v301 = vpack.c.bf16 %v251, %v250
  %v302 = vpack.c.bf16 %v253, %v252
  %v303 = vpack.c.bf16 %v255, %v254
  %v304 = vpack.c.bf16 %v257, %v256
  %v305 = vpack.c.bf16 %v259, %v258
  %v306 = vpack.c.bf16 %v261, %v260
  %v307 = vpack.c.bf16 %v263, %v262
  %v308 = vpack.c.bf16 %v265, %v264
  %v309 = vpack.c.bf16 %v267, %v266
  %v310 = vpack.c.bf16 %v269, %v268
  %v311 = vpack.c.bf16 %v271, %v270
  %v312 = vpack.c.bf16 %v273, %v272
  %v313 = vpack.c.bf16 %v275, %v274
  %v314 = vpack.c.bf16 %v277, %v276
  %v315 = vpack.c.bf16 %v279, %v278
  %v316 = vpack.c.bf16 %v281, %v280
  %v317 = vpack.c.bf16 %v283, %v282
  %v318 = vpack.c.bf16 %v285, %v284
  %v319 = vpack.c.bf16 %v287, %v286
  %v320 = vld [vmem:[%s3] sm:$0xf]
  %v321 = vld [vmem:[%s3 + $0x4] sm:$0xf]
  %v324 = vunpack.c.l.b16 %v320
  %v325 = vunpack.c.l.b16 %v321
  %v326 = vpack.c.b16 %v325, %v324
  %vm328 = vcmask 130048
  %v330 = vsel %vm328, %v288, 0
  %v333 = vsel %vm328, %v289, 0
  %v336 = vsel %vm328, %v290, 0
  %v339 = vsel %vm328, %v291, 0
  %v342 = vsel %vm328, %v292, 0
  %v345 = vsel %vm328, %v293, 0
  %v348 = vsel %vm328, %v294, 0
  %v351 = vsel %vm328, %v295, 0
  %v354 = vsel %vm328, %v296, 0
  %v357 = vsel %vm328, %v297, 0
  %v360 = vsel %vm328, %v298, 0
  %v363 = vsel %vm328, %v299, 0
  %v366 = vsel %vm328, %v300, 0
  %v369 = vsel %vm328, %v301, 0
  %v372 = vsel %vm328, %v302, 0
  %v375 = vsel %vm328, %v303, 0
  %v378 = vsel %vm328, %v304, 0
  %v381 = vsel %vm328, %v305, 0
  %v384 = vsel %vm328, %v306, 0
  %v387 = vsel %vm328, %v307, 0
  %v390 = vsel %vm328, %v308, 0
  %v393 = vsel %vm328, %v309, 0
  %v396 = vsel %vm328, %v310, 0
  %v399 = vsel %vm328, %v311, 0
  %v402 = vsel %vm328, %v312, 0
  %v405 = vsel %vm328, %v313, 0
  %v408 = vsel %vm328, %v314, 0
  %v411 = vsel %vm328, %v315, 0
  %v414 = vsel %vm328, %v316, 0
  %v417 = vsel %vm328, %v317, 0
  %v420 = vsel %vm328, %v318, 0
  %v423 = vsel %vm328, %v319, 0
  %425 = vmatprep.subr.bf16.mxu0 0
  %426 = vmatpush1.bf16.msra.mxu0 0
  %427 = vmatprep.subr.bf16.mxu0 0
  %428 = vmatpush1.bf16.msra.mxu0 0
  %429 = vmatprep.subr.bf16.mxu0 0
  %430 = vmatpush1.bf16.msra.mxu0 0
  %431 = vmatprep.subr.bf16.mxu0 0
  %432 = vmatpush1.bf16.msra.mxu0 0
  %433 = vmatprep.subr.bf16.mxu0 0
  %434 = vmatpush1.bf16.msra.mxu0 0
  %435 = vmatprep.subr.bf16.mxu0 0
  %436 = vmatpush1.bf16.msra.mxu0 0
  %437 = vmatprep.subr.bf16.mxu0 0
  %438 = vmatpush1.bf16.msra.mxu0 0
  %439 = vmatprep.subr.bf16.mxu0 0
  %440 = vmatpush1.bf16.msra.mxu0 %v326
  %441 = vmatprep.subr.bf16.mxu0 0
  %442 = vmatpush2.bf16.msra.mxu0 0
  %443 = vmatprep.subr.bf16.mxu0 0
  %444 = vmatpush2.bf16.msra.mxu0 0
  %445 = vmatprep.subr.bf16.mxu0 0
  %446 = vmatpush2.bf16.msra.mxu0 0
  %447 = vmatprep.subr.bf16.mxu0 0
  %448 = vmatpush2.bf16.msra.mxu0 0
  %449 = vmatprep.subr.bf16.mxu0 0
  %450 = vmatpush2.bf16.msra.mxu0 0
  %451 = vmatprep.subr.bf16.mxu0 0
  %452 = vmatpush2.bf16.msra.mxu0 0
  %453 = vmatprep.subr.bf16.mxu0 0
  %454 = vmatpush2.bf16.msra.mxu0 0
  %455 = vmatprep.subr.bf16.mxu0 0
  %456 = vmatpush2.bf16.msra.mxu0 0
  %457 = vmatprep.mubr.bf16.mxu0 0
  %458 = vmatmul.mubr.bf16.gmra.mxu0 %v330
  %v459 = vpop.f32.mrf.mxu0
  %v460 = vadd.f32 0.0, %v459
  %v461 = vpop.f32.mrf.mxu0
  %v462 = vpop.f32.mrf.mxu0
  %v463 = vadd.f32 0.0, %v462
  %v464 = vpop.f32.mrf.mxu0
  %465 = vmatprep.mubr.bf16.mxu0 0
  %466 = vmatmul.mubr.bf16.gmra.mxu0 %v333
  %v467 = vpop.f32.mrf.mxu0
  %v468 = vadd.f32 0.0, %v467
  %v469 = vpop.f32.mrf.mxu0
  %v470 = vpop.f32.mrf.mxu0
  %v471 = vadd.f32 0.0, %v470
  %v472 = vpop.f32.mrf.mxu0
  %473 = vmatprep.mubr.bf16.mxu0 0
  %474 = vmatmul.mubr.bf16.gmra.mxu0 %v336
  %v475 = vpop.f32.mrf.mxu0
  %v476 = vadd.f32 0.0, %v475
  %v477 = vpop.f32.mrf.mxu0
  %v478 = vpop.f32.mrf.mxu0
  %v479 = vadd.f32 0.0, %v478
  %v480 = vpop.f32.mrf.mxu0
  %481 = vmatprep.mubr.bf16.mxu0 0
  %482 = vmatmul.mubr.bf16.gmra.mxu0 %v339
  %v483 = vpop.f32.mrf.mxu0
  %v484 = vadd.f32 0.0, %v483
  %v485 = vpop.f32.mrf.mxu0
  %v486 = vpop.f32.mrf.mxu0
  %v487 = vadd.f32 0.0, %v486
  %v488 = vpop.f32.mrf.mxu0
  %489 = vmatprep.mubr.bf16.mxu0 0
  %490 = vmatmul.mubr.bf16.gmra.mxu0 %v342
  %v491 = vpop.f32.mrf.mxu0
  %v492 = vadd.f32 0.0, %v491
  %v493 = vpop.f32.mrf.mxu0
  %v494 = vpop.f32.mrf.mxu0
  %v495 = vadd.f32 0.0, %v494
  %v496 = vpop.f32.mrf.mxu0
  %497 = vmatprep.mubr.bf16.mxu0 0
  %498 = vmatmul.mubr.bf16.gmra.mxu0 %v345
  %v499 = vpop.f32.mrf.mxu0
  %v500 = vadd.f32 0.0, %v499
  %v501 = vpop.f32.mrf.mxu0
  %v502 = vpop.f32.mrf.mxu0
  %v503 = vadd.f32 0.0, %v502
  %v504 = vpop.f32.mrf.mxu0
  %505 = vmatprep.mubr.bf16.mxu0 0
  %506 = vmatmul.mubr.bf16.gmra.mxu0 %v348
  %v507 = vpop.f32.mrf.mxu0
  %v508 = vadd.f32 0.0, %v507
  %v509 = vpop.f32.mrf.mxu0
  %v510 = vpop.f32.mrf.mxu0
  %v511 = vadd.f32 0.0, %v510
  %v512 = vpop.f32.mrf.mxu0
  %513 = vmatprep.mubr.bf16.mxu0 0
  %514 = vmatmul.mubr.bf16.gmra.mxu0 %v351
  %v515 = vpop.f32.mrf.mxu0
  %v516 = vadd.f32 0.0, %v515
  %v517 = vpop.f32.mrf.mxu0
  %v518 = vpop.f32.mrf.mxu0
  %v519 = vadd.f32 0.0, %v518
  %v520 = vpop.f32.mrf.mxu0
  %521 = vmatprep.mubr.bf16.mxu0 0
  %522 = vmatmul.mubr.bf16.gmra.mxu0 %v354
  %v523 = vpop.f32.mrf.mxu0
  %v524 = vadd.f32 0.0, %v523
  %v525 = vpop.f32.mrf.mxu0
  %v526 = vpop.f32.mrf.mxu0
  %v527 = vadd.f32 0.0, %v526
  %v528 = vpop.f32.mrf.mxu0
  %529 = vmatprep.mubr.bf16.mxu0 0
  %530 = vmatmul.mubr.bf16.gmra.mxu0 %v357
  %v531 = vpop.f32.mrf.mxu0
  %v532 = vadd.f32 0.0, %v531
  %v533 = vpop.f32.mrf.mxu0
  %v534 = vpop.f32.mrf.mxu0
  %v535 = vadd.f32 0.0, %v534
  %v536 = vpop.f32.mrf.mxu0
  %537 = vmatprep.mubr.bf16.mxu0 0
  %538 = vmatmul.mubr.bf16.gmra.mxu0 %v360
  %v539 = vpop.f32.mrf.mxu0
  %v540 = vadd.f32 0.0, %v539
  %v541 = vpop.f32.mrf.mxu0
  %v542 = vpop.f32.mrf.mxu0
  %v543 = vadd.f32 0.0, %v542
  %v544 = vpop.f32.mrf.mxu0
  %545 = vmatprep.mubr.bf16.mxu0 0
  %546 = vmatmul.mubr.bf16.gmra.mxu0 %v363
  %v547 = vpop.f32.mrf.mxu0
  %v548 = vadd.f32 0.0, %v547
  %v549 = vpop.f32.mrf.mxu0
  %v550 = vpop.f32.mrf.mxu0
  %v551 = vadd.f32 0.0, %v550
  %v552 = vpop.f32.mrf.mxu0
  %553 = vmatprep.mubr.bf16.mxu0 0
  %554 = vmatmul.mubr.bf16.gmra.mxu0 %v366
  %v555 = vpop.f32.mrf.mxu0
  %v556 = vadd.f32 0.0, %v555
  %v557 = vpop.f32.mrf.mxu0
  %v558 = vpop.f32.mrf.mxu0
  %v559 = vadd.f32 0.0, %v558
  %v560 = vpop.f32.mrf.mxu0
  %561 = vmatprep.mubr.bf16.mxu0 0
  %562 = vmatmul.mubr.bf16.gmra.mxu0 %v369
  %v563 = vpop.f32.mrf.mxu0
  %v564 = vadd.f32 0.0, %v563
  %v565 = vpop.f32.mrf.mxu0
  %v566 = vpop.f32.mrf.mxu0
  %v567 = vadd.f32 0.0, %v566
  %v568 = vpop.f32.mrf.mxu0
  %569 = vmatprep.mubr.bf16.mxu0 0
  %570 = vmatmul.mubr.bf16.gmra.mxu0 %v372
  %v571 = vpop.f32.mrf.mxu0
  %v572 = vadd.f32 0.0, %v571
  %v573 = vpop.f32.mrf.mxu0
  %v574 = vpop.f32.mrf.mxu0
  %v575 = vadd.f32 0.0, %v574
  %v576 = vpop.f32.mrf.mxu0
  %577 = vmatprep.mubr.bf16.mxu0 0
  %578 = vmatmul.mubr.bf16.gmra.mxu0 %v375
  %v579 = vpop.f32.mrf.mxu0
  %v580 = vadd.f32 0.0, %v579
  %v581 = vpop.f32.mrf.mxu0
  %v582 = vpop.f32.mrf.mxu0
  %v583 = vadd.f32 0.0, %v582
  %v584 = vpop.f32.mrf.mxu0
  %585 = vmatprep.mubr.bf16.mxu0 0
  %586 = vmatmul.mubr.bf16.gmra.mxu0 %v378
  %v587 = vpop.f32.mrf.mxu0
  %v588 = vadd.f32 0.0, %v587
  %v589 = vpop.f32.mrf.mxu0
  %v590 = vpop.f32.mrf.mxu0
  %v591 = vadd.f32 0.0, %v590
  %v592 = vpop.f32.mrf.mxu0
  %593 = vmatprep.mubr.bf16.mxu0 0
  %594 = vmatmul.mubr.bf16.gmra.mxu0 %v381
  %v595 = vpop.f32.mrf.mxu0
  %v596 = vadd.f32 0.0, %v595
  %v597 = vpop.f32.mrf.mxu0
  %v598 = vpop.f32.mrf.mxu0
  %v599 = vadd.f32 0.0, %v598
  %v600 = vpop.f32.mrf.mxu0
  %601 = vmatprep.mubr.bf16.mxu0 0
  %602 = vmatmul.mubr.bf16.gmra.mxu0 %v384
  %v603 = vpop.f32.mrf.mxu0
  %v604 = vadd.f32 0.0, %v603
  %v605 = vpop.f32.mrf.mxu0
  %v606 = vpop.f32.mrf.mxu0
  %v607 = vadd.f32 0.0, %v606
  %v608 = vpop.f32.mrf.mxu0
  %609 = vmatprep.mubr.bf16.mxu0 0
  %610 = vmatmul.mubr.bf16.gmra.mxu0 %v387
  %v611 = vpop.f32.mrf.mxu0
  %v612 = vadd.f32 0.0, %v611
  %v613 = vpop.f32.mrf.mxu0
  %v614 = vpop.f32.mrf.mxu0
  %v615 = vadd.f32 0.0, %v614
  %v616 = vpop.f32.mrf.mxu0
  %617 = vmatprep.mubr.bf16.mxu0 0
  %618 = vmatmul.mubr.bf16.gmra.mxu0 %v390
  %v619 = vpop.f32.mrf.mxu0
  %v620 = vadd.f32 0.0, %v619
  %v621 = vpop.f32.mrf.mxu0
  %v622 = vpop.f32.mrf.mxu0
  %v623 = vadd.f32 0.0, %v622
  %v624 = vpop.f32.mrf.mxu0
  %625 = vmatprep.mubr.bf16.mxu0 0
  %626 = vmatmul.mubr.bf16.gmra.mxu0 %v393
  %v627 = vpop.f32.mrf.mxu0
  %v628 = vadd.f32 0.0, %v627
  %v629 = vpop.f32.mrf.mxu0
  %v630 = vpop.f32.mrf.mxu0
  %v631 = vadd.f32 0.0, %v630
  %v632 = vpop.f32.mrf.mxu0
  %633 = vmatprep.mubr.bf16.mxu0 0
  %634 = vmatmul.mubr.bf16.gmra.mxu0 %v396
  %v635 = vpop.f32.mrf.mxu0
  %v636 = vadd.f32 0.0, %v635
  %v637 = vpop.f32.mrf.mxu0
  %v638 = vpop.f32.mrf.mxu0
  %v639 = vadd.f32 0.0, %v638
  %v640 = vpop.f32.mrf.mxu0
  %641 = vmatprep.mubr.bf16.mxu0 0
  %642 = vmatmul.mubr.bf16.gmra.mxu0 %v399
  %v643 = vpop.f32.mrf.mxu0
  %v644 = vadd.f32 0.0, %v643
  %v645 = vpop.f32.mrf.mxu0
  %v646 = vpop.f32.mrf.mxu0
  %v647 = vadd.f32 0.0, %v646
  %v648 = vpop.f32.mrf.mxu0
  %649 = vmatprep.mubr.bf16.mxu0 0
  %650 = vmatmul.mubr.bf16.gmra.mxu0 %v402
  %v651 = vpop.f32.mrf.mxu0
  %v652 = vadd.f32 0.0, %v651
  %v653 = vpop.f32.mrf.mxu0
  %v654 = vpop.f32.mrf.mxu0
  %v655 = vadd.f32 0.0, %v654
  %v656 = vpop.f32.mrf.mxu0
  %657 = vmatprep.mubr.bf16.mxu0 0
  %658 = vmatmul.mubr.bf16.gmra.mxu0 %v405
  %v659 = vpop.f32.mrf.mxu0
  %v660 = vadd.f32 0.0, %v659
  %v661 = vpop.f32.mrf.mxu0
  %v662 = vpop.f32.mrf.mxu0
  %v663 = vadd.f32 0.0, %v662
  %v664 = vpop.f32.mrf.mxu0
  %665 = vmatprep.mubr.bf16.mxu0 0
  %666 = vmatmul.mubr.bf16.gmra.mxu0 %v408
  %v667 = vpop.f32.mrf.mxu0
  %v668 = vadd.f32 0.0, %v667
  %v669 = vpop.f32.mrf.mxu0
  %v670 = vpop.f32.mrf.mxu0
  %v671 = vadd.f32 0.0, %v670
  %v672 = vpop.f32.mrf.mxu0
  %673 = vmatprep.mubr.bf16.mxu0 0
  %674 = vmatmul.mubr.bf16.gmra.mxu0 %v411
  %v675 = vpop.f32.mrf.mxu0
  %v676 = vadd.f32 0.0, %v675
  %v677 = vpop.f32.mrf.mxu0
  %v678 = vpop.f32.mrf.mxu0
  %v679 = vadd.f32 0.0, %v678
  %v680 = vpop.f32.mrf.mxu0
  %681 = vmatprep.mubr.bf16.mxu0 0
  %682 = vmatmul.mubr.bf16.gmra.mxu0 %v414
  %v683 = vpop.f32.mrf.mxu0
  %v684 = vadd.f32 0.0, %v683
  %v685 = vpop.f32.mrf.mxu0
  %v686 = vpop.f32.mrf.mxu0
  %v687 = vadd.f32 0.0, %v686
  %v688 = vpop.f32.mrf.mxu0
  %689 = vmatprep.mubr.bf16.mxu0 0
  %690 = vmatmul.mubr.bf16.gmra.mxu0 %v417
  %v691 = vpop.f32.mrf.mxu0
  %v692 = vadd.f32 0.0, %v691
  %v693 = vpop.f32.mrf.mxu0
  %v694 = vpop.f32.mrf.mxu0
  %v695 = vadd.f32 0.0, %v694
  %v696 = vpop.f32.mrf.mxu0
  %697 = vmatprep.mubr.bf16.mxu0 0
  %698 = vmatmul.mubr.bf16.gmra.mxu0 %v420
  %v699 = vpop.f32.mrf.mxu0
  %v700 = vadd.f32 0.0, %v699
  %v701 = vpop.f32.mrf.mxu0
  %v702 = vpop.f32.mrf.mxu0
  %v703 = vadd.f32 0.0, %v702
  %v704 = vpop.f32.mrf.mxu0
  %705 = vmatprep.mubr.bf16.mxu0 0
  %706 = vmatmul.mubr.bf16.gmra.mxu0 %v423
  %v707 = vpop.f32.mrf.mxu0
  %v708 = vadd.f32 0.0, %v707
  %v709 = vpop.f32.mrf.mxu0
  %v710 = vpop.f32.mrf.mxu0
  %v711 = vadd.f32 0.0, %v710
  %v712 = vpop.f32.mrf.mxu0
  %713 = vdwg.mxu0
  %714 = vst [vmem:[%s4] sm:$0xff] %v460
  %715 = vst [vmem:[%s4 + $0x8] sm:$0xff] %v463
  %716 = vst [vmem:[%s4 + $0x10] sm:$0xff] %v468
  %717 = vst [vmem:[%s4 + $0x18] sm:$0xff] %v471
  %718 = vst [vmem:[%s4 + $0x20] sm:$0xff] %v476
  %719 = vst [vmem:[%s4 + $0x28] sm:$0xff] %v479
  %720 = vst [vmem:[%s4 + $0x30] sm:$0xff] %v484
  %721 = vst [vmem:[%s4 + $0x38] sm:$0xff] %v487
  %722 = vst [vmem:[%s4 + $0x40] sm:$0xff] %v492
  %723 = vst [vmem:[%s4 + $0x48] sm:$0xff] %v495
  %724 = vst [vmem:[%s4 + $0x50] sm:$0xff] %v500
  %725 = vst [vmem:[%s4 + $0x58] sm:$0xff] %v503
  %726 = vst [vmem:[%s4 + $0x60] sm:$0xff] %v508
  %727 = vst [vmem:[%s4 + $0x68] sm:$0xff] %v511
  %728 = vst [vmem:[%s4 + $0x70] sm:$0xff] %v516
  %729 = vst [vmem:[%s4 + $0x78] sm:$0xff] %v519
  %730 = vst [vmem:[%s4 + $0x80] sm:$0xff] %v524
  %731 = vst [vmem:[%s4 + $0x88] sm:$0xff] %v527
  %732 = vst [vmem:[%s4 + $0x90] sm:$0xff] %v532
  %733 = vst [vmem:[%s4 + $0x98] sm:$0xff] %v535
  %734 = vst [vmem:[%s4 + $0xa0] sm:$0xff] %v540
  %735 = vst [vmem:[%s4 + $0xa8] sm:$0xff] %v543
  %736 = vst [vmem:[%s4 + $0xb0] sm:$0xff] %v548
  %737 = vst [vmem:[%s4 + $0xb8] sm:$0xff] %v551
  %738 = vst [vmem:[%s4 + $0xc0] sm:$0xff] %v556
  %739 = vst [vmem:[%s4 + $0xc8] sm:$0xff] %v559
  %740 = vst [vmem:[%s4 + $0xd0] sm:$0xff] %v564
  %741 = vst [vmem:[%s4 + $0xd8] sm:$0xff] %v567
  %742 = vst [vmem:[%s4 + $0xe0] sm:$0xff] %v572
  %743 = vst [vmem:[%s4 + $0xe8] sm:$0xff] %v575
  %744 = vst [vmem:[%s4 + $0xf0] sm:$0xff] %v580
  %745 = vst [vmem:[%s4 + $0xf8] sm:$0xff] %v583
  %746 = vst [vmem:[%s4 + $0x100] sm:$0xff] %v588
  %747 = vst [vmem:[%s4 + $0x108] sm:$0xff] %v591
  %748 = vst [vmem:[%s4 + $0x110] sm:$0xff] %v596
  %749 = vst [vmem:[%s4 + $0x118] sm:$0xff] %v599
  %750 = vst [vmem:[%s4 + $0x120] sm:$0xff] %v604
  %751 = vst [vmem:[%s4 + $0x128] sm:$0xff] %v607
  %752 = vst [vmem:[%s4 + $0x130] sm:$0xff] %v612
  %753 = vst [vmem:[%s4 + $0x138] sm:$0xff] %v615
  %754 = vst [vmem:[%s4 + $0x140] sm:$0xff] %v620
  %755 = vst [vmem:[%s4 + $0x148] sm:$0xff] %v623
  %756 = vst [vmem:[%s4 + $0x150] sm:$0xff] %v628
  %757 = vst [vmem:[%s4 + $0x158] sm:$0xff] %v631
  %758 = vst [vmem:[%s4 + $0x160] sm:$0xff] %v636
  %759 = vst [vmem:[%s4 + $0x168] sm:$0xff] %v639
  %760 = vst [vmem:[%s4 + $0x170] sm:$0xff] %v644
  %761 = vst [vmem:[%s4 + $0x178] sm:$0xff] %v647
  %762 = vst [vmem:[%s4 + $0x180] sm:$0xff] %v652
  %763 = vst [vmem:[%s4 + $0x188] sm:$0xff] %v655
  %764 = vst [vmem:[%s4 + $0x190] sm:$0xff] %v660
  %765 = vst [vmem:[%s4 + $0x198] sm:$0xff] %v663
  %766 = vst [vmem:[%s4 + $0x1a0] sm:$0xff] %v668
  %767 = vst [vmem:[%s4 + $0x1a8] sm:$0xff] %v671
  %768 = vst [vmem:[%s4 + $0x1b0] sm:$0xff] %v676
  %769 = vst [vmem:[%s4 + $0x1b8] sm:$0xff] %v679
  %770 = vst [vmem:[%s4 + $0x1c0] sm:$0xff] %v684
  %771 = vst [vmem:[%s4 + $0x1c8] sm:$0xff] %v687
  %772 = vst [vmem:[%s4 + $0x1d0] sm:$0xff] %v692
  %773 = vst [vmem:[%s4 + $0x1d8] sm:$0xff] %v695
  %774 = vst [vmem:[%s4 + $0x1e0] sm:$0xff] %v700
  %775 = vst [vmem:[%s4 + $0x1e8] sm:$0xff] %v703
  %776 = vst [vmem:[%s4 + $0x1f0] sm:$0xff] %v708
  %777 = vst [vmem:[%s4 + $0x1f8] sm:$0xff] %v711
  // Predicated region
  $region18: #{generator_forward.9} parent=0 // pred_check
    _
  $region19: #{generator_forward.9} parent=0 // pred_check_branch
    %779 = sbr.rel (0) target = $region21
  $region20: #{generator_forward.9} parent=0 // pred_region
    _
  $region21: #{generator_forward.9} parent=0 // pred_fallthru
    _
  // Predicated region
  $region22: #{generator_forward.9} parent=0 // pred_check
    _
  $region23: #{generator_forward.9} parent=0 // pred_check_branch
    %781 = sbr.rel (0) target = $region25
  $region24: #{generator_forward.9} parent=0 // pred_region
    _
  $region25: #{generator_forward.9} parent=0 // pred_fallthru
    _

// kernel: generator_forward.10
$region0: #{generator_forward.10}
  #allocation0 [shape = 'u32[]', space=smem, size = 0x4, offset = 0x4, fixed_abs, tag = 'smem constant byte address 0x4 - core index']
  #allocation1 [shape = 'u32[144,128]{1,0:T(1,128)}', space=vmem, size = 0x12000, scoped, tag = 'internal scratch']
  %s0 = inlined_call_operand.vmem [shape: f32[2048,8], index: 0, kind: input, shape index: {}]
  %s1 = inlined_call_operand.vmem [shape: f32[1,8], index: 1, kind: input, shape index: {}]
  %s2 = inlined_call_operand.vmem [shape: f32[1,8], index: 2, kind: input, shape index: {}]
  %s3 = inlined_call_operand.vmem [shape: bf16[8,128], index: 3, kind: input, shape index: {}]
  %s4 = inlined_call_operand.vmem [shape: f32[2048,128], index: 4, kind: output, shape index: {}]
  %s5 = sld [smem:[#allocation0]]
  $region26: #{generator_forward.10} parent=0
    _
  %s7 = ssub.s32 1, %s5
  %s8 = scalar_select 0, %s7, %s5
  // Predicated region
  $region2: #{generator_forward.10} parent=0 // pred_check
    _
  $region3: #{generator_forward.10} parent=0 // pred_check_branch
    %10 = sbr.rel (0) target = $region5
  $region4: #{generator_forward.10} parent=0 // pred_region
    _
  $region5: #{generator_forward.10} parent=0 // pred_fallthru
    _
  // Predicated region
  $region6: #{generator_forward.10} parent=0 // pred_check
    _
  $region7: #{generator_forward.10} parent=0 // pred_check_branch
    %12 = sbr.rel (0) target = $region9
  $region8: #{generator_forward.10} parent=0 // pred_region
    _
  $region9: #{generator_forward.10} parent=0 // pred_fallthru
    _
  // Predicated region
  $region10: #{generator_forward.10} parent=0 // pred_check
    _
  $region11: #{generator_forward.10} parent=0 // pred_check_branch
    %14 = sbr.rel (0) target = $region13
  $region12: #{generator_forward.10} parent=0 // pred_region
    _
  $region13: #{generator_forward.10} parent=0 // pred_fallthru
    _
  // Predicated region
  $region14: #{generator_forward.10} parent=0 // pred_check
    _
  $region15: #{generator_forward.10} parent=0 // pred_check_branch
    %16 = sbr.rel (0) target = $region17
  $region16: #{generator_forward.10} parent=0 // pred_region
    _
  $region17: #{generator_forward.10} parent=0 // pred_fallthru
    _
  %v18 = vld [vmem:[%s0] sm:$0xff]
  %v19 = vld [vmem:[%s0 + $0x8] sm:$0xff]
  %v20 = vld [vmem:[%s0 + $0x10] sm:$0xff]
  %v21 = vld [vmem:[%s0 + $0x18] sm:$0xff]
  %v22 = vld [vmem:[%s0 + $0x20] sm:$0xff]
  %v23 = vld [vmem:[%s0 + $0x28] sm:$0xff]
  %v24 = vld [vmem:[%s0 + $0x30] sm:$0xff]
  %v25 = vld [vmem:[%s0 + $0x38] sm:$0xff]
  %v26 = vld [vmem:[%s0 + $0x40] sm:$0xff]
  %v27 = vld [vmem:[%s0 + $0x48] sm:$0xff]
  %v28 = vld [vmem:[%s0 + $0x50] sm:$0xff]
  %v29 = vld [vmem:[%s0 + $0x58] sm:$0xff]
  %v30 = vld [vmem:[%s0 + $0x60] sm:$0xff]
  %v31 = vld [vmem:[%s0 + $0x68] sm:$0xff]
  %v32 = vld [vmem:[%s0 + $0x70] sm:$0xff]
  %v33 = vld [vmem:[%s0 + $0x78] sm:$0xff]
  %v34 = vld [vmem:[%s0 + $0x80] sm:$0xff]
  %v35 = vld [vmem:[%s0 + $0x88] sm:$0xff]
  %v36 = vld [vmem:[%s0 + $0x90] sm:$0xff]
  %v37 = vld [vmem:[%s0 + $0x98] sm:$0xff]
  %v38 = vld [vmem:[%s0 + $0xa0] sm:$0xff]
  %v39 = vld [vmem:[%s0 + $0xa8] sm:$0xff]
  %v40 = vld [vmem:[%s0 + $0xb0] sm:$0xff]
  %v41 = vld [vmem:[%s0 + $0xb8] sm:$0xff]
  %v42 = vld [vmem:[%s0 + $0xc0] sm:$0xff]
  %v43 = vld [vmem:[%s0 + $0xc8] sm:$0xff]
  %v44 = vld [vmem:[%s0 + $0xd0] sm:$0xff]
  %v45 = vld [vmem:[%s0 + $0xd8] sm:$0xff]
  %v46 = vld [vmem:[%s0 + $0xe0] sm:$0xff]
  %v47 = vld [vmem:[%s0 + $0xe8] sm:$0xff]
  %v48 = vld [vmem:[%s0 + $0xf0] sm:$0xff]
  %v49 = vld [vmem:[%s0 + $0xf8] sm:$0xff]
  %v50 = vld [vmem:[%s0 + $0x100] sm:$0xff]
  %v51 = vld [vmem:[%s0 + $0x108] sm:$0xff]
  %v52 = vld [vmem:[%s0 + $0x110] sm:$0xff]
  %v53 = vld [vmem:[%s0 + $0x118] sm:$0xff]
  %v54 = vld [vmem:[%s0 + $0x120] sm:$0xff]
  %v55 = vld [vmem:[%s0 + $0x128] sm:$0xff]
  %v56 = vld [vmem:[%s0 + $0x130] sm:$0xff]
  %v57 = vld [vmem:[%s0 + $0x138] sm:$0xff]
  %v58 = vld [vmem:[%s0 + $0x140] sm:$0xff]
  %v59 = vld [vmem:[%s0 + $0x148] sm:$0xff]
  %v60 = vld [vmem:[%s0 + $0x150] sm:$0xff]
  %v61 = vld [vmem:[%s0 + $0x158] sm:$0xff]
  %v62 = vld [vmem:[%s0 + $0x160] sm:$0xff]
  %v63 = vld [vmem:[%s0 + $0x168] sm:$0xff]
  %v64 = vld [vmem:[%s0 + $0x170] sm:$0xff]
  %v65 = vld [vmem:[%s0 + $0x178] sm:$0xff]
  %v66 = vld [vmem:[%s0 + $0x180] sm:$0xff]
  %v67 = vld [vmem:[%s0 + $0x188] sm:$0xff]
  %v68 = vld [vmem:[%s0 + $0x190] sm:$0xff]
  %v69 = vld [vmem:[%s0 + $0x198] sm:$0xff]
  %v70 = vld [vmem:[%s0 + $0x1a0] sm:$0xff]
  %v71 = vld [vmem:[%s0 + $0x1a8] sm:$0xff]
  %v72 = vld [vmem:[%s0 + $0x1b0] sm:$0xff]
  %v73 = vld [vmem:[%s0 + $0x1b8] sm:$0xff]
  %v74 = vld [vmem:[%s0 + $0x1c0] sm:$0xff]
  %v75 = vld [vmem:[%s0 + $0x1c8] sm:$0xff]
  %v76 = vld [vmem:[%s0 + $0x1d0] sm:$0xff]
  %v77 = vld [vmem:[%s0 + $0x1d8] sm:$0xff]
  %v78 = vld [vmem:[%s0 + $0x1e0] sm:$0xff]
  %v79 = vld [vmem:[%s0 + $0x1e8] sm:$0xff]
  %v80 = vld [vmem:[%s0 + $0x1f0] sm:$0xff]
  %v81 = vld [vmem:[%s0 + $0x1f8] sm:$0xff]
  %v82 = vld [vmem:[%s0 + $0x200] sm:$0xff]
  %v83 = vld [vmem:[%s0 + $0x208] sm:$0xff]
  %v84 = vld [vmem:[%s0 + $0x210] sm:$0xff]
  %v85 = vld [vmem:[%s0 + $0x218] sm:$0xff]
  %v86 = vld [vmem:[%s0 + $0x220] sm:$0xff]
  %v87 = vld [vmem:[%s0 + $0x228] sm:$0xff]
  %v88 = vld [vmem:[%s0 + $0x230] sm:$0xff]
  %v89 = vld [vmem:[%s0 + $0x238] sm:$0xff]
  %v90 = vld [vmem:[%s0 + $0x240] sm:$0xff]
  %v91 = vld [vmem:[%s0 + $0x248] sm:$0xff]
  %v92 = vld [vmem:[%s0 + $0x250] sm:$0xff]
  %v93 = vld [vmem:[%s0 + $0x258] sm:$0xff]
  %v94 = vld [vmem:[%s0 + $0x260] sm:$0xff]
  %v95 = vld [vmem:[%s0 + $0x268] sm:$0xff]
  %v96 = vld [vmem:[%s0 + $0x270] sm:$0xff]
  %v97 = vld [vmem:[%s0 + $0x278] sm:$0xff]
  %v98 = vld [vmem:[%s0 + $0x280] sm:$0xff]
  %v99 = vld [vmem:[%s0 + $0x288] sm:$0xff]
  %v100 = vld [vmem:[%s0 + $0x290] sm:$0xff]
  %v101 = vld [vmem:[%s0 + $0x298] sm:$0xff]
  %v102 = vld [vmem:[%s0 + $0x2a0] sm:$0xff]
  %v103 = vld [vmem:[%s0 + $0x2a8] sm:$0xff]
  %v104 = vld [vmem:[%s0 + $0x2b0] sm:$0xff]
  %v105 = vld [vmem:[%s0 + $0x2b8] sm:$0xff]
  %v106 = vld [vmem:[%s0 + $0x2c0] sm:$0xff]
  %v107 = vld [vmem:[%s0 + $0x2c8] sm:$0xff]
  %v108 = vld [vmem:[%s0 + $0x2d0] sm:$0xff]
  %v109 = vld [vmem:[%s0 + $0x2d8] sm:$0xff]
  %v110 = vld [vmem:[%s0 + $0x2e0] sm:$0xff]
  %v111 = vld [vmem:[%s0 + $0x2e8] sm:$0xff]
  %v112 = vld [vmem:[%s0 + $0x2f0] sm:$0xff]
  %v113 = vld [vmem:[%s0 + $0x2f8] sm:$0xff]
  %v114 = vld [vmem:[%s0 + $0x300] sm:$0xff]
  %v115 = vld [vmem:[%s0 + $0x308] sm:$0xff]
  %v116 = vld [vmem:[%s0 + $0x310] sm:$0xff]
  %v117 = vld [vmem:[%s0 + $0x318] sm:$0xff]
  %v118 = vld [vmem:[%s0 + $0x320] sm:$0xff]
  %v119 = vld [vmem:[%s0 + $0x328] sm:$0xff]
  %v120 = vld [vmem:[%s0 + $0x330] sm:$0xff]
  %v121 = vld [vmem:[%s0 + $0x338] sm:$0xff]
  %v122 = vld [vmem:[%s0 + $0x340] sm:$0xff]
  %v123 = vld [vmem:[%s0 + $0x348] sm:$0xff]
  %v124 = vld [vmem:[%s0 + $0x350] sm:$0xff]
  %v125 = vld [vmem:[%s0 + $0x358] sm:$0xff]
  %v126 = vld [vmem:[%s0 + $0x360] sm:$0xff]
  %v127 = vld [vmem:[%s0 + $0x368] sm:$0xff]
  %v128 = vld [vmem:[%s0 + $0x370] sm:$0xff]
  %v129 = vld [vmem:[%s0 + $0x378] sm:$0xff]
  %v130 = vld [vmem:[%s0 + $0x380] sm:$0xff]
  %v131 = vld [vmem:[%s0 + $0x388] sm:$0xff]
  %v132 = vld [vmem:[%s0 + $0x390] sm:$0xff]
  %v133 = vld [vmem:[%s0 + $0x398] sm:$0xff]
  %v134 = vld [vmem:[%s0 + $0x3a0] sm:$0xff]
  %v135 = vld [vmem:[%s0 + $0x3a8] sm:$0xff]
  %v136 = vld [vmem:[%s0 + $0x3b0] sm:$0xff]
  %v137 = vld [vmem:[%s0 + $0x3b8] sm:$0xff]
  %v138 = vld [vmem:[%s0 + $0x3c0] sm:$0xff]
  %v139 = vld [vmem:[%s0 + $0x3c8] sm:$0xff]
  %v140 = vld [vmem:[%s0 + $0x3d0] sm:$0xff]
  %v141 = vld [vmem:[%s0 + $0x3d8] sm:$0xff]
  %v142 = vld [vmem:[%s0 + $0x3e0] sm:$0xff]
  %v143 = vld [vmem:[%s0 + $0x3e8] sm:$0xff]
  %v144 = vld [vmem:[%s0 + $0x3f0] sm:$0xff]
  %v145 = vld [vmem:[%s0 + $0x3f8] sm:$0xff]
  %v146 = vld [vmem:[%s0 + $0x400] sm:$0xff]
  %v147 = vld [vmem:[%s0 + $0x408] sm:$0xff]
  %v148 = vld [vmem:[%s0 + $0x410] sm:$0xff]
  %v149 = vld [vmem:[%s0 + $0x418] sm:$0xff]
  %v150 = vld [vmem:[%s0 + $0x420] sm:$0xff]
  %v151 = vld [vmem:[%s0 + $0x428] sm:$0xff]
  %v152 = vld [vmem:[%s0 + $0x430] sm:$0xff]
  %v153 = vld [vmem:[%s0 + $0x438] sm:$0xff]
  %v154 = vld [vmem:[%s0 + $0x440] sm:$0xff]
  %v155 = vld [vmem:[%s0 + $0x448] sm:$0xff]
  %v156 = vld [vmem:[%s0 + $0x450] sm:$0xff]
  %v157 = vld [vmem:[%s0 + $0x458] sm:$0xff]
  %v158 = vld [vmem:[%s0 + $0x460] sm:$0xff]
  %v159 = vld [vmem:[%s0 + $0x468] sm:$0xff]
  %v160 = vld [vmem:[%s0 + $0x470] sm:$0xff]
  %v161 = vld [vmem:[%s0 + $0x478] sm:$0xff]
  %v162 = vld [vmem:[%s0 + $0x480] sm:$0xff]
  %v163 = vld [vmem:[%s0 + $0x488] sm:$0xff]
  %v164 = vld [vmem:[%s0 + $0x490] sm:$0xff]
  %v165 = vld [vmem:[%s0 + $0x498] sm:$0xff]
  %v166 = vld [vmem:[%s0 + $0x4a0] sm:$0xff]
  %v167 = vld [vmem:[%s0 + $0x4a8] sm:$0xff]
  %v168 = vld [vmem:[%s0 + $0x4b0] sm:$0xff]
  %v169 = vld [vmem:[%s0 + $0x4b8] sm:$0xff]
  %v170 = vld [vmem:[%s0 + $0x4c0] sm:$0xff]
  %v171 = vld [vmem:[%s0 + $0x4c8] sm:$0xff]
  %v172 = vld [vmem:[%s0 + $0x4d0] sm:$0xff]
  %v173 = vld [vmem:[%s0 + $0x4d8] sm:$0xff]
  %v174 = vld [vmem:[%s0 + $0x4e0] sm:$0xff]
  %v175 = vld [vmem:[%s0 + $0x4e8] sm:$0xff]
  %v176 = vld [vmem:[%s0 + $0x4f0] sm:$0xff]
  %v177 = vld [vmem:[%s0 + $0x4f8] sm:$0xff]
  %v178 = vld [vmem:[%s0 + $0x500] sm:$0xff]
  %v179 = vld [vmem:[%s0 + $0x508] sm:$0xff]
  %v180 = vld [vmem:[%s0 + $0x510] sm:$0xff]
  %v181 = vld [vmem:[%s0 + $0x518] sm:$0xff]
  %v182 = vld [vmem:[%s0 + $0x520] sm:$0xff]
  %v183 = vld [vmem:[%s0 + $0x528] sm:$0xff]
  %v184 = vld [vmem:[%s0 + $0x530] sm:$0xff]
  %v185 = vld [vmem:[%s0 + $0x538] sm:$0xff]
  %v186 = vld [vmem:[%s0 + $0x540] sm:$0xff]
  %v187 = vld [vmem:[%s0 + $0x548] sm:$0xff]
  %v188 = vld [vmem:[%s0 + $0x550] sm:$0xff]
  %v189 = vld [vmem:[%s0 + $0x558] sm:$0xff]
  %v190 = vld [vmem:[%s0 + $0x560] sm:$0xff]
  %v191 = vld [vmem:[%s0 + $0x568] sm:$0xff]
  %v192 = vld [vmem:[%s0 + $0x570] sm:$0xff]
  %v193 = vld [vmem:[%s0 + $0x578] sm:$0xff]
  %v194 = vld [vmem:[%s0 + $0x580] sm:$0xff]
  %v195 = vld [vmem:[%s0 + $0x588] sm:$0xff]
  %v196 = vld [vmem:[%s0 + $0x590] sm:$0xff]
  %v197 = vld [vmem:[%s0 + $0x598] sm:$0xff]
  %v198 = vld [vmem:[%s0 + $0x5a0] sm:$0xff]
  %v199 = vld [vmem:[%s0 + $0x5a8] sm:$0xff]
  %v200 = vld [vmem:[%s0 + $0x5b0] sm:$0xff]
  %v201 = vld [vmem:[%s0 + $0x5b8] sm:$0xff]
  %v202 = vld [vmem:[%s0 + $0x5c0] sm:$0xff]
  %v203 = vld [vmem:[%s0 + $0x5c8] sm:$0xff]
  %v204 = vld [vmem:[%s0 + $0x5d0] sm:$0xff]
  %v205 = vld [vmem:[%s0 + $0x5d8] sm:$0xff]
  %v206 = vld [vmem:[%s0 + $0x5e0] sm:$0xff]
  %v207 = vld [vmem:[%s0 + $0x5e8] sm:$0xff]
  %v208 = vld [vmem:[%s0 + $0x5f0] sm:$0xff]
  %v209 = vld [vmem:[%s0 + $0x5f8] sm:$0xff]
  %v210 = vld [vmem:[%s0 + $0x600] sm:$0xff]
  %v211 = vld [vmem:[%s0 + $0x608] sm:$0xff]
  %v212 = vld [vmem:[%s0 + $0x610] sm:$0xff]
  %v213 = vld [vmem:[%s0 + $0x618] sm:$0xff]
  %v214 = vld [vmem:[%s0 + $0x620] sm:$0xff]
  %v215 = vld [vmem:[%s0 + $0x628] sm:$0xff]
  %v216 = vld [vmem:[%s0 + $0x630] sm:$0xff]
  %v217 = vld [vmem:[%s0 + $0x638] sm:$0xff]
  %v218 = vld [vmem:[%s0 + $0x640] sm:$0xff]
  %v219 = vld [vmem:[%s0 + $0x648] sm:$0xff]
  %v220 = vld [vmem:[%s0 + $0x650] sm:$0xff]
  %v221 = vld [vmem:[%s0 + $0x658] sm:$0xff]
  %v222 = vld [vmem:[%s0 + $0x660] sm:$0xff]
  %v223 = vld [vmem:[%s0 + $0x668] sm:$0xff]
  %v224 = vld [vmem:[%s0 + $0x670] sm:$0xff]
  %v225 = vld [vmem:[%s0 + $0x678] sm:$0xff]
  %v226 = vld [vmem:[%s0 + $0x680] sm:$0xff]
  %v227 = vld [vmem:[%s0 + $0x688] sm:$0xff]
  %v228 = vld [vmem:[%s0 + $0x690] sm:$0xff]
  %v229 = vld [vmem:[%s0 + $0x698] sm:$0xff]
  %v230 = vld [vmem:[%s0 + $0x6a0] sm:$0xff]
  %v231 = vld [vmem:[%s0 + $0x6a8] sm:$0xff]
  %v232 = vld [vmem:[%s0 + $0x6b0] sm:$0xff]
  %v233 = vld [vmem:[%s0 + $0x6b8] sm:$0xff]
  %v234 = vld [vmem:[%s0 + $0x6c0] sm:$0xff]
  %v235 = vld [vmem:[%s0 + $0x6c8] sm:$0xff]
  %v236 = vld [vmem:[%s0 + $0x6d0] sm:$0xff]
  %v237 = vld [vmem:[%s0 + $0x6d8] sm:$0xff]
  %v238 = vld [vmem:[%s0 + $0x6e0] sm:$0xff]
  %v239 = vld [vmem:[%s0 + $0x6e8] sm:$0xff]
  %v240 = vld [vmem:[%s0 + $0x6f0] sm:$0xff]
  %v241 = vld [vmem:[%s0 + $0x6f8] sm:$0xff]
  %v242 = vld [vmem:[%s0 + $0x700] sm:$0xff]
  %v243 = vld [vmem:[%s0 + $0x708] sm:$0xff]
  %v244 = vld [vmem:[%s0 + $0x710] sm:$0xff]
  %v245 = vld [vmem:[%s0 + $0x718] sm:$0xff]
  %v246 = vld [vmem:[%s0 + $0x720] sm:$0xff]
  %v247 = vld [vmem:[%s0 + $0x728] sm:$0xff]
  %v248 = vld [vmem:[%s0 + $0x730] sm:$0xff]
  %v249 = vld [vmem:[%s0 + $0x738] sm:$0xff]
  %v250 = vld [vmem:[%s0 + $0x740] sm:$0xff]
  %v251 = vld [vmem:[%s0 + $0x748] sm:$0xff]
  %v252 = vld [vmem:[%s0 + $0x750] sm:$0xff]
  %v253 = vld [vmem:[%s0 + $0x758] sm:$0xff]
  %v254 = vld [vmem:[%s0 + $0x760] sm:$0xff]
  %v255 = vld [vmem:[%s0 + $0x768] sm:$0xff]
  %v256 = vld [vmem:[%s0 + $0x770] sm:$0xff]
  %v257 = vld [vmem:[%s0 + $0x778] sm:$0xff]
  %v258 = vld [vmem:[%s0 + $0x780] sm:$0xff]
  %v259 = vld [vmem:[%s0 + $0x788] sm:$0xff]
  %v260 = vld [vmem:[%s0 + $0x790] sm:$0xff]
  %v261 = vld [vmem:[%s0 + $0x798] sm:$0xff]
  %v262 = vld [vmem:[%s0 + $0x7a0] sm:$0xff]
  %v263 = vld [vmem:[%s0 + $0x7a8] sm:$0xff]
  %v264 = vld [vmem:[%s0 + $0x7b0] sm:$0xff]
  %v265 = vld [vmem:[%s0 + $0x7b8] sm:$0xff]
  %v266 = vld [vmem:[%s0 + $0x7c0] sm:$0xff]
  %v267 = vld [vmem:[%s0 + $0x7c8] sm:$0xff]
  %v268 = vld [vmem:[%s0 + $0x7d0] sm:$0xff]
  %v269 = vld [vmem:[%s0 + $0x7d8] sm:$0xff]
  %v270 = vld [vmem:[%s0 + $0x7e0] sm:$0xff]
  %v271 = vld [vmem:[%s0 + $0x7e8] sm:$0xff]
  %v272 = vld [vmem:[%s0 + $0x7f0] sm:$0xff]
  %v273 = vld [vmem:[%s0 + $0x7f8] sm:$0xff]
  %v274 = vld [vmem:[%s1] sm:$0x1]
  %v276 = vlaneseq
  %v277 = vshrl.u32 %v276, 7
  %v278 = vsub.s32 0, %v277
  %v279 = vrot.slane %v274, %v278
  %v281 = vmul.f32 %v18, %v279
  %v282 = vmul.f32 %v19, %v279
  %v283 = vmul.f32 %v20, %v279
  %v284 = vmul.f32 %v21, %v279
  %v285 = vmul.f32 %v22, %v279
  %v286 = vmul.f32 %v23, %v279
  %v287 = vmul.f32 %v24, %v279
  %v288 = vmul.f32 %v25, %v279
  %v289 = vmul.f32 %v26, %v279
  %v290 = vmul.f32 %v27, %v279
  %v291 = vmul.f32 %v28, %v279
  %v292 = vmul.f32 %v29, %v279
  %v293 = vmul.f32 %v30, %v279
  %v294 = vmul.f32 %v31, %v279
  %v295 = vmul.f32 %v32, %v279
  %v296 = vmul.f32 %v33, %v279
  %v297 = vmul.f32 %v34, %v279
  %v298 = vmul.f32 %v35, %v279
  %v299 = vmul.f32 %v36, %v279
  %v300 = vmul.f32 %v37, %v279
  %v301 = vmul.f32 %v38, %v279
  %v302 = vmul.f32 %v39, %v279
  %v303 = vmul.f32 %v40, %v279
  %v304 = vmul.f32 %v41, %v279
  %v305 = vmul.f32 %v42, %v279
  %v306 = vmul.f32 %v43, %v279
  %v307 = vmul.f32 %v44, %v279
  %v308 = vmul.f32 %v45, %v279
  %v309 = vmul.f32 %v46, %v279
  %v310 = vmul.f32 %v47, %v279
  %v311 = vmul.f32 %v48, %v279
  %v312 = vmul.f32 %v49, %v279
  %v313 = vmul.f32 %v50, %v279
  %v314 = vmul.f32 %v51, %v279
  %v315 = vmul.f32 %v52, %v279
  %v316 = vmul.f32 %v53, %v279
  %v317 = vmul.f32 %v54, %v279
  %v318 = vmul.f32 %v55, %v279
  %v319 = vmul.f32 %v56, %v279
  %v320 = vmul.f32 %v57, %v279
  %v321 = vmul.f32 %v58, %v279
  %v322 = vmul.f32 %v59, %v279
  %v323 = vmul.f32 %v60, %v279
  %v324 = vmul.f32 %v61, %v279
  %v325 = vmul.f32 %v62, %v279
  %v326 = vmul.f32 %v63, %v279
  %v327 = vmul.f32 %v64, %v279
  %v328 = vmul.f32 %v65, %v279
  %v329 = vmul.f32 %v66, %v279
  %v330 = vmul.f32 %v67, %v279
  %v331 = vmul.f32 %v68, %v279
  %v332 = vmul.f32 %v69, %v279
  %v333 = vmul.f32 %v70, %v279
  %v334 = vmul.f32 %v71, %v279
  %v335 = vmul.f32 %v72, %v279
  %v336 = vmul.f32 %v73, %v279
  %v337 = vmul.f32 %v74, %v279
  %v338 = vmul.f32 %v75, %v279
  %v339 = vmul.f32 %v76, %v279
  %v340 = vmul.f32 %v77, %v279
  %v341 = vmul.f32 %v78, %v279
  %v342 = vmul.f32 %v79, %v279
  %v343 = vmul.f32 %v80, %v279
  %v344 = vmul.f32 %v81, %v279
  %v345 = vmul.f32 %v82, %v279
  %v346 = vmul.f32 %v83, %v279
  %v347 = vmul.f32 %v84, %v279
  %v348 = vmul.f32 %v85, %v279
  %v349 = vmul.f32 %v86, %v279
  %v350 = vmul.f32 %v87, %v279
  %v351 = vmul.f32 %v88, %v279
  %v352 = vmul.f32 %v89, %v279
  %v353 = vmul.f32 %v90, %v279
  %v354 = vmul.f32 %v91, %v279
  %v355 = vmul.f32 %v92, %v279
  %v356 = vmul.f32 %v93, %v279
  %v357 = vmul.f32 %v94, %v279
  %v358 = vmul.f32 %v95, %v279
  %v359 = vmul.f32 %v96, %v279
  %v360 = vmul.f32 %v97, %v279
  %v361 = vmul.f32 %v98, %v279
  %v362 = vmul.f32 %v99, %v279
  %v363 = vmul.f32 %v100, %v279
  %v364 = vmul.f32 %v101, %v279
  %v365 = vmul.f32 %v102, %v279
  %v366 = vmul.f32 %v103, %v279
  %v367 = vmul.f32 %v104, %v279
  %v368 = vmul.f32 %v105, %v279
  %v369 = vmul.f32 %v106, %v279
  %v370 = vmul.f32 %v107, %v279
  %v371 = vmul.f32 %v108, %v279
  %v372 = vmul.f32 %v109, %v279
  %v373 = vmul.f32 %v110, %v279
  %v374 = vmul.f32 %v111, %v279
  %v375 = vmul.f32 %v112, %v279
  %v376 = vmul.f32 %v113, %v279
  %v377 = vmul.f32 %v114, %v279
  %v378 = vmul.f32 %v115, %v279
  %v379 = vmul.f32 %v116, %v279
  %v380 = vmul.f32 %v117, %v279
  %v381 = vmul.f32 %v118, %v279
  %v382 = vmul.f32 %v119, %v279
  %v383 = vmul.f32 %v120, %v279
  %v384 = vmul.f32 %v121, %v279
  %v385 = vmul.f32 %v122, %v279
  %v386 = vmul.f32 %v123, %v279
  %v387 = vmul.f32 %v124, %v279
  %v388 = vmul.f32 %v125, %v279
  %v389 = vmul.f32 %v126, %v279
  %v390 = vmul.f32 %v127, %v279
  %v391 = vmul.f32 %v128, %v279
  %v392 = vmul.f32 %v129, %v279
  %v393 = vmul.f32 %v130, %v279
  %v394 = vmul.f32 %v131, %v279
  %v395 = vmul.f32 %v132, %v279
  %v396 = vmul.f32 %v133, %v279
  %v397 = vmul.f32 %v134, %v279
  %v398 = vmul.f32 %v135, %v279
  %v399 = vmul.f32 %v136, %v279
  %v400 = vmul.f32 %v137, %v279
  %v401 = vmul.f32 %v138, %v279
  %v402 = vmul.f32 %v139, %v279
  %v403 = vmul.f32 %v140, %v279
  %v404 = vmul.f32 %v141, %v279
  %v405 = vmul.f32 %v142, %v279
  %v406 = vmul.f32 %v143, %v279
  %v407 = vmul.f32 %v144, %v279
  %v408 = vmul.f32 %v145, %v279
  %v409 = vmul.f32 %v146, %v279
  %v410 = vmul.f32 %v147, %v279
  %v411 = vmul.f32 %v148, %v279
  %v412 = vmul.f32 %v149, %v279
  %v413 = vmul.f32 %v150, %v279
  %v414 = vmul.f32 %v151, %v279
  %v415 = vmul.f32 %v152, %v279
  %v416 = vmul.f32 %v153, %v279
  %v417 = vmul.f32 %v154, %v279
  %v418 = vmul.f32 %v155, %v279
  %v419 = vmul.f32 %v156, %v279
  %v420 = vmul.f32 %v157, %v279
  %v421 = vmul.f32 %v158, %v279
  %v422 = vmul.f32 %v159, %v279
  %v423 = vmul.f32 %v160, %v279
  %v424 = vmul.f32 %v161, %v279
  %v425 = vmul.f32 %v162, %v279
  %v426 = vmul.f32 %v163, %v279
  %v427 = vmul.f32 %v164, %v279
  %v428 = vmul.f32 %v165, %v279
  %v429 = vmul.f32 %v166, %v279
  %v430 = vmul.f32 %v167, %v279
  %v431 = vmul.f32 %v168, %v279
  %v432 = vmul.f32 %v169, %v279
  %v433 = vmul.f32 %v170, %v279
  %v434 = vmul.f32 %v171, %v279
  %v435 = vmul.f32 %v172, %v279
  %v436 = vmul.f32 %v173, %v279
  %v437 = vmul.f32 %v174, %v279
  %v438 = vmul.f32 %v175, %v279
  %v439 = vmul.f32 %v176, %v279
  %v440 = vmul.f32 %v177, %v279
  %v441 = vmul.f32 %v178, %v279
  %v442 = vmul.f32 %v179, %v279
  %v443 = vmul.f32 %v180, %v279
  %v444 = vmul.f32 %v181, %v279
  %v445 = vmul.f32 %v182, %v279
  %v446 = vmul.f32 %v183, %v279
  %v447 = vmul.f32 %v184, %v279
  %v448 = vmul.f32 %v185, %v279
  %v449 = vmul.f32 %v186, %v279
  %v450 = vmul.f32 %v187, %v279
  %v451 = vmul.f32 %v188, %v279
  %v452 = vmul.f32 %v189, %v279
  %v453 = vmul.f32 %v190, %v279
  %v454 = vmul.f32 %v191, %v279
  %v455 = vmul.f32 %v192, %v279
  %v456 = vmul.f32 %v193, %v279
  %v457 = vmul.f32 %v194, %v279
  %v458 = vmul.f32 %v195, %v279
  %v459 = vmul.f32 %v196, %v279
  %v460 = vmul.f32 %v197, %v279
  %v461 = vmul.f32 %v198, %v279
  %v462 = vmul.f32 %v199, %v279
  %v463 = vmul.f32 %v200, %v279
  %v464 = vmul.f32 %v201, %v279
  %v465 = vmul.f32 %v202, %v279
  %v466 = vmul.f32 %v203, %v279
  %v467 = vmul.f32 %v204, %v279
  %v468 = vmul.f32 %v205, %v279
  %v469 = vmul.f32 %v206, %v279
  %v470 = vmul.f32 %v207, %v279
  %v471 = vmul.f32 %v208, %v279
  %v472 = vmul.f32 %v209, %v279
  %v473 = vmul.f32 %v210, %v279
  %v474 = vmul.f32 %v211, %v279
  %v475 = vmul.f32 %v212, %v279
  %v476 = vmul.f32 %v213, %v279
  %v477 = vmul.f32 %v214, %v279
  %v478 = vmul.f32 %v215, %v279
  %v479 = vmul.f32 %v216, %v279
  %v480 = vmul.f32 %v217, %v279
  %v481 = vmul.f32 %v218, %v279
  %v482 = vmul.f32 %v219, %v279
  %v483 = vmul.f32 %v220, %v279
  %v484 = vmul.f32 %v221, %v279
  %v485 = vmul.f32 %v222, %v279
  %v486 = vmul.f32 %v223, %v279
  %v487 = vmul.f32 %v224, %v279
  %v488 = vmul.f32 %v225, %v279
  %v489 = vmul.f32 %v226, %v279
  %v490 = vmul.f32 %v227, %v279
  %v491 = vmul.f32 %v228, %v279
  %v492 = vmul.f32 %v229, %v279
  %v493 = vmul.f32 %v230, %v279
  %v494 = vmul.f32 %v231, %v279
  %v495 = vmul.f32 %v232, %v279
  %v496 = vmul.f32 %v233, %v279
  %v497 = vmul.f32 %v234, %v279
  %v498 = vmul.f32 %v235, %v279
  %v499 = vmul.f32 %v236, %v279
  %v500 = vmul.f32 %v237, %v279
  %v501 = vmul.f32 %v238, %v279
  %v502 = vmul.f32 %v239, %v279
  %v503 = vmul.f32 %v240, %v279
  %v504 = vmul.f32 %v241, %v279
  %v505 = vmul.f32 %v242, %v279
  %v506 = vmul.f32 %v243, %v279
  %v507 = vmul.f32 %v244, %v279
  %v508 = vmul.f32 %v245, %v279
  %v509 = vmul.f32 %v246, %v279
  %v510 = vmul.f32 %v247, %v279
  %v511 = vmul.f32 %v248, %v279
  %v512 = vmul.f32 %v249, %v279
  %v513 = vmul.f32 %v250, %v279
  %v514 = vmul.f32 %v251, %v279
  %v515 = vmul.f32 %v252, %v279
  %v516 = vmul.f32 %v253, %v279
  %v517 = vmul.f32 %v254, %v279
  %v518 = vmul.f32 %v255, %v279
  %v519 = vmul.f32 %v256, %v279
  %v520 = vmul.f32 %v257, %v279
  %v521 = vmul.f32 %v258, %v279
  %v522 = vmul.f32 %v259, %v279
  %v523 = vmul.f32 %v260, %v279
  %v524 = vmul.f32 %v261, %v279
  %v525 = vmul.f32 %v262, %v279
  %v526 = vmul.f32 %v263, %v279
  %v527 = vmul.f32 %v264, %v279
  %v528 = vmul.f32 %v265, %v279
  %v529 = vmul.f32 %v266, %v279
  %v530 = vmul.f32 %v267, %v279
  %v531 = vmul.f32 %v268, %v279
  %v532 = vmul.f32 %v269, %v279
  %v533 = vmul.f32 %v270, %v279
  %v534 = vmul.f32 %v271, %v279
  %v535 = vmul.f32 %v272, %v279
  %v536 = vmul.f32 %v273, %v279
  %v537 = vld [vmem:[%s2] sm:$0x1]
  %v539 = vlaneseq
  %v540 = vshrl.u32 %v539, 7
  %v541 = vsub.s32 0, %v540
  %v542 = vrot.slane %v537, %v541
  %v544 = vadd.f32 %v281, %v542
  %v545 = vadd.f32 %v282, %v542
  %v546 = vadd.f32 %v283, %v542
  %v547 = vadd.f32 %v284, %v542
  %v548 = vadd.f32 %v285, %v542
  %v549 = vadd.f32 %v286, %v542
  %v550 = vadd.f32 %v287, %v542
  %v551 = vadd.f32 %v288, %v542
  %v552 = vadd.f32 %v289, %v542
  %v553 = vadd.f32 %v290, %v542
  %v554 = vadd.f32 %v291, %v542
  %v555 = vadd.f32 %v292, %v542
  %v556 = vadd.f32 %v293, %v542
  %v557 = vadd.f32 %v294, %v542
  %v558 = vadd.f32 %v295, %v542
  %v559 = vadd.f32 %v296, %v542
  %v560 = vadd.f32 %v297, %v542
  %v561 = vadd.f32 %v298, %v542
  %v562 = vadd.f32 %v299, %v542
  %v563 = vadd.f32 %v300, %v542
  %v564 = vadd.f32 %v301, %v542
  %v565 = vadd.f32 %v302, %v542
  %v566 = vadd.f32 %v303, %v542
  %v567 = vadd.f32 %v304, %v542
  %v568 = vadd.f32 %v305, %v542
  %v569 = vadd.f32 %v306, %v542
  %v570 = vadd.f32 %v307, %v542
  %v571 = vadd.f32 %v308, %v542
  %v572 = vadd.f32 %v309, %v542
  %v573 = vadd.f32 %v310, %v542
  %v574 = vadd.f32 %v311, %v542
  %v575 = vadd.f32 %v312, %v542
  %v576 = vadd.f32 %v313, %v542
  %v577 = vadd.f32 %v314, %v542
  %v578 = vadd.f32 %v315, %v542
  %v579 = vadd.f32 %v316, %v542
  %v580 = vadd.f32 %v317, %v542
  %v581 = vadd.f32 %v318, %v542
  %v582 = vadd.f32 %v319, %v542
  %v583 = vadd.f32 %v320, %v542
  %v584 = vadd.f32 %v321, %v542
  %v585 = vadd.f32 %v322, %v542
  %v586 = vadd.f32 %v323, %v542
  %v587 = vadd.f32 %v324, %v542
  %v588 = vadd.f32 %v325, %v542
  %v589 = vadd.f32 %v326, %v542
  %v590 = vadd.f32 %v327, %v542
  %v591 = vadd.f32 %v328, %v542
  %v592 = vadd.f32 %v329, %v542
  %v593 = vadd.f32 %v330, %v542
  %v594 = vadd.f32 %v331, %v542
  %v595 = vadd.f32 %v332, %v542
  %v596 = vadd.f32 %v333, %v542
  %v597 = vadd.f32 %v334, %v542
  %v598 = vadd.f32 %v335, %v542
  %v599 = vadd.f32 %v336, %v542
  %v600 = vadd.f32 %v337, %v542
  %v601 = vadd.f32 %v338, %v542
  %v602 = vadd.f32 %v339, %v542
  %v603 = vadd.f32 %v340, %v542
  %v604 = vadd.f32 %v341, %v542
  %v605 = vadd.f32 %v342, %v542
  %v606 = vadd.f32 %v343, %v542
  %v607 = vadd.f32 %v344, %v542
  %v608 = vadd.f32 %v345, %v542
  %v609 = vadd.f32 %v346, %v542
  %v610 = vadd.f32 %v347, %v542
  %v611 = vadd.f32 %v348, %v542
  %v612 = vadd.f32 %v349, %v542
  %v613 = vadd.f32 %v350, %v542
  %v614 = vadd.f32 %v351, %v542
  %v615 = vadd.f32 %v352, %v542
  %v616 = vadd.f32 %v353, %v542
  %v617 = vadd.f32 %v354, %v542
  %v618 = vadd.f32 %v355, %v542
  %v619 = vadd.f32 %v356, %v542
  %v620 = vadd.f32 %v357, %v542
  %v621 = vadd.f32 %v358, %v542
  %v622 = vadd.f32 %v359, %v542
  %v623 = vadd.f32 %v360, %v542
  %v624 = vadd.f32 %v361, %v542
  %v625 = vadd.f32 %v362, %v542
  %v626 = vadd.f32 %v363, %v542
  %v627 = vadd.f32 %v364, %v542
  %v628 = vadd.f32 %v365, %v542
  %v629 = vadd.f32 %v366, %v542
  %v630 = vadd.f32 %v367, %v542
  %v631 = vadd.f32 %v368, %v542
  %v632 = vadd.f32 %v369, %v542
  %v633 = vadd.f32 %v370, %v542
  %v634 = vadd.f32 %v371, %v542
  %v635 = vadd.f32 %v372, %v542
  %v636 = vadd.f32 %v373, %v542
  %v637 = vadd.f32 %v374, %v542
  %v638 = vadd.f32 %v375, %v542
  %v639 = vadd.f32 %v376, %v542
  %v640 = vadd.f32 %v377, %v542
  %v641 = vadd.f32 %v378, %v542
  %v642 = vadd.f32 %v379, %v542
  %v643 = vadd.f32 %v380, %v542
  %v644 = vadd.f32 %v381, %v542
  %v645 = vadd.f32 %v382, %v542
  %v646 = vadd.f32 %v383, %v542
  %v647 = vadd.f32 %v384, %v542
  %v648 = vadd.f32 %v385, %v542
  %v649 = vadd.f32 %v386, %v542
  %v650 = vadd.f32 %v387, %v542
  %v651 = vadd.f32 %v388, %v542
  %v652 = vadd.f32 %v389, %v542
  %v653 = vadd.f32 %v390, %v542
  %v654 = vadd.f32 %v391, %v542
  %v655 = vadd.f32 %v392, %v542
  %v656 = vadd.f32 %v393, %v542
  %v657 = vadd.f32 %v394, %v542
  %v658 = vadd.f32 %v395, %v542
  %v659 = vadd.f32 %v396, %v542
  %v660 = vadd.f32 %v397, %v542
  %v661 = vadd.f32 %v398, %v542
  %v662 = vadd.f32 %v399, %v542
  %v663 = vadd.f32 %v400, %v542
  %v664 = vadd.f32 %v401, %v542
  %v665 = vadd.f32 %v402, %v542
  %v666 = vadd.f32 %v403, %v542
  %v667 = vadd.f32 %v404, %v542
  %v668 = vadd.f32 %v405, %v542
  %v669 = vadd.f32 %v406, %v542
  %v670 = vadd.f32 %v407, %v542
  %v671 = vadd.f32 %v408, %v542
  %v672 = vadd.f32 %v409, %v542
  %v673 = vadd.f32 %v410, %v542
  %v674 = vadd.f32 %v411, %v542
  %v675 = vadd.f32 %v412, %v542
  %v676 = vadd.f32 %v413, %v542
  %v677 = vadd.f32 %v414, %v542
  %v678 = vadd.f32 %v415, %v542
  %v679 = vadd.f32 %v416, %v542
  %v680 = vadd.f32 %v417, %v542
  %v681 = vadd.f32 %v418, %v542
  %v682 = vadd.f32 %v419, %v542
  %v683 = vadd.f32 %v420, %v542
  %v684 = vadd.f32 %v421, %v542
  %v685 = vadd.f32 %v422, %v542
  %v686 = vadd.f32 %v423, %v542
  %v687 = vadd.f32 %v424, %v542
  %v688 = vadd.f32 %v425, %v542
  %v689 = vadd.f32 %v426, %v542
  %v690 = vadd.f32 %v427, %v542
  %v691 = vadd.f32 %v428, %v542
  %v692 = vadd.f32 %v429, %v542
  %v693 = vadd.f32 %v430, %v542
  %v694 = vadd.f32 %v431, %v542
  %v695 = vadd.f32 %v432, %v542
  %v696 = vadd.f32 %v433, %v542
  %v697 = vadd.f32 %v434, %v542
  %v698 = vadd.f32 %v435, %v542
  %v699 = vadd.f32 %v436, %v542
  %v700 = vadd.f32 %v437, %v542
  %v701 = vadd.f32 %v438, %v542
  %v702 = vadd.f32 %v439, %v542
  %v703 = vadd.f32 %v440, %v542
  %v704 = vadd.f32 %v441, %v542
  %v705 = vadd.f32 %v442, %v542
  %v706 = vadd.f32 %v443, %v542
  %v707 = vadd.f32 %v444, %v542
  %v708 = vadd.f32 %v445, %v542
  %v709 = vadd.f32 %v446, %v542
  %v710 = vadd.f32 %v447, %v542
  %v711 = vadd.f32 %v448, %v542
  %v712 = vadd.f32 %v449, %v542
  %v713 = vadd.f32 %v450, %v542
  %v714 = vadd.f32 %v451, %v542
  %v715 = vadd.f32 %v452, %v542
  %v716 = vadd.f32 %v453, %v542
  %v717 = vadd.f32 %v454, %v542
  %v718 = vadd.f32 %v455, %v542
  %v719 = vadd.f32 %v456, %v542
  %v720 = vadd.f32 %v457, %v542
  %v721 = vadd.f32 %v458, %v542
  %v722 = vadd.f32 %v459, %v542
  %v723 = vadd.f32 %v460, %v542
  %v724 = vadd.f32 %v461, %v542
  %v725 = vadd.f32 %v462, %v542
  %v726 = vadd.f32 %v463, %v542
  %v727 = vadd.f32 %v464, %v542
  %v728 = vadd.f32 %v465, %v542
  %v729 = vadd.f32 %v466, %v542
  %v730 = vadd.f32 %v467, %v542
  %v731 = vadd.f32 %v468, %v542
  %v732 = vadd.f32 %v469, %v542
  %v733 = vadd.f32 %v470, %v542
  %v734 = vadd.f32 %v471, %v542
  %v735 = vadd.f32 %v472, %v542
  %v736 = vadd.f32 %v473, %v542
  %v737 = vadd.f32 %v474, %v542
  %v738 = vadd.f32 %v475, %v542
  %v739 = vadd.f32 %v476, %v542
  %v740 = vadd.f32 %v477, %v542
  %v741 = vadd.f32 %v478, %v542
  %v742 = vadd.f32 %v479, %v542
  %v743 = vadd.f32 %v480, %v542
  %v744 = vadd.f32 %v481, %v542
  %v745 = vadd.f32 %v482, %v542
  %v746 = vadd.f32 %v483, %v542
  %v747 = vadd.f32 %v484, %v542
  %v748 = vadd.f32 %v485, %v542
  %v749 = vadd.f32 %v486, %v542
  %v750 = vadd.f32 %v487, %v542
  %v751 = vadd.f32 %v488, %v542
  %v752 = vadd.f32 %v489, %v542
  %v753 = vadd.f32 %v490, %v542
  %v754 = vadd.f32 %v491, %v542
  %v755 = vadd.f32 %v492, %v542
  %v756 = vadd.f32 %v493, %v542
  %v757 = vadd.f32 %v494, %v542
  %v758 = vadd.f32 %v495, %v542
  %v759 = vadd.f32 %v496, %v542
  %v760 = vadd.f32 %v497, %v542
  %v761 = vadd.f32 %v498, %v542
  %v762 = vadd.f32 %v499, %v542
  %v763 = vadd.f32 %v500, %v542
  %v764 = vadd.f32 %v501, %v542
  %v765 = vadd.f32 %v502, %v542
  %v766 = vadd.f32 %v503, %v542
  %v767 = vadd.f32 %v504, %v542
  %v768 = vadd.f32 %v505, %v542
  %v769 = vadd.f32 %v506, %v542
  %v770 = vadd.f32 %v507, %v542
  %v771 = vadd.f32 %v508, %v542
  %v772 = vadd.f32 %v509, %v542
  %v773 = vadd.f32 %v510, %v542
  %v774 = vadd.f32 %v511, %v542
  %v775 = vadd.f32 %v512, %v542
  %v776 = vadd.f32 %v513, %v542
  %v777 = vadd.f32 %v514, %v542
  %v778 = vadd.f32 %v515, %v542
  %v779 = vadd.f32 %v516, %v542
  %v780 = vadd.f32 %v517, %v542
  %v781 = vadd.f32 %v518, %v542
  %v782 = vadd.f32 %v519, %v542
  %v783 = vadd.f32 %v520, %v542
  %v784 = vadd.f32 %v521, %v542
  %v785 = vadd.f32 %v522, %v542
  %v786 = vadd.f32 %v523, %v542
  %v787 = vadd.f32 %v524, %v542
  %v788 = vadd.f32 %v525, %v542
  %v789 = vadd.f32 %v526, %v542
  %v790 = vadd.f32 %v527, %v542
  %v791 = vadd.f32 %v528, %v542
  %v792 = vadd.f32 %v529, %v542
  %v793 = vadd.f32 %v530, %v542
  %v794 = vadd.f32 %v531, %v542
  %v795 = vadd.f32 %v532, %v542
  %v796 = vadd.f32 %v533, %v542
  %v797 = vadd.f32 %v534, %v542
  %v798 = vadd.f32 %v535, %v542
  %v799 = vadd.f32 %v536, %v542
  %v800 = vmax.f32 %v544, 0.0
  %v801 = vmax.f32 %v545, 0.0
  %v802 = vmax.f32 %v546, 0.0
  %v803 = vmax.f32 %v547, 0.0
  %v804 = vmax.f32 %v548, 0.0
  %v805 = vmax.f32 %v549, 0.0
  %v806 = vmax.f32 %v550, 0.0
  %v807 = vmax.f32 %v551, 0.0
  %v808 = vmax.f32 %v552, 0.0
  %v809 = vmax.f32 %v553, 0.0
  %v810 = vmax.f32 %v554, 0.0
  %v811 = vmax.f32 %v555, 0.0
  %v812 = vmax.f32 %v556, 0.0
  %v813 = vmax.f32 %v557, 0.0
  %v814 = vmax.f32 %v558, 0.0
  %v815 = vmax.f32 %v559, 0.0
  %v816 = vmax.f32 %v560, 0.0
  %v817 = vmax.f32 %v561, 0.0
  %v818 = vmax.f32 %v562, 0.0
  %v819 = vmax.f32 %v563, 0.0
  %v820 = vmax.f32 %v564, 0.0
  %v821 = vmax.f32 %v565, 0.0
  %v822 = vmax.f32 %v566, 0.0
  %v823 = vmax.f32 %v567, 0.0
  %v824 = vmax.f32 %v568, 0.0
  %v825 = vmax.f32 %v569, 0.0
  %v826 = vmax.f32 %v570, 0.0
  %v827 = vmax.f32 %v571, 0.0
  %v828 = vmax.f32 %v572, 0.0
  %v829 = vmax.f32 %v573, 0.0
  %v830 = vmax.f32 %v574, 0.0
  %v831 = vmax.f32 %v575, 0.0
  %v832 = vmax.f32 %v576, 0.0
  %v833 = vmax.f32 %v577, 0.0
  %v834 = vmax.f32 %v578, 0.0
  %v835 = vmax.f32 %v579, 0.0
  %v836 = vmax.f32 %v580, 0.0
  %v837 = vmax.f32 %v581, 0.0
  %v838 = vmax.f32 %v582, 0.0
  %v839 = vmax.f32 %v583, 0.0
  %v840 = vmax.f32 %v584, 0.0
  %v841 = vmax.f32 %v585, 0.0
  %v842 = vmax.f32 %v586, 0.0
  %v843 = vmax.f32 %v587, 0.0
  %v844 = vmax.f32 %v588, 0.0
  %v845 = vmax.f32 %v589, 0.0
  %v846 = vmax.f32 %v590, 0.0
  %v847 = vmax.f32 %v591, 0.0
  %v848 = vmax.f32 %v592, 0.0
  %v849 = vmax.f32 %v593, 0.0
  %v850 = vmax.f32 %v594, 0.0
  %v851 = vmax.f32 %v595, 0.0
  %v852 = vmax.f32 %v596, 0.0
  %v853 = vmax.f32 %v597, 0.0
  %v854 = vmax.f32 %v598, 0.0
  %v855 = vmax.f32 %v599, 0.0
  %v856 = vmax.f32 %v600, 0.0
  %v857 = vmax.f32 %v601, 0.0
  %v858 = vmax.f32 %v602, 0.0
  %v859 = vmax.f32 %v603, 0.0
  %v860 = vmax.f32 %v604, 0.0
  %v861 = vmax.f32 %v605, 0.0
  %v862 = vmax.f32 %v606, 0.0
  %v863 = vmax.f32 %v607, 0.0
  %v864 = vmax.f32 %v608, 0.0
  %v865 = vmax.f32 %v609, 0.0
  %v866 = vmax.f32 %v610, 0.0
  %v867 = vmax.f32 %v611, 0.0
  %v868 = vmax.f32 %v612, 0.0
  %v869 = vmax.f32 %v613, 0.0
  %v870 = vmax.f32 %v614, 0.0
  %v871 = vmax.f32 %v615, 0.0
  %v872 = vmax.f32 %v616, 0.0
  %v873 = vmax.f32 %v617, 0.0
  %v874 = vmax.f32 %v618, 0.0
  %v875 = vmax.f32 %v619, 0.0
  %v876 = vmax.f32 %v620, 0.0
  %v877 = vmax.f32 %v621, 0.0
  %v878 = vmax.f32 %v622, 0.0
  %v879 = vmax.f32 %v623, 0.0
  %v880 = vmax.f32 %v624, 0.0
  %v881 = vmax.f32 %v625, 0.0
  %v882 = vmax.f32 %v626, 0.0
  %v883 = vmax.f32 %v627, 0.0
  %v884 = vmax.f32 %v628, 0.0
  %v885 = vmax.f32 %v629, 0.0
  %v886 = vmax.f32 %v630, 0.0
  %v887 = vmax.f32 %v631, 0.0
  %v888 = vmax.f32 %v632, 0.0
  %v889 = vmax.f32 %v633, 0.0
  %v890 = vmax.f32 %v634, 0.0
  %v891 = vmax.f32 %v635, 0.0
  %v892 = vmax.f32 %v636, 0.0
  %v893 = vmax.f32 %v637, 0.0
  %v894 = vmax.f32 %v638, 0.0
  %v895 = vmax.f32 %v639, 0.0
  %v896 = vmax.f32 %v640, 0.0
  %v897 = vmax.f32 %v641, 0.0
  %v898 = vmax.f32 %v642, 0.0
  %v899 = vmax.f32 %v643, 0.0
  %v900 = vmax.f32 %v644, 0.0
  %v901 = vmax.f32 %v645, 0.0
  %v902 = vmax.f32 %v646, 0.0
  %v903 = vmax.f32 %v647, 0.0
  %v904 = vmax.f32 %v648, 0.0
  %v905 = vmax.f32 %v649, 0.0
  %v906 = vmax.f32 %v650, 0.0
  %v907 = vmax.f32 %v651, 0.0
  %v908 = vmax.f32 %v652, 0.0
  %v909 = vmax.f32 %v653, 0.0
  %v910 = vmax.f32 %v654, 0.0
  %v911 = vmax.f32 %v655, 0.0
  %v912 = vmax.f32 %v656, 0.0
  %v913 = vmax.f32 %v657, 0.0
  %v914 = vmax.f32 %v658, 0.0
  %v915 = vmax.f32 %v659, 0.0
  %v916 = vmax.f32 %v660, 0.0
  %v917 = vmax.f32 %v661, 0.0
  %v918 = vmax.f32 %v662, 0.0
  %v919 = vmax.f32 %v663, 0.0
  %v920 = vmax.f32 %v664, 0.0
  %v921 = vmax.f32 %v665, 0.0
  %v922 = vmax.f32 %v666, 0.0
  %v923 = vmax.f32 %v667, 0.0
  %v924 = vmax.f32 %v668, 0.0
  %v925 = vmax.f32 %v669, 0.0
  %v926 = vmax.f32 %v670, 0.0
  %v927 = vmax.f32 %v671, 0.0
  %v928 = vmax.f32 %v672, 0.0
  %v929 = vmax.f32 %v673, 0.0
  %v930 = vmax.f32 %v674, 0.0
  %v931 = vmax.f32 %v675, 0.0
  %v932 = vmax.f32 %v676, 0.0
  %v933 = vmax.f32 %v677, 0.0
  %v934 = vmax.f32 %v678, 0.0
  %v935 = vmax.f32 %v679, 0.0
  %v936 = vmax.f32 %v680, 0.0
  %v937 = vmax.f32 %v681, 0.0
  %v938 = vmax.f32 %v682, 0.0
  %v939 = vmax.f32 %v683, 0.0
  %v940 = vmax.f32 %v684, 0.0
  %v941 = vmax.f32 %v685, 0.0
  %v942 = vmax.f32 %v686, 0.0
  %v943 = vmax.f32 %v687, 0.0
  %v944 = vmax.f32 %v688, 0.0
  %v945 = vmax.f32 %v689, 0.0
  %v946 = vmax.f32 %v690, 0.0
  %v947 = vmax.f32 %v691, 0.0
  %v948 = vmax.f32 %v692, 0.0
  %v949 = vmax.f32 %v693, 0.0
  %v950 = vmax.f32 %v694, 0.0
  %v951 = vmax.f32 %v695, 0.0
  %v952 = vmax.f32 %v696, 0.0
  %v953 = vmax.f32 %v697, 0.0
  %v954 = vmax.f32 %v698, 0.0
  %v955 = vmax.f32 %v699, 0.0
  %v956 = vmax.f32 %v700, 0.0
  %v957 = vmax.f32 %v701, 0.0
  %v958 = vmax.f32 %v702, 0.0
  %v959 = vmax.f32 %v703, 0.0
  %v960 = vmax.f32 %v704, 0.0
  %v961 = vmax.f32 %v705, 0.0
  %v962 = vmax.f32 %v706, 0.0
  %v963 = vmax.f32 %v707, 0.0
  %v964 = vmax.f32 %v708, 0.0
  %v965 = vmax.f32 %v709, 0.0
  %v966 = vmax.f32 %v710, 0.0
  %v967 = vmax.f32 %v711, 0.0
  %v968 = vmax.f32 %v712, 0.0
  %v969 = vmax.f32 %v713, 0.0
  %v970 = vmax.f32 %v714, 0.0
  %v971 = vmax.f32 %v715, 0.0
  %v972 = vmax.f32 %v716, 0.0
  %v973 = vmax.f32 %v717, 0.0
  %v974 = vmax.f32 %v718, 0.0
  %v975 = vmax.f32 %v719, 0.0
  %v976 = vmax.f32 %v720, 0.0
  %v977 = vmax.f32 %v721, 0.0
  %v978 = vmax.f32 %v722, 0.0
  %v979 = vmax.f32 %v723, 0.0
  %v980 = vmax.f32 %v724, 0.0
  %v981 = vmax.f32 %v725, 0.0
  %v982 = vmax.f32 %v726, 0.0
  %v983 = vmax.f32 %v727, 0.0
  %v984 = vmax.f32 %v728, 0.0
  %v985 = vmax.f32 %v729, 0.0
  %v986 = vmax.f32 %v730, 0.0
  %v987 = vmax.f32 %v731, 0.0
  %v988 = vmax.f32 %v732, 0.0
  %v989 = vmax.f32 %v733, 0.0
  %v990 = vmax.f32 %v734, 0.0
  %v991 = vmax.f32 %v735, 0.0
  %v992 = vmax.f32 %v736, 0.0
  %v993 = vmax.f32 %v737, 0.0
  %v994 = vmax.f32 %v738, 0.0
  %v995 = vmax.f32 %v739, 0.0
  %v996 = vmax.f32 %v740, 0.0
  %v997 = vmax.f32 %v741, 0.0
  %v998 = vmax.f32 %v742, 0.0
  %v999 = vmax.f32 %v743, 0.0
  %v1000 = vmax.f32 %v744, 0.0
  %v1001 = vmax.f32 %v745, 0.0
  %v1002 = vmax.f32 %v746, 0.0
  %v1003 = vmax.f32 %v747, 0.0
  %v1004 = vmax.f32 %v748, 0.0
  %v1005 = vmax.f32 %v749, 0.0
  %v1006 = vmax.f32 %v750, 0.0
  %v1007 = vmax.f32 %v751, 0.0
  %v1008 = vmax.f32 %v752, 0.0
  %v1009 = vmax.f32 %v753, 0.0
  %v1010 = vmax.f32 %v754, 0.0
  %v1011 = vmax.f32 %v755, 0.0
  %v1012 = vmax.f32 %v756, 0.0
  %v1013 = vmax.f32 %v757, 0.0
  %v1014 = vmax.f32 %v758, 0.0
  %v1015 = vmax.f32 %v759, 0.0
  %v1016 = vmax.f32 %v760, 0.0
  %v1017 = vmax.f32 %v761, 0.0
  %v1018 = vmax.f32 %v762, 0.0
  %v1019 = vmax.f32 %v763, 0.0
  %v1020 = vmax.f32 %v764, 0.0
  %v1021 = vmax.f32 %v765, 0.0
  %v1022 = vmax.f32 %v766, 0.0
  %v1023 = vmax.f32 %v767, 0.0
  %v1024 = vmax.f32 %v768, 0.0
  %v1025 = vmax.f32 %v769, 0.0
  %v1026 = vmax.f32 %v770, 0.0
  %v1027 = vmax.f32 %v771, 0.0
  %v1028 = vmax.f32 %v772, 0.0
  %v1029 = vmax.f32 %v773, 0.0
  %v1030 = vmax.f32 %v774, 0.0
  %v1031 = vmax.f32 %v775, 0.0
  %v1032 = vmax.f32 %v776, 0.0
  %v1033 = vmax.f32 %v777, 0.0
  %v1034 = vmax.f32 %v778, 0.0
  %v1035 = vmax.f32 %v779, 0.0
  %v1036 = vmax.f32 %v780, 0.0
  %v1037 = vmax.f32 %v781, 0.0
  %v1038 = vmax.f32 %v782, 0.0
  %v1039 = vmax.f32 %v783, 0.0
  %v1040 = vmax.f32 %v784, 0.0
  %v1041 = vmax.f32 %v785, 0.0
  %v1042 = vmax.f32 %v786, 0.0
  %v1043 = vmax.f32 %v787, 0.0
  %v1044 = vmax.f32 %v788, 0.0
  %v1045 = vmax.f32 %v789, 0.0
  %v1046 = vmax.f32 %v790, 0.0
  %v1047 = vmax.f32 %v791, 0.0
  %v1048 = vmax.f32 %v792, 0.0
  %v1049 = vmax.f32 %v793, 0.0
  %v1050 = vmax.f32 %v794, 0.0
  %v1051 = vmax.f32 %v795, 0.0
  %v1052 = vmax.f32 %v796, 0.0
  %v1053 = vmax.f32 %v797, 0.0
  %v1054 = vmax.f32 %v798, 0.0
  %v1055 = vmax.f32 %v799, 0.0
  %v1056 = vpack.c.bf16 %v801, %v800
  %v1057 = vpack.c.bf16 %v803, %v802
  %v1058 = vpack.c.bf16 %v805, %v804
  %v1059 = vpack.c.bf16 %v807, %v806
  %v1060 = vpack.c.bf16 %v809, %v808
  %v1061 = vpack.c.bf16 %v811, %v810
  %v1062 = vpack.c.bf16 %v813, %v812
  %v1063 = vpack.c.bf16 %v815, %v814
  %v1064 = vpack.c.bf16 %v817, %v816
  %v1065 = vpack.c.bf16 %v819, %v818
  %v1066 = vpack.c.bf16 %v821, %v820
  %v1067 = vpack.c.bf16 %v823, %v822
  %v1068 = vpack.c.bf16 %v825, %v824
  %v1069 = vpack.c.bf16 %v827, %v826
  %v1070 = vpack.c.bf16 %v829, %v828
  %v1071 = vpack.c.bf16 %v831, %v830
  %v1072 = vpack.c.bf16 %v833, %v832
  %v1073 = vpack.c.bf16 %v835, %v834
  %v1074 = vpack.c.bf16 %v837, %v836
  %v1075 = vpack.c.bf16 %v839, %v838
  %v1076 = vpack.c.bf16 %v841, %v840
  %v1077 = vpack.c.bf16 %v843, %v842
  %v1078 = vpack.c.bf16 %v845, %v844
  %v1079 = vpack.c.bf16 %v847, %v846
  %v1080 = vpack.c.bf16 %v849, %v848
  %v1081 = vpack.c.bf16 %v851, %v850
  %v1082 = vpack.c.bf16 %v853, %v852
  %v1083 = vpack.c.bf16 %v855, %v854
  %v1084 = vpack.c.bf16 %v857, %v856
  %v1085 = vpack.c.bf16 %v859, %v858
  %v1086 = vpack.c.bf16 %v861, %v860
  %v1087 = vpack.c.bf16 %v863, %v862
  %v1088 = vpack.c.bf16 %v865, %v864
  %v1089 = vpack.c.bf16 %v867, %v866
  %v1090 = vpack.c.bf16 %v869, %v868
  %v1091 = vpack.c.bf16 %v871, %v870
  %v1092 = vpack.c.bf16 %v873, %v872
  %v1093 = vpack.c.bf16 %v875, %v874
  %v1094 = vpack.c.bf16 %v877, %v876
  %v1095 = vpack.c.bf16 %v879, %v878
  %v1096 = vpack.c.bf16 %v881, %v880
  %v1097 = vpack.c.bf16 %v883, %v882
  %v1098 = vpack.c.bf16 %v885, %v884
  %v1099 = vpack.c.bf16 %v887, %v886
  %v1100 = vpack.c.bf16 %v889, %v888
  %v1101 = vpack.c.bf16 %v891, %v890
  %v1102 = vpack.c.bf16 %v893, %v892
  %v1103 = vpack.c.bf16 %v895, %v894
  %v1104 = vpack.c.bf16 %v897, %v896
  %v1105 = vpack.c.bf16 %v899, %v898
  %v1106 = vpack.c.bf16 %v901, %v900
  %v1107 = vpack.c.bf16 %v903, %v902
  %v1108 = vpack.c.bf16 %v905, %v904
  %v1109 = vpack.c.bf16 %v907, %v906
  %v1110 = vpack.c.bf16 %v909, %v908
  %v1111 = vpack.c.bf16 %v911, %v910
  %v1112 = vpack.c.bf16 %v913, %v912
  %v1113 = vpack.c.bf16 %v915, %v914
  %v1114 = vpack.c.bf16 %v917, %v916
  %v1115 = vpack.c.bf16 %v919, %v918
  %v1116 = vpack.c.bf16 %v921, %v920
  %v1117 = vpack.c.bf16 %v923, %v922
  %v1118 = vpack.c.bf16 %v925, %v924
  %v1119 = vpack.c.bf16 %v927, %v926
  %v1120 = vpack.c.bf16 %v929, %v928
  %v1121 = vpack.c.bf16 %v931, %v930
  %v1122 = vpack.c.bf16 %v933, %v932
  %v1123 = vpack.c.bf16 %v935, %v934
  %v1124 = vpack.c.bf16 %v937, %v936
  %v1125 = vpack.c.bf16 %v939, %v938
  %v1126 = vpack.c.bf16 %v941, %v940
  %v1127 = vpack.c.bf16 %v943, %v942
  %v1128 = vpack.c.bf16 %v945, %v944
  %v1129 = vpack.c.bf16 %v947, %v946
  %v1130 = vpack.c.bf16 %v949, %v948
  %v1131 = vpack.c.bf16 %v951, %v950
  %v1132 = vpack.c.bf16 %v953, %v952
  %v1133 = vpack.c.bf16 %v955, %v954
  %v1134 = vpack.c.bf16 %v957, %v956
  %v1135 = vpack.c.bf16 %v959, %v958
  %v1136 = vpack.c.bf16 %v961, %v960
  %v1137 = vpack.c.bf16 %v963, %v962
  %v1138 = vpack.c.bf16 %v965, %v964
  %v1139 = vpack.c.bf16 %v967, %v966
  %v1140 = vpack.c.bf16 %v969, %v968
  %v1141 = vpack.c.bf16 %v971, %v970
  %v1142 = vpack.c.bf16 %v973, %v972
  %v1143 = vpack.c.bf16 %v975, %v974
  %v1144 = vpack.c.bf16 %v977, %v976
  %v1145 = vpack.c.bf16 %v979, %v978
  %v1146 = vpack.c.bf16 %v981, %v980
  %v1147 = vpack.c.bf16 %v983, %v982
  %v1148 = vpack.c.bf16 %v985, %v984
  %v1149 = vpack.c.bf16 %v987, %v986
  %v1150 = vpack.c.bf16 %v989, %v988
  %v1151 = vpack.c.bf16 %v991, %v990
  %v1152 = vpack.c.bf16 %v993, %v992
  %v1153 = vpack.c.bf16 %v995, %v994
  %v1154 = vpack.c.bf16 %v997, %v996
  %v1155 = vpack.c.bf16 %v999, %v998
  %v1156 = vpack.c.bf16 %v1001, %v1000
  %v1157 = vpack.c.bf16 %v1003, %v1002
  %v1158 = vpack.c.bf16 %v1005, %v1004
  %v1159 = vpack.c.bf16 %v1007, %v1006
  %v1160 = vpack.c.bf16 %v1009, %v1008
  %v1161 = vpack.c.bf16 %v1011, %v1010
  %v1162 = vpack.c.bf16 %v1013, %v1012
  %v1163 = vpack.c.bf16 %v1015, %v1014
  %v1164 = vpack.c.bf16 %v1017, %v1016
  %v1165 = vpack.c.bf16 %v1019, %v1018
  %v1166 = vpack.c.bf16 %v1021, %v1020
  %v1167 = vpack.c.bf16 %v1023, %v1022
  %v1168 = vpack.c.bf16 %v1025, %v1024
  %v1169 = vpack.c.bf16 %v1027, %v1026
  %v1170 = vpack.c.bf16 %v1029, %v1028
  %v1171 = vpack.c.bf16 %v1031, %v1030
  %v1172 = vpack.c.bf16 %v1033, %v1032
  %v1173 = vpack.c.bf16 %v1035, %v1034
  %v1174 = vpack.c.bf16 %v1037, %v1036
  %v1175 = vpack.c.bf16 %v1039, %v1038
  %v1176 = vpack.c.bf16 %v1041, %v1040
  %v1177 = vpack.c.bf16 %v1043, %v1042
  %v1178 = vpack.c.bf16 %v1045, %v1044
  %v1179 = vpack.c.bf16 %v1047, %v1046
  %v1180 = vpack.c.bf16 %v1049, %v1048
  %v1181 = vpack.c.bf16 %v1051, %v1050
  %v1182 = vpack.c.bf16 %v1053, %v1052
  %v1183 = vpack.c.bf16 %v1055, %v1054
  %v1184 = vld [vmem:[%s3] sm:$0xf]
  %vm1185 = vcmask 64512
  %v1187 = vsel %vm1185, %v1056, 0
  %v1190 = vsel %vm1185, %v1057, 0
  %v1193 = vsel %vm1185, %v1058, 0
  %v1196 = vsel %vm1185, %v1059, 0
  %v1199 = vsel %vm1185, %v1060, 0
  %v1202 = vsel %vm1185, %v1061, 0
  %v1205 = vsel %vm1185, %v1062, 0
  %v1208 = vsel %vm1185, %v1063, 0
  %v1211 = vsel %vm1185, %v1064, 0
  %v1214 = vsel %vm1185, %v1065, 0
  %v1217 = vsel %vm1185, %v1066, 0
  %v1220 = vsel %vm1185, %v1067, 0
  %v1223 = vsel %vm1185, %v1068, 0
  %v1226 = vsel %vm1185, %v1069, 0
  %v1229 = vsel %vm1185, %v1070, 0
  %v1232 = vsel %vm1185, %v1071, 0
  %v1235 = vsel %vm1185, %v1072, 0
  %v1238 = vsel %vm1185, %v1073, 0
  %v1241 = vsel %vm1185, %v1074, 0
  %v1244 = vsel %vm1185, %v1075, 0
  %v1247 = vsel %vm1185, %v1076, 0
  %v1250 = vsel %vm1185, %v1077, 0
  %v1253 = vsel %vm1185, %v1078, 0
  %v1256 = vsel %vm1185, %v1079, 0
  %v1259 = vsel %vm1185, %v1080, 0
  %v1262 = vsel %vm1185, %v1081, 0
  %v1265 = vsel %vm1185, %v1082, 0
  %v1268 = vsel %vm1185, %v1083, 0
  %v1271 = vsel %vm1185, %v1084, 0
  %v1274 = vsel %vm1185, %v1085, 0
  %v1277 = vsel %vm1185, %v1086, 0
  %v1280 = vsel %vm1185, %v1087, 0
  %v1283 = vsel %vm1185, %v1088, 0
  %v1286 = vsel %vm1185, %v1089, 0
  %v1289 = vsel %vm1185, %v1090, 0
  %v1292 = vsel %vm1185, %v1091, 0
  %v1295 = vsel %vm1185, %v1092, 0
  %v1298 = vsel %vm1185, %v1093, 0
  %v1301 = vsel %vm1185, %v1094, 0
  %v1304 = vsel %vm1185, %v1095, 0
  %v1307 = vsel %vm1185, %v1096, 0
  %v1310 = vsel %vm1185, %v1097, 0
  %v1313 = vsel %vm1185, %v1098, 0
  %v1316 = vsel %vm1185, %v1099, 0
  %v1319 = vsel %vm1185, %v1100, 0
  %v1322 = vsel %vm1185, %v1101, 0
  %v1325 = vsel %vm1185, %v1102, 0
  %v1328 = vsel %vm1185, %v1103, 0
  %v1331 = vsel %vm1185, %v1104, 0
  %v1334 = vsel %vm1185, %v1105, 0
  %v1337 = vsel %vm1185, %v1106, 0
  %v1340 = vsel %vm1185, %v1107, 0
  %v1343 = vsel %vm1185, %v1108, 0
  %v1346 = vsel %vm1185, %v1109, 0
  %v1349 = vsel %vm1185, %v1110, 0
  %v1352 = vsel %vm1185, %v1111, 0
  %v1355 = vsel %vm1185, %v1112, 0
  %v1358 = vsel %vm1185, %v1113, 0
  %v1361 = vsel %vm1185, %v1114, 0
  %v1364 = vsel %vm1185, %v1115, 0
  %v1367 = vsel %vm1185, %v1116, 0
  %v1370 = vsel %vm1185, %v1117, 0
  %v1373 = vsel %vm1185, %v1118, 0
  %v1376 = vsel %vm1185, %v1119, 0
  %v1379 = vsel %vm1185, %v1120, 0
  %v1382 = vsel %vm1185, %v1121, 0
  %v1385 = vsel %vm1185, %v1122, 0
  %v1388 = vsel %vm1185, %v1123, 0
  %v1391 = vsel %vm1185, %v1124, 0
  %v1394 = vsel %vm1185, %v1125, 0
  %v1397 = vsel %vm1185, %v1126, 0
  %v1400 = vsel %vm1185, %v1127, 0
  %v1403 = vsel %vm1185, %v1128, 0
  %v1406 = vsel %vm1185, %v1129, 0
  %v1409 = vsel %vm1185, %v1130, 0
  %v1412 = vsel %vm1185, %v1131, 0
  %v1415 = vsel %vm1185, %v1132, 0
  %v1418 = vsel %vm1185, %v1133, 0
  %v1421 = vsel %vm1185, %v1134, 0
  %v1424 = vsel %vm1185, %v1135, 0
  %v1427 = vsel %vm1185, %v1136, 0
  %v1430 = vsel %vm1185, %v1137, 0
  %v1433 = vsel %vm1185, %v1138, 0
  %v1436 = vsel %vm1185, %v1139, 0
  %v1439 = vsel %vm1185, %v1140, 0
  %v1442 = vsel %vm1185, %v1141, 0
  %v1445 = vsel %vm1185, %v1142, 0
  %v1448 = vsel %vm1185, %v1143, 0
  %v1451 = vsel %vm1185, %v1144, 0
  %v1454 = vsel %vm1185, %v1145, 0
  %v1457 = vsel %vm1185, %v1146, 0
  %v1460 = vsel %vm1185, %v1147, 0
  %v1463 = vsel %vm1185, %v1148, 0
  %v1466 = vsel %vm1185, %v1149, 0
  %v1469 = vsel %vm1185, %v1150, 0
  %v1472 = vsel %vm1185, %v1151, 0
  %v1475 = vsel %vm1185, %v1152, 0
  %v1478 = vsel %vm1185, %v1153, 0
  %v1481 = vsel %vm1185, %v1154, 0
  %v1484 = vsel %vm1185, %v1155, 0
  %v1487 = vsel %vm1185, %v1156, 0
  %v1490 = vsel %vm1185, %v1157, 0
  %v1493 = vsel %vm1185, %v1158, 0
  %v1496 = vsel %vm1185, %v1159, 0
  %v1499 = vsel %vm1185, %v1160, 0
  %v1502 = vsel %vm1185, %v1161, 0
  %v1505 = vsel %vm1185, %v1162, 0
  %v1508 = vsel %vm1185, %v1163, 0
  %v1511 = vsel %vm1185, %v1164, 0
  %v1514 = vsel %vm1185, %v1165, 0
  %v1517 = vsel %vm1185, %v1166, 0
  %v1520 = vsel %vm1185, %v1167, 0
  %v1523 = vsel %vm1185, %v1168, 0
  %v1526 = vsel %vm1185, %v1169, 0
  %v1529 = vsel %vm1185, %v1170, 0
  %v1532 = vsel %vm1185, %v1171, 0
  %v1535 = vsel %vm1185, %v1172, 0
  %v1538 = vsel %vm1185, %v1173, 0
  %v1541 = vsel %vm1185, %v1174, 0
  %v1544 = vsel %vm1185, %v1175, 0
  %v1547 = vsel %vm1185, %v1176, 0
  %v1550 = vsel %vm1185, %v1177, 0
  %v1553 = vsel %vm1185, %v1178, 0
  %v1556 = vsel %vm1185, %v1179, 0
  %v1559 = vsel %vm1185, %v1180, 0
  %v1562 = vsel %vm1185, %v1181, 0
  %v1565 = vsel %vm1185, %v1182, 0
  %v1568 = vsel %vm1185, %v1183, 0
  %vm1570 = vcmask 1043456
  %v1572 = vsel %vm1570, %v1184, 0
  %1574 = vmatprep.subr.bf16.mxu0 0
  %1575 = vmatpush1.bf16.msra.mxu0 0
  %1576 = vmatprep.subr.bf16.mxu0 0
  %1577 = vmatpush1.bf16.msra.mxu0 0
  %1578 = vmatprep.subr.bf16.mxu0 0
  %1579 = vmatpush1.bf16.msra.mxu0 0
  %1580 = vmatprep.subr.bf16.mxu0 0
  %1581 = vmatpush1.bf16.msra.mxu0 0
  %1582 = vmatprep.subr.bf16.mxu0 0
  %1583 = vmatpush1.bf16.msra.mxu0 0
  %1584 = vmatprep.subr.bf16.mxu0 0
  %1585 = vmatpush1.bf16.msra.mxu0 0
  %1586 = vmatprep.subr.bf16.mxu0 0
  %1587 = vmatpush1.bf16.msra.mxu0 0
  %1588 = vmatprep.subr.bf16.mxu0 0
  %1589 = vmatpush1.bf16.msra.mxu0 %v1572
  %1590 = vmatprep.subr.bf16.mxu0 0
  %1591 = vmatpush2.bf16.msra.mxu0 0
  %1592 = vmatprep.subr.bf16.mxu0 0
  %1593 = vmatpush2.bf16.msra.mxu0 0
  %1594 = vmatprep.subr.bf16.mxu0 0
  %1595 = vmatpush2.bf16.msra.mxu0 0
  %1596 = vmatprep.subr.bf16.mxu0 0
  %1597 = vmatpush2.bf16.msra.mxu0 0
  %1598 = vmatprep.subr.bf16.mxu0 0
  %1599 = vmatpush2.bf16.msra.mxu0 0
  %1600 = vmatprep.subr.bf16.mxu0 0
  %1601 = vmatpush2.bf16.msra.mxu0 0
  %1602 = vmatprep.subr.bf16.mxu0 0
  %1603 = vmatpush2.bf16.msra.mxu0 0
  %1604 = vmatprep.subr.bf16.mxu0 0
  %1605 = vmatpush2.bf16.msra.mxu0 0
  %1606 = vmatprep.mubr.bf16.mxu0 0
  %1607 = vmatmul.mubr.bf16.gmra.mxu0 %v1187
  %v1608 = vpop.f32.mrf.mxu0
  %v1609 = vadd.f32 0.0, %v1608
  %v1610 = vpop.f32.mrf.mxu0
  %v1611 = vpop.f32.mrf.mxu0
  %v1612 = vadd.f32 0.0, %v1611
  %v1613 = vpop.f32.mrf.mxu0
  %1614 = vmatprep.mubr.bf16.mxu0 0
  %1615 = vmatmul.mubr.bf16.gmra.mxu0 %v1190
  %v1616 = vpop.f32.mrf.mxu0
  %v1617 = vadd.f32 0.0, %v1616
  %v1618 = vpop.f32.mrf.mxu0
  %v1619 = vpop.f32.mrf.mxu0
  %v1620 = vadd.f32 0.0, %v1619
  %v1621 = vpop.f32.mrf.mxu0
  %1622 = vmatprep.mubr.bf16.mxu0 0
  %1623 = vmatmul.mubr.bf16.gmra.mxu0 %v1193
  %v1624 = vpop.f32.mrf.mxu0
  %v1625 = vadd.f32 0.0, %v1624
  %v1626 = vpop.f32.mrf.mxu0
  %v1627 = vpop.f32.mrf.mxu0
  %v1628 = vadd.f32 0.0, %v1627
  %v1629 = vpop.f32.mrf.mxu0
  %1630 = vmatprep.mubr.bf16.mxu0 0
  %1631 = vmatmul.mubr.bf16.gmra.mxu0 %v1196
  %v1632 = vpop.f32.mrf.mxu0
  %v1633 = vadd.f32 0.0, %v1632
  %v1634 = vpop.f32.mrf.mxu0
  %v1635 = vpop.f32.mrf.mxu0
  %v1636 = vadd.f32 0.0, %v1635
  %v1637 = vpop.f32.mrf.mxu0
  %1638 = vmatprep.mubr.bf16.mxu0 0
  %1639 = vmatmul.mubr.bf16.gmra.mxu0 %v1199
  %v1640 = vpop.f32.mrf.mxu0
  %v1641 = vadd.f32 0.0, %v1640
  %v1642 = vpop.f32.mrf.mxu0
  %v1643 = vpop.f32.mrf.mxu0
  %v1644 = vadd.f32 0.0, %v1643
  %v1645 = vpop.f32.mrf.mxu0
  %1646 = vmatprep.mubr.bf16.mxu0 0
  %1647 = vmatmul.mubr.bf16.gmra.mxu0 %v1202
  %v1648 = vpop.f32.mrf.mxu0
  %v1649 = vadd.f32 0.0, %v1648
  %v1650 = vpop.f32.mrf.mxu0
  %v1651 = vpop.f32.mrf.mxu0
  %v1652 = vadd.f32 0.0, %v1651
  %v1653 = vpop.f32.mrf.mxu0
  %1654 = vmatprep.mubr.bf16.mxu0 0
  %1655 = vmatmul.mubr.bf16.gmra.mxu0 %v1205
  %v1656 = vpop.f32.mrf.mxu0
  %v1657 = vadd.f32 0.0, %v1656
  %v1658 = vpop.f32.mrf.mxu0
  %v1659 = vpop.f32.mrf.mxu0
  %v1660 = vadd.f32 0.0, %v1659
  %v1661 = vpop.f32.mrf.mxu0
  %1662 = vmatprep.mubr.bf16.mxu0 0
  %1663 = vmatmul.mubr.bf16.gmra.mxu0 %v1208
  %v1664 = vpop.f32.mrf.mxu0
  %v1665 = vadd.f32 0.0, %v1664
  %v1666 = vpop.f32.mrf.mxu0
  %v1667 = vpop.f32.mrf.mxu0
  %v1668 = vadd.f32 0.0, %v1667
  %v1669 = vpop.f32.mrf.mxu0
  %1670 = vmatprep.mubr.bf16.mxu0 0
  %1671 = vmatmul.mubr.bf16.gmra.mxu0 %v1211
  %v1672 = vpop.f32.mrf.mxu0
  %v1673 = vadd.f32 0.0, %v1672
  %v1674 = vpop.f32.mrf.mxu0
  %v1675 = vpop.f32.mrf.mxu0
  %v1676 = vadd.f32 0.0, %v1675
  %v1677 = vpop.f32.mrf.mxu0
  %1678 = vmatprep.mubr.bf16.mxu0 0
  %1679 = vmatmul.mubr.bf16.gmra.mxu0 %v1214
  %v1680 = vpop.f32.mrf.mxu0
  %v1681 = vadd.f32 0.0, %v1680
  %v1682 = vpop.f32.mrf.mxu0
  %v1683 = vpop.f32.mrf.mxu0
  %v1684 = vadd.f32 0.0, %v1683
  %v1685 = vpop.f32.mrf.mxu0
  %1686 = vmatprep.mubr.bf16.mxu0 0
  %1687 = vmatmul.mubr.bf16.gmra.mxu0 %v1217
  %v1688 = vpop.f32.mrf.mxu0
  %v1689 = vadd.f32 0.0, %v1688
  %v1690 = vpop.f32.mrf.mxu0
  %v1691 = vpop.f32.mrf.mxu0
  %v1692 = vadd.f32 0.0, %v1691
  %v1693 = vpop.f32.mrf.mxu0
  %1694 = vmatprep.mubr.bf16.mxu0 0
  %1695 = vmatmul.mubr.bf16.gmra.mxu0 %v1220
  %v1696 = vpop.f32.mrf.mxu0
  %v1697 = vadd.f32 0.0, %v1696
  %v1698 = vpop.f32.mrf.mxu0
  %v1699 = vpop.f32.mrf.mxu0
  %v1700 = vadd.f32 0.0, %v1699
  %v1701 = vpop.f32.mrf.mxu0
  %1702 = vmatprep.mubr.bf16.mxu0 0
  %1703 = vmatmul.mubr.bf16.gmra.mxu0 %v1223
  %v1704 = vpop.f32.mrf.mxu0
  %v1705 = vadd.f32 0.0, %v1704
  %v1706 = vpop.f32.mrf.mxu0
  %v1707 = vpop.f32.mrf.mxu0
  %v1708 = vadd.f32 0.0, %v1707
  %v1709 = vpop.f32.mrf.mxu0
  %1710 = vmatprep.mubr.bf16.mxu0 0
  %1711 = vmatmul.mubr.bf16.gmra.mxu0 %v1226
  %v1712 = vpop.f32.mrf.mxu0
  %v1713 = vadd.f32 0.0, %v1712
  %v1714 = vpop.f32.mrf.mxu0
  %v1715 = vpop.f32.mrf.mxu0
  %v1716 = vadd.f32 0.0, %v1715
  %v1717 = vpop.f32.mrf.mxu0
  %1718 = vmatprep.mubr.bf16.mxu0 0
  %1719 = vmatmul.mubr.bf16.gmra.mxu0 %v1229
  %v1720 = vpop.f32.mrf.mxu0
  %v1721 = vadd.f32 0.0, %v1720
  %v1722 = vpop.f32.mrf.mxu0
  %v1723 = vpop.f32.mrf.mxu0
  %v1724 = vadd.f32 0.0, %v1723
  %v1725 = vpop.f32.mrf.mxu0
  %1726 = vmatprep.mubr.bf16.mxu0 0
  %1727 = vmatmul.mubr.bf16.gmra.mxu0 %v1232
  %v1728 = vpop.f32.mrf.mxu0
  %v1729 = vadd.f32 0.0, %v1728
  %v1730 = vpop.f32.mrf.mxu0
  %v1731 = vpop.f32.mrf.mxu0
  %v1732 = vadd.f32 0.0, %v1731
  %v1733 = vpop.f32.mrf.mxu0
  %1734 = vmatprep.mubr.bf16.mxu0 0
  %1735 = vmatmul.mubr.bf16.gmra.mxu0 %v1235
  %v1736 = vpop.f32.mrf.mxu0
  %v1737 = vadd.f32 0.0, %v1736
  %v1738 = vpop.f32.mrf.mxu0
  %v1739 = vpop.f32.mrf.mxu0
  %v1740 = vadd.f32 0.0, %v1739
  %v1741 = vpop.f32.mrf.mxu0
  %1742 = vmatprep.mubr.bf16.mxu0 0
  %1743 = vmatmul.mubr.bf16.gmra.mxu0 %v1238
  %v1744 = vpop.f32.mrf.mxu0
  %v1745 = vadd.f32 0.0, %v1744
  %v1746 = vpop.f32.mrf.mxu0
  %v1747 = vpop.f32.mrf.mxu0
  %v1748 = vadd.f32 0.0, %v1747
  %v1749 = vpop.f32.mrf.mxu0
  %1750 = vmatprep.mubr.bf16.mxu0 0
  %1751 = vmatmul.mubr.bf16.gmra.mxu0 %v1241
  %v1752 = vpop.f32.mrf.mxu0
  %v1753 = vadd.f32 0.0, %v1752
  %v1754 = vpop.f32.mrf.mxu0
  %v1755 = vpop.f32.mrf.mxu0
  %v1756 = vadd.f32 0.0, %v1755
  %v1757 = vpop.f32.mrf.mxu0
  %1758 = vmatprep.mubr.bf16.mxu0 0
  %1759 = vmatmul.mubr.bf16.gmra.mxu0 %v1244
  %v1760 = vpop.f32.mrf.mxu0
  %v1761 = vadd.f32 0.0, %v1760
  %v1762 = vpop.f32.mrf.mxu0
  %v1763 = vpop.f32.mrf.mxu0
  %v1764 = vadd.f32 0.0, %v1763
  %v1765 = vpop.f32.mrf.mxu0
  %1766 = vmatprep.mubr.bf16.mxu0 0
  %1767 = vmatmul.mubr.bf16.gmra.mxu0 %v1247
  %v1768 = vpop.f32.mrf.mxu0
  %v1769 = vadd.f32 0.0, %v1768
  %v1770 = vpop.f32.mrf.mxu0
  %v1771 = vpop.f32.mrf.mxu0
  %v1772 = vadd.f32 0.0, %v1771
  %v1773 = vpop.f32.mrf.mxu0
  %1774 = vmatprep.mubr.bf16.mxu0 0
  %1775 = vmatmul.mubr.bf16.gmra.mxu0 %v1250
  %v1776 = vpop.f32.mrf.mxu0
  %v1777 = vadd.f32 0.0, %v1776
  %v1778 = vpop.f32.mrf.mxu0
  %v1779 = vpop.f32.mrf.mxu0
  %v1780 = vadd.f32 0.0, %v1779
  %v1781 = vpop.f32.mrf.mxu0
  %1782 = vmatprep.mubr.bf16.mxu0 0
  %1783 = vmatmul.mubr.bf16.gmra.mxu0 %v1253
  %v1784 = vpop.f32.mrf.mxu0
  %v1785 = vadd.f32 0.0, %v1784
  %v1786 = vpop.f32.mrf.mxu0
  %v1787 = vpop.f32.mrf.mxu0
  %v1788 = vadd.f32 0.0, %v1787
  %v1789 = vpop.f32.mrf.mxu0
  %1790 = vmatprep.mubr.bf16.mxu0 0
  %1791 = vmatmul.mubr.bf16.gmra.mxu0 %v1256
  %v1792 = vpop.f32.mrf.mxu0
  %v1793 = vadd.f32 0.0, %v1792
  %v1794 = vpop.f32.mrf.mxu0
  %v1795 = vpop.f32.mrf.mxu0
  %v1796 = vadd.f32 0.0, %v1795
  %v1797 = vpop.f32.mrf.mxu0
  %1798 = vmatprep.mubr.bf16.mxu0 0
  %1799 = vmatmul.mubr.bf16.gmra.mxu0 %v1259
  %v1800 = vpop.f32.mrf.mxu0
  %v1801 = vadd.f32 0.0, %v1800
  %v1802 = vpop.f32.mrf.mxu0
  %v1803 = vpop.f32.mrf.mxu0
  %v1804 = vadd.f32 0.0, %v1803
  %v1805 = vpop.f32.mrf.mxu0
  %1806 = vmatprep.mubr.bf16.mxu0 0
  %1807 = vmatmul.mubr.bf16.gmra.mxu0 %v1262
  %v1808 = vpop.f32.mrf.mxu0
  %v1809 = vadd.f32 0.0, %v1808
  %v1810 = vpop.f32.mrf.mxu0
  %v1811 = vpop.f32.mrf.mxu0
  %v1812 = vadd.f32 0.0, %v1811
  %v1813 = vpop.f32.mrf.mxu0
  %1814 = vmatprep.mubr.bf16.mxu0 0
  %1815 = vmatmul.mubr.bf16.gmra.mxu0 %v1265
  %v1816 = vpop.f32.mrf.mxu0
  %v1817 = vadd.f32 0.0, %v1816
  %v1818 = vpop.f32.mrf.mxu0
  %v1819 = vpop.f32.mrf.mxu0
  %v1820 = vadd.f32 0.0, %v1819
  %v1821 = vpop.f32.mrf.mxu0
  %1822 = vmatprep.mubr.bf16.mxu0 0
  %1823 = vmatmul.mubr.bf16.gmra.mxu0 %v1268
  %v1824 = vpop.f32.mrf.mxu0
  %v1825 = vadd.f32 0.0, %v1824
  %v1826 = vpop.f32.mrf.mxu0
  %v1827 = vpop.f32.mrf.mxu0
  %v1828 = vadd.f32 0.0, %v1827
  %v1829 = vpop.f32.mrf.mxu0
  %1830 = vmatprep.mubr.bf16.mxu0 0
  %1831 = vmatmul.mubr.bf16.gmra.mxu0 %v1271
  %v1832 = vpop.f32.mrf.mxu0
  %v1833 = vadd.f32 0.0, %v1832
  %v1834 = vpop.f32.mrf.mxu0
  %v1835 = vpop.f32.mrf.mxu0
  %v1836 = vadd.f32 0.0, %v1835
  %v1837 = vpop.f32.mrf.mxu0
  %1838 = vmatprep.mubr.bf16.mxu0 0
  %1839 = vmatmul.mubr.bf16.gmra.mxu0 %v1274
  %v1840 = vpop.f32.mrf.mxu0
  %v1841 = vadd.f32 0.0, %v1840
  %v1842 = vpop.f32.mrf.mxu0
  %v1843 = vpop.f32.mrf.mxu0
  %v1844 = vadd.f32 0.0, %v1843
  %v1845 = vpop.f32.mrf.mxu0
  %1846 = vmatprep.mubr.bf16.mxu0 0
  %1847 = vmatmul.mubr.bf16.gmra.mxu0 %v1277
  %v1848 = vpop.f32.mrf.mxu0
  %v1849 = vadd.f32 0.0, %v1848
  %v1850 = vpop.f32.mrf.mxu0
  %v1851 = vpop.f32.mrf.mxu0
  %v1852 = vadd.f32 0.0, %v1851
  %v1853 = vpop.f32.mrf.mxu0
  %1854 = vmatprep.mubr.bf16.mxu0 0
  %1855 = vmatmul.mubr.bf16.gmra.mxu0 %v1280
  %v1856 = vpop.f32.mrf.mxu0
  %v1857 = vadd.f32 0.0, %v1856
  %v1858 = vpop.f32.mrf.mxu0
  %v1859 = vpop.f32.mrf.mxu0
  %v1860 = vadd.f32 0.0, %v1859
  %v1861 = vpop.f32.mrf.mxu0
  %1862 = vmatprep.mubr.bf16.mxu0 0
  %1863 = vmatmul.mubr.bf16.gmra.mxu0 %v1283
  %v1864 = vpop.f32.mrf.mxu0
  %v1865 = vadd.f32 0.0, %v1864
  %v1866 = vpop.f32.mrf.mxu0
  %v1867 = vpop.f32.mrf.mxu0
  %v1868 = vadd.f32 0.0, %v1867
  %v1869 = vpop.f32.mrf.mxu0
  %1870 = vmatprep.mubr.bf16.mxu0 0
  %1871 = vmatmul.mubr.bf16.gmra.mxu0 %v1286
  %v1872 = vpop.f32.mrf.mxu0
  %v1873 = vadd.f32 0.0, %v1872
  %v1874 = vpop.f32.mrf.mxu0
  %v1875 = vpop.f32.mrf.mxu0
  %v1876 = vadd.f32 0.0, %v1875
  %v1877 = vpop.f32.mrf.mxu0
  %1878 = vmatprep.mubr.bf16.mxu0 0
  %1879 = vmatmul.mubr.bf16.gmra.mxu0 %v1289
  %v1880 = vpop.f32.mrf.mxu0
  %v1881 = vadd.f32 0.0, %v1880
  %v1882 = vpop.f32.mrf.mxu0
  %v1883 = vpop.f32.mrf.mxu0
  %v1884 = vadd.f32 0.0, %v1883
  %v1885 = vpop.f32.mrf.mxu0
  %1886 = vmatprep.mubr.bf16.mxu0 0
  %1887 = vmatmul.mubr.bf16.gmra.mxu0 %v1292
  %v1888 = vpop.f32.mrf.mxu0
  %v1889 = vadd.f32 0.0, %v1888
  %v1890 = vpop.f32.mrf.mxu0
  %v1891 = vpop.f32.mrf.mxu0
  %v1892 = vadd.f32 0.0, %v1891
  %v1893 = vpop.f32.mrf.mxu0
  %1894 = vmatprep.mubr.bf16.mxu0 0
  %1895 = vmatmul.mubr.bf16.gmra.mxu0 %v1295
  %v1896 = vpop.f32.mrf.mxu0
  %v1897 = vadd.f32 0.0, %v1896
  %v1898 = vpop.f32.mrf.mxu0
  %v1899 = vpop.f32.mrf.mxu0
  %v1900 = vadd.f32 0.0, %v1899
  %v1901 = vpop.f32.mrf.mxu0
  %1902 = vmatprep.mubr.bf16.mxu0 0
  %1903 = vmatmul.mubr.bf16.gmra.mxu0 %v1298
  %v1904 = vpop.f32.mrf.mxu0
  %v1905 = vadd.f32 0.0, %v1904
  %v1906 = vpop.f32.mrf.mxu0
  %v1907 = vpop.f32.mrf.mxu0
  %v1908 = vadd.f32 0.0, %v1907
  %v1909 = vpop.f32.mrf.mxu0
  %1910 = vmatprep.mubr.bf16.mxu0 0
  %1911 = vmatmul.mubr.bf16.gmra.mxu0 %v1301
  %v1912 = vpop.f32.mrf.mxu0
  %v1913 = vadd.f32 0.0, %v1912
  %v1914 = vpop.f32.mrf.mxu0
  %v1915 = vpop.f32.mrf.mxu0
  %v1916 = vadd.f32 0.0, %v1915
  %v1917 = vpop.f32.mrf.mxu0
  %1918 = vmatprep.mubr.bf16.mxu0 0
  %1919 = vmatmul.mubr.bf16.gmra.mxu0 %v1304
  %v1920 = vpop.f32.mrf.mxu0
  %v1921 = vadd.f32 0.0, %v1920
  %v1922 = vpop.f32.mrf.mxu0
  %v1923 = vpop.f32.mrf.mxu0
  %v1924 = vadd.f32 0.0, %v1923
  %v1925 = vpop.f32.mrf.mxu0
  %1926 = vmatprep.mubr.bf16.mxu0 0
  %1927 = vmatmul.mubr.bf16.gmra.mxu0 %v1307
  %v1928 = vpop.f32.mrf.mxu0
  %v1929 = vadd.f32 0.0, %v1928
  %v1930 = vpop.f32.mrf.mxu0
  %v1931 = vpop.f32.mrf.mxu0
  %v1932 = vadd.f32 0.0, %v1931
  %v1933 = vpop.f32.mrf.mxu0
  %1934 = vmatprep.mubr.bf16.mxu0 0
  %1935 = vmatmul.mubr.bf16.gmra.mxu0 %v1310
  %v1936 = vpop.f32.mrf.mxu0
  %v1937 = vadd.f32 0.0, %v1936
  %v1938 = vpop.f32.mrf.mxu0
  %v1939 = vpop.f32.mrf.mxu0
  %v1940 = vadd.f32 0.0, %v1939
  %v1941 = vpop.f32.mrf.mxu0
  %1942 = vmatprep.mubr.bf16.mxu0 0
  %1943 = vmatmul.mubr.bf16.gmra.mxu0 %v1313
  %v1944 = vpop.f32.mrf.mxu0
  %v1945 = vadd.f32 0.0, %v1944
  %v1946 = vpop.f32.mrf.mxu0
  %v1947 = vpop.f32.mrf.mxu0
  %v1948 = vadd.f32 0.0, %v1947
  %v1949 = vpop.f32.mrf.mxu0
  %1950 = vmatprep.mubr.bf16.mxu0 0
  %1951 = vmatmul.mubr.bf16.gmra.mxu0 %v1316
  %v1952 = vpop.f32.mrf.mxu0
  %v1953 = vadd.f32 0.0, %v1952
  %v1954 = vpop.f32.mrf.mxu0
  %v1955 = vpop.f32.mrf.mxu0
  %v1956 = vadd.f32 0.0, %v1955
  %v1957 = vpop.f32.mrf.mxu0
  %1958 = vmatprep.mubr.bf16.mxu0 0
  %1959 = vmatmul.mubr.bf16.gmra.mxu0 %v1319
  %v1960 = vpop.f32.mrf.mxu0
  %v1961 = vadd.f32 0.0, %v1960
  %v1962 = vpop.f32.mrf.mxu0
  %v1963 = vpop.f32.mrf.mxu0
  %v1964 = vadd.f32 0.0, %v1963
  %v1965 = vpop.f32.mrf.mxu0
  %1966 = vmatprep.mubr.bf16.mxu0 0
  %1967 = vmatmul.mubr.bf16.gmra.mxu0 %v1322
  %v1968 = vpop.f32.mrf.mxu0
  %v1969 = vadd.f32 0.0, %v1968
  %v1970 = vpop.f32.mrf.mxu0
  %v1971 = vpop.f32.mrf.mxu0
  %v1972 = vadd.f32 0.0, %v1971
  %v1973 = vpop.f32.mrf.mxu0
  %1974 = vmatprep.mubr.bf16.mxu0 0
  %1975 = vmatmul.mubr.bf16.gmra.mxu0 %v1325
  %v1976 = vpop.f32.mrf.mxu0
  %v1977 = vadd.f32 0.0, %v1976
  %v1978 = vpop.f32.mrf.mxu0
  %v1979 = vpop.f32.mrf.mxu0
  %v1980 = vadd.f32 0.0, %v1979
  %v1981 = vpop.f32.mrf.mxu0
  %1982 = vmatprep.mubr.bf16.mxu0 0
  %1983 = vmatmul.mubr.bf16.gmra.mxu0 %v1328
  %v1984 = vpop.f32.mrf.mxu0
  %v1985 = vadd.f32 0.0, %v1984
  %v1986 = vpop.f32.mrf.mxu0
  %v1987 = vpop.f32.mrf.mxu0
  %v1988 = vadd.f32 0.0, %v1987
  %v1989 = vpop.f32.mrf.mxu0
  %1990 = vmatprep.mubr.bf16.mxu0 0
  %1991 = vmatmul.mubr.bf16.gmra.mxu0 %v1331
  %v1992 = vpop.f32.mrf.mxu0
  %v1993 = vadd.f32 0.0, %v1992
  %v1994 = vpop.f32.mrf.mxu0
  %v1995 = vpop.f32.mrf.mxu0
  %v1996 = vadd.f32 0.0, %v1995
  %v1997 = vpop.f32.mrf.mxu0
  %1998 = vmatprep.mubr.bf16.mxu0 0
  %1999 = vmatmul.mubr.bf16.gmra.mxu0 %v1334
  %v2000 = vpop.f32.mrf.mxu0
  %v2001 = vadd.f32 0.0, %v2000
  %v2002 = vpop.f32.mrf.mxu0
  %v2003 = vpop.f32.mrf.mxu0
  %v2004 = vadd.f32 0.0, %v2003
  %v2005 = vpop.f32.mrf.mxu0
  %2006 = vmatprep.mubr.bf16.mxu0 0
  %2007 = vmatmul.mubr.bf16.gmra.mxu0 %v1337
  %v2008 = vpop.f32.mrf.mxu0
  %v2009 = vadd.f32 0.0, %v2008
  %v2010 = vpop.f32.mrf.mxu0
  %v2011 = vpop.f32.mrf.mxu0
  %v2012 = vadd.f32 0.0, %v2011
  %v2013 = vpop.f32.mrf.mxu0
  %2014 = vmatprep.mubr.bf16.mxu0 0
  %2015 = vmatmul.mubr.bf16.gmra.mxu0 %v1340
  %v2016 = vpop.f32.mrf.mxu0
  %v2017 = vadd.f32 0.0, %v2016
  %v2018 = vpop.f32.mrf.mxu0
  %v2019 = vpop.f32.mrf.mxu0
  %v2020 = vadd.f32 0.0, %v2019
  %v2021 = vpop.f32.mrf.mxu0
  %2022 = vmatprep.mubr.bf16.mxu0 0
  %2023 = vmatmul.mubr.bf16.gmra.mxu0 %v1343
  %v2024 = vpop.f32.mrf.mxu0
  %v2025 = vadd.f32 0.0, %v2024
  %v2026 = vpop.f32.mrf.mxu0
  %v2027 = vpop.f32.mrf.mxu0
  %v2028 = vadd.f32 0.0, %v2027
  %v2029 = vpop.f32.mrf.mxu0
  %2030 = vmatprep.mubr.bf16.mxu0 0
  %2031 = vmatmul.mubr.bf16.gmra.mxu0 %v1346
  %v2032 = vpop.f32.mrf.mxu0
  %v2033 = vadd.f32 0.0, %v2032
  %v2034 = vpop.f32.mrf.mxu0
  %v2035 = vpop.f32.mrf.mxu0
  %v2036 = vadd.f32 0.0, %v2035
  %v2037 = vpop.f32.mrf.mxu0
  %2038 = vmatprep.mubr.bf16.mxu0 0
  %2039 = vmatmul.mubr.bf16.gmra.mxu0 %v1349
  %v2040 = vpop.f32.mrf.mxu0
  %v2041 = vadd.f32 0.0, %v2040
  %v2042 = vpop.f32.mrf.mxu0
  %v2043 = vpop.f32.mrf.mxu0
  %v2044 = vadd.f32 0.0, %v2043
  %v2045 = vpop.f32.mrf.mxu0
  %2046 = vmatprep.mubr.bf16.mxu0 0
  %2047 = vmatmul.mubr.bf16.gmra.mxu0 %v1352
  %v2048 = vpop.f32.mrf.mxu0
  %v2049 = vadd.f32 0.0, %v2048
  %v2050 = vpop.f32.mrf.mxu0
  %v2051 = vpop.f32.mrf.mxu0
  %v2052 = vadd.f32 0.0, %v2051
  %v2053 = vpop.f32.mrf.mxu0
  %2054 = vmatprep.mubr.bf16.mxu0 0
  %2055 = vmatmul.mubr.bf16.gmra.mxu0 %v1355
  %v2056 = vpop.f32.mrf.mxu0
  %v2057 = vadd.f32 0.0, %v2056
  %v2058 = vpop.f32.mrf.mxu0
  %v2059 = vpop.f32.mrf.mxu0
  %v2060 = vadd.f32 0.0, %v2059
  %v2061 = vpop.f32.mrf.mxu0
  %2062 = vmatprep.mubr.bf16.mxu0 0
  %2063 = vmatmul.mubr.bf16.gmra.mxu0 %v1358
  %v2064 = vpop.f32.mrf.mxu0
  %v2065 = vadd.f32 0.0, %v2064
  %v2066 = vpop.f32.mrf.mxu0
  %v2067 = vpop.f32.mrf.mxu0
  %v2068 = vadd.f32 0.0, %v2067
  %v2069 = vpop.f32.mrf.mxu0
  %2070 = vmatprep.mubr.bf16.mxu0 0
  %2071 = vmatmul.mubr.bf16.gmra.mxu0 %v1361
  %v2072 = vpop.f32.mrf.mxu0
  %v2073 = vadd.f32 0.0, %v2072
  %v2074 = vpop.f32.mrf.mxu0
  %v2075 = vpop.f32.mrf.mxu0
  %v2076 = vadd.f32 0.0, %v2075
  %v2077 = vpop.f32.mrf.mxu0
  %2078 = vmatprep.mubr.bf16.mxu0 0
  %2079 = vmatmul.mubr.bf16.gmra.mxu0 %v1364
  %v2080 = vpop.f32.mrf.mxu0
  %v2081 = vadd.f32 0.0, %v2080
  %v2082 = vpop.f32.mrf.mxu0
  %v2083 = vpop.f32.mrf.mxu0
  %v2084 = vadd.f32 0.0, %v2083
  %v2085 = vpop.f32.mrf.mxu0
  %2086 = vmatprep.mubr.bf16.mxu0 0
  %2087 = vmatmul.mubr.bf16.gmra.mxu0 %v1367
  %v2088 = vpop.f32.mrf.mxu0
  %v2089 = vadd.f32 0.0, %v2088
  %v2090 = vpop.f32.mrf.mxu0
  %v2091 = vpop.f32.mrf.mxu0
  %v2092 = vadd.f32 0.0, %v2091
  %v2093 = vpop.f32.mrf.mxu0
  %2094 = vmatprep.mubr.bf16.mxu0 0
  %2095 = vmatmul.mubr.bf16.gmra.mxu0 %v1370
  %v2096 = vpop.f32.mrf.mxu0
  %v2097 = vadd.f32 0.0, %v2096
  %v2098 = vpop.f32.mrf.mxu0
  %v2099 = vpop.f32.mrf.mxu0
  %v2100 = vadd.f32 0.0, %v2099
  %v2101 = vpop.f32.mrf.mxu0
  %2102 = vmatprep.mubr.bf16.mxu0 0
  %2103 = vmatmul.mubr.bf16.gmra.mxu0 %v1373
  %v2104 = vpop.f32.mrf.mxu0
  %v2105 = vadd.f32 0.0, %v2104
  %v2106 = vpop.f32.mrf.mxu0
  %v2107 = vpop.f32.mrf.mxu0
  %v2108 = vadd.f32 0.0, %v2107
  %v2109 = vpop.f32.mrf.mxu0
  %2110 = vmatprep.mubr.bf16.mxu0 0
  %2111 = vmatmul.mubr.bf16.gmra.mxu0 %v1376
  %v2112 = vpop.f32.mrf.mxu0
  %v2113 = vadd.f32 0.0, %v2112
  %v2114 = vpop.f32.mrf.mxu0
  %v2115 = vpop.f32.mrf.mxu0
  %v2116 = vadd.f32 0.0, %v2115
  %v2117 = vpop.f32.mrf.mxu0
  %2118 = vmatprep.mubr.bf16.mxu0 0
  %2119 = vmatmul.mubr.bf16.gmra.mxu0 %v1379
  %v2120 = vpop.f32.mrf.mxu0
  %v2121 = vadd.f32 0.0, %v2120
  %v2122 = vpop.f32.mrf.mxu0
  %v2123 = vpop.f32.mrf.mxu0
  %v2124 = vadd.f32 0.0, %v2123
  %v2125 = vpop.f32.mrf.mxu0
  %2126 = vmatprep.mubr.bf16.mxu0 0
  %2127 = vmatmul.mubr.bf16.gmra.mxu0 %v1382
  %v2128 = vpop.f32.mrf.mxu0
  %v2129 = vadd.f32 0.0, %v2128
  %v2130 = vpop.f32.mrf.mxu0
  %v2131 = vpop.f32.mrf.mxu0
  %v2132 = vadd.f32 0.0, %v2131
  %v2133 = vpop.f32.mrf.mxu0
  %2134 = vmatprep.mubr.bf16.mxu0 0
  %2135 = vmatmul.mubr.bf16.gmra.mxu0 %v1385
  %v2136 = vpop.f32.mrf.mxu0
  %v2137 = vadd.f32 0.0, %v2136
  %v2138 = vpop.f32.mrf.mxu0
  %v2139 = vpop.f32.mrf.mxu0
  %v2140 = vadd.f32 0.0, %v2139
  %v2141 = vpop.f32.mrf.mxu0
  %2142 = vmatprep.mubr.bf16.mxu0 0
  %2143 = vmatmul.mubr.bf16.gmra.mxu0 %v1388
  %v2144 = vpop.f32.mrf.mxu0
  %v2145 = vadd.f32 0.0, %v2144
  %v2146 = vpop.f32.mrf.mxu0
  %v2147 = vpop.f32.mrf.mxu0
  %v2148 = vadd.f32 0.0, %v2147
  %v2149 = vpop.f32.mrf.mxu0
  %2150 = vmatprep.mubr.bf16.mxu0 0
  %2151 = vmatmul.mubr.bf16.gmra.mxu0 %v1391
  %v2152 = vpop.f32.mrf.mxu0
  %v2153 = vadd.f32 0.0, %v2152
  %v2154 = vpop.f32.mrf.mxu0
  %v2155 = vpop.f32.mrf.mxu0
  %v2156 = vadd.f32 0.0, %v2155
  %v2157 = vpop.f32.mrf.mxu0
  %2158 = vmatprep.mubr.bf16.mxu0 0
  %2159 = vmatmul.mubr.bf16.gmra.mxu0 %v1394
  %v2160 = vpop.f32.mrf.mxu0
  %v2161 = vadd.f32 0.0, %v2160
  %v2162 = vpop.f32.mrf.mxu0
  %v2163 = vpop.f32.mrf.mxu0
  %v2164 = vadd.f32 0.0, %v2163
  %v2165 = vpop.f32.mrf.mxu0
  %2166 = vmatprep.mubr.bf16.mxu0 0
  %2167 = vmatmul.mubr.bf16.gmra.mxu0 %v1397
  %v2168 = vpop.f32.mrf.mxu0
  %v2169 = vadd.f32 0.0, %v2168
  %v2170 = vpop.f32.mrf.mxu0
  %v2171 = vpop.f32.mrf.mxu0
  %v2172 = vadd.f32 0.0, %v2171
  %v2173 = vpop.f32.mrf.mxu0
  %2174 = vmatprep.mubr.bf16.mxu0 0
  %2175 = vmatmul.mubr.bf16.gmra.mxu0 %v1400
  %v2176 = vpop.f32.mrf.mxu0
  %v2177 = vadd.f32 0.0, %v2176
  %v2178 = vpop.f32.mrf.mxu0
  %v2179 = vpop.f32.mrf.mxu0
  %v2180 = vadd.f32 0.0, %v2179
  %v2181 = vpop.f32.mrf.mxu0
  %2182 = vmatprep.mubr.bf16.mxu0 0
  %2183 = vmatmul.mubr.bf16.gmra.mxu0 %v1403
  %v2184 = vpop.f32.mrf.mxu0
  %v2185 = vadd.f32 0.0, %v2184
  %v2186 = vpop.f32.mrf.mxu0
  %v2187 = vpop.f32.mrf.mxu0
  %v2188 = vadd.f32 0.0, %v2187
  %v2189 = vpop.f32.mrf.mxu0
  %2190 = vmatprep.mubr.bf16.mxu0 0
  %2191 = vmatmul.mubr.bf16.gmra.mxu0 %v1406
  %v2192 = vpop.f32.mrf.mxu0
  %v2193 = vadd.f32 0.0, %v2192
  %v2194 = vpop.f32.mrf.mxu0
  %v2195 = vpop.f32.mrf.mxu0
  %v2196 = vadd.f32 0.0, %v2195
  %v2197 = vpop.f32.mrf.mxu0
  %2198 = vmatprep.mubr.bf16.mxu0 0
  %2199 = vmatmul.mubr.bf16.gmra.mxu0 %v1409
  %v2200 = vpop.f32.mrf.mxu0
  %v2201 = vadd.f32 0.0, %v2200
  %v2202 = vpop.f32.mrf.mxu0
  %v2203 = vpop.f32.mrf.mxu0
  %v2204 = vadd.f32 0.0, %v2203
  %v2205 = vpop.f32.mrf.mxu0
  %2206 = vmatprep.mubr.bf16.mxu0 0
  %2207 = vmatmul.mubr.bf16.gmra.mxu0 %v1412
  %v2208 = vpop.f32.mrf.mxu0
  %v2209 = vadd.f32 0.0, %v2208
  %v2210 = vpop.f32.mrf.mxu0
  %v2211 = vpop.f32.mrf.mxu0
  %v2212 = vadd.f32 0.0, %v2211
  %v2213 = vpop.f32.mrf.mxu0
  %2214 = vmatprep.mubr.bf16.mxu0 0
  %2215 = vmatmul.mubr.bf16.gmra.mxu0 %v1415
  %v2216 = vpop.f32.mrf.mxu0
  %v2217 = vadd.f32 0.0, %v2216
  %v2218 = vpop.f32.mrf.mxu0
  %v2219 = vpop.f32.mrf.mxu0
  %v2220 = vadd.f32 0.0, %v2219
  %v2221 = vpop.f32.mrf.mxu0
  %2222 = vmatprep.mubr.bf16.mxu0 0
  %2223 = vmatmul.mubr.bf16.gmra.mxu0 %v1418
  %v2224 = vpop.f32.mrf.mxu0
  %v2225 = vadd.f32 0.0, %v2224
  %v2226 = vpop.f32.mrf.mxu0
  %v2227 = vpop.f32.mrf.mxu0
  %v2228 = vadd.f32 0.0, %v2227
  %v2229 = vpop.f32.mrf.mxu0
  %2230 = vmatprep.mubr.bf16.mxu0 0
  %2231 = vmatmul.mubr.bf16.gmra.mxu0 %v1421
  %v2232 = vpop.f32.mrf.mxu0
  %v2233 = vadd.f32 0.0, %v2232
  %v2234 = vpop.f32.mrf.mxu0
  %v2235 = vpop.f32.mrf.mxu0
  %v2236 = vadd.f32 0.0, %v2235
  %v2237 = vpop.f32.mrf.mxu0
  %2238 = vmatprep.mubr.bf16.mxu0 0
  %2239 = vmatmul.mubr.bf16.gmra.mxu0 %v1424
  %v2240 = vpop.f32.mrf.mxu0
  %v2241 = vadd.f32 0.0, %v2240
  %v2242 = vpop.f32.mrf.mxu0
  %v2243 = vpop.f32.mrf.mxu0
  %v2244 = vadd.f32 0.0, %v2243
  %v2245 = vpop.f32.mrf.mxu0
  %2246 = vmatprep.mubr.bf16.mxu0 0
  %2247 = vmatmul.mubr.bf16.gmra.mxu0 %v1427
  %v2248 = vpop.f32.mrf.mxu0
  %v2249 = vadd.f32 0.0, %v2248
  %v2250 = vpop.f32.mrf.mxu0
  %v2251 = vpop.f32.mrf.mxu0
  %v2252 = vadd.f32 0.0, %v2251
  %v2253 = vpop.f32.mrf.mxu0
  %2254 = vmatprep.mubr.bf16.mxu0 0
  %2255 = vmatmul.mubr.bf16.gmra.mxu0 %v1430
  %v2256 = vpop.f32.mrf.mxu0
  %v2257 = vadd.f32 0.0, %v2256
  %v2258 = vpop.f32.mrf.mxu0
  %v2259 = vpop.f32.mrf.mxu0
  %v2260 = vadd.f32 0.0, %v2259
  %v2261 = vpop.f32.mrf.mxu0
  %2262 = vmatprep.mubr.bf16.mxu0 0
  %2263 = vmatmul.mubr.bf16.gmra.mxu0 %v1433
  %v2264 = vpop.f32.mrf.mxu0
  %v2265 = vadd.f32 0.0, %v2264
  %v2266 = vpop.f32.mrf.mxu0
  %v2267 = vpop.f32.mrf.mxu0
  %v2268 = vadd.f32 0.0, %v2267
  %v2269 = vpop.f32.mrf.mxu0
  %2270 = vmatprep.mubr.bf16.mxu0 0
  %2271 = vmatmul.mubr.bf16.gmra.mxu0 %v1436
  %v2272 = vpop.f32.mrf.mxu0
  %v2273 = vadd.f32 0.0, %v2272
  %v2274 = vpop.f32.mrf.mxu0
  %v2275 = vpop.f32.mrf.mxu0
  %v2276 = vadd.f32 0.0, %v2275
  %v2277 = vpop.f32.mrf.mxu0
  %2278 = vmatprep.mubr.bf16.mxu0 0
  %2279 = vmatmul.mubr.bf16.gmra.mxu0 %v1439
  %v2280 = vpop.f32.mrf.mxu0
  %v2281 = vadd.f32 0.0, %v2280
  %v2282 = vpop.f32.mrf.mxu0
  %v2283 = vpop.f32.mrf.mxu0
  %v2284 = vadd.f32 0.0, %v2283
  %v2285 = vpop.f32.mrf.mxu0
  %2286 = vmatprep.mubr.bf16.mxu0 0
  %2287 = vmatmul.mubr.bf16.gmra.mxu0 %v1442
  %v2288 = vpop.f32.mrf.mxu0
  %v2289 = vadd.f32 0.0, %v2288
  %v2290 = vpop.f32.mrf.mxu0
  %v2291 = vpop.f32.mrf.mxu0
  %v2292 = vadd.f32 0.0, %v2291
  %v2293 = vpop.f32.mrf.mxu0
  %2294 = vmatprep.mubr.bf16.mxu0 0
  %2295 = vmatmul.mubr.bf16.gmra.mxu0 %v1445
  %v2296 = vpop.f32.mrf.mxu0
  %v2297 = vadd.f32 0.0, %v2296
  %v2298 = vpop.f32.mrf.mxu0
  %v2299 = vpop.f32.mrf.mxu0
  %v2300 = vadd.f32 0.0, %v2299
  %v2301 = vpop.f32.mrf.mxu0
  %2302 = vmatprep.mubr.bf16.mxu0 0
  %2303 = vmatmul.mubr.bf16.gmra.mxu0 %v1448
  %v2304 = vpop.f32.mrf.mxu0
  %v2305 = vadd.f32 0.0, %v2304
  %v2306 = vpop.f32.mrf.mxu0
  %v2307 = vpop.f32.mrf.mxu0
  %v2308 = vadd.f32 0.0, %v2307
  %v2309 = vpop.f32.mrf.mxu0
  %2310 = vmatprep.mubr.bf16.mxu0 0
  %2311 = vmatmul.mubr.bf16.gmra.mxu0 %v1451
  %v2312 = vpop.f32.mrf.mxu0
  %v2313 = vadd.f32 0.0, %v2312
  %v2314 = vpop.f32.mrf.mxu0
  %v2315 = vpop.f32.mrf.mxu0
  %v2316 = vadd.f32 0.0, %v2315
  %v2317 = vpop.f32.mrf.mxu0
  %2318 = vmatprep.mubr.bf16.mxu0 0
  %2319 = vmatmul.mubr.bf16.gmra.mxu0 %v1454
  %v2320 = vpop.f32.mrf.mxu0
  %v2321 = vadd.f32 0.0, %v2320
  %v2322 = vpop.f32.mrf.mxu0
  %v2323 = vpop.f32.mrf.mxu0
  %v2324 = vadd.f32 0.0, %v2323
  %v2325 = vpop.f32.mrf.mxu0
  %2326 = vmatprep.mubr.bf16.mxu0 0
  %2327 = vmatmul.mubr.bf16.gmra.mxu0 %v1457
  %v2328 = vpop.f32.mrf.mxu0
  %v2329 = vadd.f32 0.0, %v2328
  %v2330 = vpop.f32.mrf.mxu0
  %v2331 = vpop.f32.mrf.mxu0
  %v2332 = vadd.f32 0.0, %v2331
  %v2333 = vpop.f32.mrf.mxu0
  %2334 = vmatprep.mubr.bf16.mxu0 0
  %2335 = vmatmul.mubr.bf16.gmra.mxu0 %v1460
  %v2336 = vpop.f32.mrf.mxu0
  %v2337 = vadd.f32 0.0, %v2336
  %v2338 = vpop.f32.mrf.mxu0
  %v2339 = vpop.f32.mrf.mxu0
  %v2340 = vadd.f32 0.0, %v2339
  %v2341 = vpop.f32.mrf.mxu0
  %2342 = vmatprep.mubr.bf16.mxu0 0
  %2343 = vmatmul.mubr.bf16.gmra.mxu0 %v1463
  %v2344 = vpop.f32.mrf.mxu0
  %v2345 = vadd.f32 0.0, %v2344
  %v2346 = vpop.f32.mrf.mxu0
  %v2347 = vpop.f32.mrf.mxu0
  %v2348 = vadd.f32 0.0, %v2347
  %v2349 = vpop.f32.mrf.mxu0
  %2350 = vmatprep.mubr.bf16.mxu0 0
  %2351 = vmatmul.mubr.bf16.gmra.mxu0 %v1466
  %v2352 = vpop.f32.mrf.mxu0
  %v2353 = vadd.f32 0.0, %v2352
  %v2354 = vpop.f32.mrf.mxu0
  %v2355 = vpop.f32.mrf.mxu0
  %v2356 = vadd.f32 0.0, %v2355
  %v2357 = vpop.f32.mrf.mxu0
  %2358 = vmatprep.mubr.bf16.mxu0 0
  %2359 = vmatmul.mubr.bf16.gmra.mxu0 %v1469
  %v2360 = vpop.f32.mrf.mxu0
  %v2361 = vadd.f32 0.0, %v2360
  %v2362 = vpop.f32.mrf.mxu0
  %v2363 = vpop.f32.mrf.mxu0
  %v2364 = vadd.f32 0.0, %v2363
  %v2365 = vpop.f32.mrf.mxu0
  %2366 = vmatprep.mubr.bf16.mxu0 0
  %2367 = vmatmul.mubr.bf16.gmra.mxu0 %v1472
  %v2368 = vpop.f32.mrf.mxu0
  %v2369 = vadd.f32 0.0, %v2368
  %v2370 = vpop.f32.mrf.mxu0
  %v2371 = vpop.f32.mrf.mxu0
  %v2372 = vadd.f32 0.0, %v2371
  %v2373 = vpop.f32.mrf.mxu0
  %2374 = vmatprep.mubr.bf16.mxu0 0
  %2375 = vmatmul.mubr.bf16.gmra.mxu0 %v1475
  %v2376 = vpop.f32.mrf.mxu0
  %v2377 = vadd.f32 0.0, %v2376
  %v2378 = vpop.f32.mrf.mxu0
  %v2379 = vpop.f32.mrf.mxu0
  %v2380 = vadd.f32 0.0, %v2379
  %v2381 = vpop.f32.mrf.mxu0
  %2382 = vmatprep.mubr.bf16.mxu0 0
  %2383 = vmatmul.mubr.bf16.gmra.mxu0 %v1478
  %v2384 = vpop.f32.mrf.mxu0
  %v2385 = vadd.f32 0.0, %v2384
  %v2386 = vpop.f32.mrf.mxu0
  %v2387 = vpop.f32.mrf.mxu0
  %v2388 = vadd.f32 0.0, %v2387
  %v2389 = vpop.f32.mrf.mxu0
  %2390 = vmatprep.mubr.bf16.mxu0 0
  %2391 = vmatmul.mubr.bf16.gmra.mxu0 %v1481
  %v2392 = vpop.f32.mrf.mxu0
  %v2393 = vadd.f32 0.0, %v2392
  %v2394 = vpop.f32.mrf.mxu0
  %v2395 = vpop.f32.mrf.mxu0
  %v2396 = vadd.f32 0.0, %v2395
  %v2397 = vpop.f32.mrf.mxu0
  %2398 = vmatprep.mubr.bf16.mxu0 0
  %2399 = vmatmul.mubr.bf16.gmra.mxu0 %v1484
  %v2400 = vpop.f32.mrf.mxu0
  %v2401 = vadd.f32 0.0, %v2400
  %v2402 = vpop.f32.mrf.mxu0
  %v2403 = vpop.f32.mrf.mxu0
  %v2404 = vadd.f32 0.0, %v2403
  %v2405 = vpop.f32.mrf.mxu0
  %2406 = vmatprep.mubr.bf16.mxu0 0
  %2407 = vmatmul.mubr.bf16.gmra.mxu0 %v1487
  %v2408 = vpop.f32.mrf.mxu0
  %v2409 = vadd.f32 0.0, %v2408
  %v2410 = vpop.f32.mrf.mxu0
  %v2411 = vpop.f32.mrf.mxu0
  %v2412 = vadd.f32 0.0, %v2411
  %v2413 = vpop.f32.mrf.mxu0
  %2414 = vmatprep.mubr.bf16.mxu0 0
  %2415 = vmatmul.mubr.bf16.gmra.mxu0 %v1490
  %v2416 = vpop.f32.mrf.mxu0
  %v2417 = vadd.f32 0.0, %v2416
  %v2418 = vpop.f32.mrf.mxu0
  %v2419 = vpop.f32.mrf.mxu0
  %v2420 = vadd.f32 0.0, %v2419
  %v2421 = vpop.f32.mrf.mxu0
  %2422 = vmatprep.mubr.bf16.mxu0 0
  %2423 = vmatmul.mubr.bf16.gmra.mxu0 %v1493
  %v2424 = vpop.f32.mrf.mxu0
  %v2425 = vadd.f32 0.0, %v2424
  %v2426 = vpop.f32.mrf.mxu0
  %v2427 = vpop.f32.mrf.mxu0
  %v2428 = vadd.f32 0.0, %v2427
  %v2429 = vpop.f32.mrf.mxu0
  %2430 = vmatprep.mubr.bf16.mxu0 0
  %2431 = vmatmul.mubr.bf16.gmra.mxu0 %v1496
  %v2432 = vpop.f32.mrf.mxu0
  %v2433 = vadd.f32 0.0, %v2432
  %v2434 = vpop.f32.mrf.mxu0
  %v2435 = vpop.f32.mrf.mxu0
  %v2436 = vadd.f32 0.0, %v2435
  %v2437 = vpop.f32.mrf.mxu0
  %2438 = vmatprep.mubr.bf16.mxu0 0
  %2439 = vmatmul.mubr.bf16.gmra.mxu0 %v1499
  %v2440 = vpop.f32.mrf.mxu0
  %v2441 = vadd.f32 0.0, %v2440
  %v2442 = vpop.f32.mrf.mxu0
  %v2443 = vpop.f32.mrf.mxu0
  %v2444 = vadd.f32 0.0, %v2443
  %v2445 = vpop.f32.mrf.mxu0
  %2446 = vmatprep.mubr.bf16.mxu0 0
  %2447 = vmatmul.mubr.bf16.gmra.mxu0 %v1502
  %v2448 = vpop.f32.mrf.mxu0
  %v2449 = vadd.f32 0.0, %v2448
  %v2450 = vpop.f32.mrf.mxu0
  %v2451 = vpop.f32.mrf.mxu0
  %v2452 = vadd.f32 0.0, %v2451
  %v2453 = vpop.f32.mrf.mxu0
  %2454 = vmatprep.mubr.bf16.mxu0 0
  %2455 = vmatmul.mubr.bf16.gmra.mxu0 %v1505
  %v2456 = vpop.f32.mrf.mxu0
  %v2457 = vadd.f32 0.0, %v2456
  %v2458 = vpop.f32.mrf.mxu0
  %v2459 = vpop.f32.mrf.mxu0
  %v2460 = vadd.f32 0.0, %v2459
  %v2461 = vpop.f32.mrf.mxu0
  %2462 = vmatprep.mubr.bf16.mxu0 0
  %2463 = vmatmul.mubr.bf16.gmra.mxu0 %v1508
  %v2464 = vpop.f32.mrf.mxu0
  %v2465 = vadd.f32 0.0, %v2464
  %v2466 = vpop.f32.mrf.mxu0
  %v2467 = vpop.f32.mrf.mxu0
  %v2468 = vadd.f32 0.0, %v2467
  %v2469 = vpop.f32.mrf.mxu0
  %2470 = vmatprep.mubr.bf16.mxu0 0
  %2471 = vmatmul.mubr.bf16.gmra.mxu0 %v1511
  %v2472 = vpop.f32.mrf.mxu0
  %v2473 = vadd.f32 0.0, %v2472
  %v2474 = vpop.f32.mrf.mxu0
  %v2475 = vpop.f32.mrf.mxu0
  %v2476 = vadd.f32 0.0, %v2475
  %v2477 = vpop.f32.mrf.mxu0
  %2478 = vmatprep.mubr.bf16.mxu0 0
  %2479 = vmatmul.mubr.bf16.gmra.mxu0 %v1514
  %v2480 = vpop.f32.mrf.mxu0
  %v2481 = vadd.f32 0.0, %v2480
  %v2482 = vpop.f32.mrf.mxu0
  %v2483 = vpop.f32.mrf.mxu0
  %v2484 = vadd.f32 0.0, %v2483
  %v2485 = vpop.f32.mrf.mxu0
  %2486 = vmatprep.mubr.bf16.mxu0 0
  %2487 = vmatmul.mubr.bf16.gmra.mxu0 %v1517
  %v2488 = vpop.f32.mrf.mxu0
  %v2489 = vadd.f32 0.0, %v2488
  %v2490 = vpop.f32.mrf.mxu0
  %v2491 = vpop.f32.mrf.mxu0
  %v2492 = vadd.f32 0.0, %v2491
  %v2493 = vpop.f32.mrf.mxu0
  %2494 = vmatprep.mubr.bf16.mxu0 0
  %2495 = vmatmul.mubr.bf16.gmra.mxu0 %v1520
  %v2496 = vpop.f32.mrf.mxu0
  %v2497 = vadd.f32 0.0, %v2496
  %v2498 = vpop.f32.mrf.mxu0
  %v2499 = vpop.f32.mrf.mxu0
  %v2500 = vadd.f32 0.0, %v2499
  %v2501 = vpop.f32.mrf.mxu0
  %2502 = vmatprep.mubr.bf16.mxu0 0
  %2503 = vmatmul.mubr.bf16.gmra.mxu0 %v1523
  %v2504 = vpop.f32.mrf.mxu0
  %v2505 = vadd.f32 0.0, %v2504
  %v2506 = vpop.f32.mrf.mxu0
  %v2507 = vpop.f32.mrf.mxu0
  %v2508 = vadd.f32 0.0, %v2507
  %v2509 = vpop.f32.mrf.mxu0
  %2510 = vmatprep.mubr.bf16.mxu0 0
  %2511 = vmatmul.mubr.bf16.gmra.mxu0 %v1526
  %v2512 = vpop.f32.mrf.mxu0
  %v2513 = vadd.f32 0.0, %v2512
  %v2514 = vpop.f32.mrf.mxu0
  %v2515 = vpop.f32.mrf.mxu0
  %v2516 = vadd.f32 0.0, %v2515
  %v2517 = vpop.f32.mrf.mxu0
  %2518 = vmatprep.mubr.bf16.mxu0 0
  %2519 = vmatmul.mubr.bf16.gmra.mxu0 %v1529
  %v2520 = vpop.f32.mrf.mxu0
  %v2521 = vadd.f32 0.0, %v2520
  %v2522 = vpop.f32.mrf.mxu0
  %v2523 = vpop.f32.mrf.mxu0
  %v2524 = vadd.f32 0.0, %v2523
  %v2525 = vpop.f32.mrf.mxu0
  %2526 = vmatprep.mubr.bf16.mxu0 0
  %2527 = vmatmul.mubr.bf16.gmra.mxu0 %v1532
  %v2528 = vpop.f32.mrf.mxu0
  %v2529 = vadd.f32 0.0, %v2528
  %v2530 = vpop.f32.mrf.mxu0
  %v2531 = vpop.f32.mrf.mxu0
  %v2532 = vadd.f32 0.0, %v2531
  %v2533 = vpop.f32.mrf.mxu0
  %2534 = vmatprep.mubr.bf16.mxu0 0
  %2535 = vmatmul.mubr.bf16.gmra.mxu0 %v1535
  %v2536 = vpop.f32.mrf.mxu0
  %v2537 = vadd.f32 0.0, %v2536
  %v2538 = vpop.f32.mrf.mxu0
  %v2539 = vpop.f32.mrf.mxu0
  %v2540 = vadd.f32 0.0, %v2539
  %v2541 = vpop.f32.mrf.mxu0
  %2542 = vmatprep.mubr.bf16.mxu0 0
  %2543 = vmatmul.mubr.bf16.gmra.mxu0 %v1538
  %v2544 = vpop.f32.mrf.mxu0
  %v2545 = vadd.f32 0.0, %v2544
  %v2546 = vpop.f32.mrf.mxu0
  %v2547 = vpop.f32.mrf.mxu0
  %v2548 = vadd.f32 0.0, %v2547
  %v2549 = vpop.f32.mrf.mxu0
  %2550 = vmatprep.mubr.bf16.mxu0 0
  %2551 = vmatmul.mubr.bf16.gmra.mxu0 %v1541
  %v2552 = vpop.f32.mrf.mxu0
  %v2553 = vadd.f32 0.0, %v2552
  %v2554 = vpop.f32.mrf.mxu0
  %v2555 = vpop.f32.mrf.mxu0
  %v2556 = vadd.f32 0.0, %v2555
  %v2557 = vpop.f32.mrf.mxu0
  %2558 = vmatprep.mubr.bf16.mxu0 0
  %2559 = vmatmul.mubr.bf16.gmra.mxu0 %v1544
  %v2560 = vpop.f32.mrf.mxu0
  %v2561 = vadd.f32 0.0, %v2560
  %v2562 = vpop.f32.mrf.mxu0
  %v2563 = vpop.f32.mrf.mxu0
  %v2564 = vadd.f32 0.0, %v2563
  %v2565 = vpop.f32.mrf.mxu0
  %2566 = vmatprep.mubr.bf16.mxu0 0
  %2567 = vmatmul.mubr.bf16.gmra.mxu0 %v1547
  %v2568 = vpop.f32.mrf.mxu0
  %v2569 = vadd.f32 0.0, %v2568
  %v2570 = vpop.f32.mrf.mxu0
  %v2571 = vpop.f32.mrf.mxu0
  %v2572 = vadd.f32 0.0, %v2571
  %v2573 = vpop.f32.mrf.mxu0
  %2574 = vmatprep.mubr.bf16.mxu0 0
  %2575 = vmatmul.mubr.bf16.gmra.mxu0 %v1550
  %v2576 = vpop.f32.mrf.mxu0
  %v2577 = vadd.f32 0.0, %v2576
  %v2578 = vpop.f32.mrf.mxu0
  %v2579 = vpop.f32.mrf.mxu0
  %v2580 = vadd.f32 0.0, %v2579
  %v2581 = vpop.f32.mrf.mxu0
  %2582 = vmatprep.mubr.bf16.mxu0 0
  %2583 = vmatmul.mubr.bf16.gmra.mxu0 %v1553
  %v2584 = vpop.f32.mrf.mxu0
  %v2585 = vadd.f32 0.0, %v2584
  %v2586 = vpop.f32.mrf.mxu0
  %v2587 = vpop.f32.mrf.mxu0
  %v2588 = vadd.f32 0.0, %v2587
  %v2589 = vpop.f32.mrf.mxu0
  %2590 = vmatprep.mubr.bf16.mxu0 0
  %2591 = vmatmul.mubr.bf16.gmra.mxu0 %v1556
  %v2592 = vpop.f32.mrf.mxu0
  %v2593 = vadd.f32 0.0, %v2592
  %v2594 = vpop.f32.mrf.mxu0
  %v2595 = vpop.f32.mrf.mxu0
  %v2596 = vadd.f32 0.0, %v2595
  %v2597 = vpop.f32.mrf.mxu0
  %2598 = vmatprep.mubr.bf16.mxu0 0
  %2599 = vmatmul.mubr.bf16.gmra.mxu0 %v1559
  %v2600 = vpop.f32.mrf.mxu0
  %v2601 = vadd.f32 0.0, %v2600
  %v2602 = vpop.f32.mrf.mxu0
  %v2603 = vpop.f32.mrf.mxu0
  %v2604 = vadd.f32 0.0, %v2603
  %v2605 = vpop.f32.mrf.mxu0
  %2606 = vmatprep.mubr.bf16.mxu0 0
  %2607 = vmatmul.mubr.bf16.gmra.mxu0 %v1562
  %v2608 = vpop.f32.mrf.mxu0
  %v2609 = vadd.f32 0.0, %v2608
  %v2610 = vpop.f32.mrf.mxu0
  %v2611 = vpop.f32.mrf.mxu0
  %v2612 = vadd.f32 0.0, %v2611
  %v2613 = vpop.f32.mrf.mxu0
  %2614 = vmatprep.mubr.bf16.mxu0 0
  %2615 = vmatmul.mubr.bf16.gmra.mxu0 %v1565
  %v2616 = vpop.f32.mrf.mxu0
  %v2617 = vadd.f32 0.0, %v2616
  %v2618 = vpop.f32.mrf.mxu0
  %v2619 = vpop.f32.mrf.mxu0
  %v2620 = vadd.f32 0.0, %v2619
  %v2621 = vpop.f32.mrf.mxu0
  %2622 = vmatprep.mubr.bf16.mxu0 0
  %2623 = vmatmul.mubr.bf16.gmra.mxu0 %v1568
  %v2624 = vpop.f32.mrf.mxu0
  %v2625 = vadd.f32 0.0, %v2624
  %v2626 = vpop.f32.mrf.mxu0
  %v2627 = vpop.f32.mrf.mxu0
  %v2628 = vadd.f32 0.0, %v2627
  %v2629 = vpop.f32.mrf.mxu0
  %2630 = vdwg.mxu0
  %2631 = vst [vmem:[%s4] sm:$0xff] %v1609
  %2632 = vst [vmem:[%s4 + $0x8] sm:$0xff] %v1612
  %2633 = vst [vmem:[%s4 + $0x10] sm:$0xff] %v1617
  %2634 = vst [vmem:[%s4 + $0x18] sm:$0xff] %v1620
  %2635 = vst [vmem:[%s4 + $0x20] sm:$0xff] %v1625
  %2636 = vst [vmem:[%s4 + $0x28] sm:$0xff] %v1628
  %2637 = vst [vmem:[%s4 + $0x30] sm:$0xff] %v1633
  %2638 = vst [vmem:[%s4 + $0x38] sm:$0xff] %v1636
  %2639 = vst [vmem:[%s4 + $0x40] sm:$0xff] %v1641
  %2640 = vst [vmem:[%s4 + $0x48] sm:$0xff] %v1644
  %2641 = vst [vmem:[%s4 + $0x50] sm:$0xff] %v1649
  %2642 = vst [vmem:[%s4 + $0x58] sm:$0xff] %v1652
  %2643 = vst [vmem:[%s4 + $0x60] sm:$0xff] %v1657
  %2644 = vst [vmem:[%s4 + $0x68] sm:$0xff] %v1660
  %2645 = vst [vmem:[%s4 + $0x70] sm:$0xff] %v1665
  %2646 = vst [vmem:[%s4 + $0x78] sm:$0xff] %v1668
  %2647 = vst [vmem:[%s4 + $0x80] sm:$0xff] %v1673
  %2648 = vst [vmem:[%s4 + $0x88] sm:$0xff] %v1676
  %2649 = vst [vmem:[%s4 + $0x90] sm:$0xff] %v1681
  %2650 = vst [vmem:[%s4 + $0x98] sm:$0xff] %v1684
  %2651 = vst [vmem:[%s4 + $0xa0] sm:$0xff] %v1689
  %2652 = vst [vmem:[%s4 + $0xa8] sm:$0xff] %v1692
  %2653 = vst [vmem:[%s4 + $0xb0] sm:$0xff] %v1697
  %2654 = vst [vmem:[%s4 + $0xb8] sm:$0xff] %v1700
  %2655 = vst [vmem:[%s4 + $0xc0] sm:$0xff] %v1705
  %2656 = vst [vmem:[%s4 + $0xc8] sm:$0xff] %v1708
  %2657 = vst [vmem:[%s4 + $0xd0] sm:$0xff] %v1713
  %2658 = vst [vmem:[%s4 + $0xd8] sm:$0xff] %v1716
  %2659 = vst [vmem:[%s4 + $0xe0] sm:$0xff] %v1721
  %2660 = vst [vmem:[%s4 + $0xe8] sm:$0xff] %v1724
  %2661 = vst [vmem:[%s4 + $0xf0] sm:$0xff] %v1729
  %2662 = vst [vmem:[%s4 + $0xf8] sm:$0xff] %v1732
  %2663 = vst [vmem:[%s4 + $0x100] sm:$0xff] %v1737
  %2664 = vst [vmem:[%s4 + $0x108] sm:$0xff] %v1740
  %2665 = vst [vmem:[%s4 + $0x110] sm:$0xff] %v1745
  %2666 = vst [vmem:[%s4 + $0x118] sm:$0xff] %v1748
  %2667 = vst [vmem:[%s4 + $0x120] sm:$0xff] %v1753
  %2668 = vst [vmem:[%s4 + $0x128] sm:$0xff] %v1756
  %2669 = vst [vmem:[%s4 + $0x130] sm:$0xff] %v1761
  %2670 = vst [vmem:[%s4 + $0x138] sm:$0xff] %v1764
  %2671 = vst [vmem:[%s4 + $0x140] sm:$0xff] %v1769
  %2672 = vst [vmem:[%s4 + $0x148] sm:$0xff] %v1772
  %2673 = vst [vmem:[%s4 + $0x150] sm:$0xff] %v1777
  %2674 = vst [vmem:[%s4 + $0x158] sm:$0xff] %v1780
  %2675 = vst [vmem:[%s4 + $0x160] sm:$0xff] %v1785
  %2676 = vst [vmem:[%s4 + $0x168] sm:$0xff] %v1788
  %2677 = vst [vmem:[%s4 + $0x170] sm:$0xff] %v1793
  %2678 = vst [vmem:[%s4 + $0x178] sm:$0xff] %v1796
  %2679 = vst [vmem:[%s4 + $0x180] sm:$0xff] %v1801
  %2680 = vst [vmem:[%s4 + $0x188] sm:$0xff] %v1804
  %2681 = vst [vmem:[%s4 + $0x190] sm:$0xff] %v1809
  %2682 = vst [vmem:[%s4 + $0x198] sm:$0xff] %v1812
  %2683 = vst [vmem:[%s4 + $0x1a0] sm:$0xff] %v1817
  %2684 = vst [vmem:[%s4 + $0x1a8] sm:$0xff] %v1820
  %2685 = vst [vmem:[%s4 + $0x1b0] sm:$0xff] %v1825
  %2686 = vst [vmem:[%s4 + $0x1b8] sm:$0xff] %v1828
  %2687 = vst [vmem:[%s4 + $0x1c0] sm:$0xff] %v1833
  %2688 = vst [vmem:[%s4 + $0x1c8] sm:$0xff] %v1836
  %2689 = vst [vmem:[%s4 + $0x1d0] sm:$0xff] %v1841
  %2690 = vst [vmem:[%s4 + $0x1d8] sm:$0xff] %v1844
  %2691 = vst [vmem:[%s4 + $0x1e0] sm:$0xff] %v1849
  %2692 = vst [vmem:[%s4 + $0x1e8] sm:$0xff] %v1852
  %2693 = vst [vmem:[%s4 + $0x1f0] sm:$0xff] %v1857
  %2694 = vst [vmem:[%s4 + $0x1f8] sm:$0xff] %v1860
  %2695 = vst [vmem:[%s4 + $0x200] sm:$0xff] %v1865
  %2696 = vst [vmem:[%s4 + $0x208] sm:$0xff] %v1868
  %2697 = vst [vmem:[%s4 + $0x210] sm:$0xff] %v1873
  %2698 = vst [vmem:[%s4 + $0x218] sm:$0xff] %v1876
  %2699 = vst [vmem:[%s4 + $0x220] sm:$0xff] %v1881
  %2700 = vst [vmem:[%s4 + $0x228] sm:$0xff] %v1884
  %2701 = vst [vmem:[%s4 + $0x230] sm:$0xff] %v1889
  %2702 = vst [vmem:[%s4 + $0x238] sm:$0xff] %v1892
  %2703 = vst [vmem:[%s4 + $0x240] sm:$0xff] %v1897
  %2704 = vst [vmem:[%s4 + $0x248] sm:$0xff] %v1900
  %2705 = vst [vmem:[%s4 + $0x250] sm:$0xff] %v1905
  %2706 = vst [vmem:[%s4 + $0x258] sm:$0xff] %v1908
  %2707 = vst [vmem:[%s4 + $0x260] sm:$0xff] %v1913
  %2708 = vst [vmem:[%s4 + $0x268] sm:$0xff] %v1916
  %2709 = vst [vmem:[%s4 + $0x270] sm:$0xff] %v1921
  %2710 = vst [vmem:[%s4 + $0x278] sm:$0xff] %v1924
  %2711 = vst [vmem:[%s4 + $0x280] sm:$0xff] %v1929
  %2712 = vst [vmem:[%s4 + $0x288] sm:$0xff] %v1932
  %2713 = vst [vmem:[%s4 + $0x290] sm:$0xff] %v1937
  %2714 = vst [vmem:[%s4 + $0x298] sm:$0xff] %v1940
  %2715 = vst [vmem:[%s4 + $0x2a0] sm:$0xff] %v1945
  %2716 = vst [vmem:[%s4 + $0x2a8] sm:$0xff] %v1948
  %2717 = vst [vmem:[%s4 + $0x2b0] sm:$0xff] %v1953
  %2718 = vst [vmem:[%s4 + $0x2b8] sm:$0xff] %v1956
  %2719 = vst [vmem:[%s4 + $0x2c0] sm:$0xff] %v1961
  %2720 = vst [vmem:[%s4 + $0x2c8] sm:$0xff] %v1964
  %2721 = vst [vmem:[%s4 + $0x2d0] sm:$0xff] %v1969
  %2722 = vst [vmem:[%s4 + $0x2d8] sm:$0xff] %v1972
  %2723 = vst [vmem:[%s4 + $0x2e0] sm:$0xff] %v1977
  %2724 = vst [vmem:[%s4 + $0x2e8] sm:$0xff] %v1980
  %2725 = vst [vmem:[%s4 + $0x2f0] sm:$0xff] %v1985
  %2726 = vst [vmem:[%s4 + $0x2f8] sm:$0xff] %v1988
  %2727 = vst [vmem:[%s4 + $0x300] sm:$0xff] %v1993
  %2728 = vst [vmem:[%s4 + $0x308] sm:$0xff] %v1996
  %2729 = vst [vmem:[%s4 + $0x310] sm:$0xff] %v2001
  %2730 = vst [vmem:[%s4 + $0x318] sm:$0xff] %v2004
  %2731 = vst [vmem:[%s4 + $0x320] sm:$0xff] %v2009
  %2732 = vst [vmem:[%s4 + $0x328] sm:$0xff] %v2012
  %2733 = vst [vmem:[%s4 + $0x330] sm:$0xff] %v2017
  %2734 = vst [vmem:[%s4 + $0x338] sm:$0xff] %v2020
  %2735 = vst [vmem:[%s4 + $0x340] sm:$0xff] %v2025
  %2736 = vst [vmem:[%s4 + $0x348] sm:$0xff] %v2028
  %2737 = vst [vmem:[%s4 + $0x350] sm:$0xff] %v2033
  %2738 = vst [vmem:[%s4 + $0x358] sm:$0xff] %v2036
  %2739 = vst [vmem:[%s4 + $0x360] sm:$0xff] %v2041
  %2740 = vst [vmem:[%s4 + $0x368] sm:$0xff] %v2044
  %2741 = vst [vmem:[%s4 + $0x370] sm:$0xff] %v2049
  %2742 = vst [vmem:[%s4 + $0x378] sm:$0xff] %v2052
  %2743 = vst [vmem:[%s4 + $0x380] sm:$0xff] %v2057
  %2744 = vst [vmem:[%s4 + $0x388] sm:$0xff] %v2060
  %2745 = vst [vmem:[%s4 + $0x390] sm:$0xff] %v2065
  %2746 = vst [vmem:[%s4 + $0x398] sm:$0xff] %v2068
  %2747 = vst [vmem:[%s4 + $0x3a0] sm:$0xff] %v2073
  %2748 = vst [vmem:[%s4 + $0x3a8] sm:$0xff] %v2076
  %2749 = vst [vmem:[%s4 + $0x3b0] sm:$0xff] %v2081
  %2750 = vst [vmem:[%s4 + $0x3b8] sm:$0xff] %v2084
  %2751 = vst [vmem:[%s4 + $0x3c0] sm:$0xff] %v2089
  %2752 = vst [vmem:[%s4 + $0x3c8] sm:$0xff] %v2092
  %2753 = vst [vmem:[%s4 + $0x3d0] sm:$0xff] %v2097
  %2754 = vst [vmem:[%s4 + $0x3d8] sm:$0xff] %v2100
  %2755 = vst [vmem:[%s4 + $0x3e0] sm:$0xff] %v2105
  %2756 = vst [vmem:[%s4 + $0x3e8] sm:$0xff] %v2108
  %2757 = vst [vmem:[%s4 + $0x3f0] sm:$0xff] %v2113
  %2758 = vst [vmem:[%s4 + $0x3f8] sm:$0xff] %v2116
  %2759 = vst [vmem:[%s4 + $0x400] sm:$0xff] %v2121
  %2760 = vst [vmem:[%s4 + $0x408] sm:$0xff] %v2124
  %2761 = vst [vmem:[%s4 + $0x410] sm:$0xff] %v2129
  %2762 = vst [vmem:[%s4 + $0x418] sm:$0xff] %v2132
  %2763 = vst [vmem:[%s4 + $0x420] sm:$0xff] %v2137
  %2764 = vst [vmem:[%s4 + $0x428] sm:$0xff] %v2140
  %2765 = vst [vmem:[%s4 + $0x430] sm:$0xff] %v2145
  %2766 = vst [vmem:[%s4 + $0x438] sm:$0xff] %v2148
  %2767 = vst [vmem:[%s4 + $0x440] sm:$0xff] %v2153
  %2768 = vst [vmem:[%s4 + $0x448] sm:$0xff] %v2156
  %2769 = vst [vmem:[%s4 + $0x450] sm:$0xff] %v2161
  %2770 = vst [vmem:[%s4 + $0x458] sm:$0xff] %v2164
  %2771 = vst [vmem:[%s4 + $0x460] sm:$0xff] %v2169
  %2772 = vst [vmem:[%s4 + $0x468] sm:$0xff] %v2172
  %2773 = vst [vmem:[%s4 + $0x470] sm:$0xff] %v2177
  %2774 = vst [vmem:[%s4 + $0x478] sm:$0xff] %v2180
  %2775 = vst [vmem:[%s4 + $0x480] sm:$0xff] %v2185
  %2776 = vst [vmem:[%s4 + $0x488] sm:$0xff] %v2188
  %2777 = vst [vmem:[%s4 + $0x490] sm:$0xff] %v2193
  %2778 = vst [vmem:[%s4 + $0x498] sm:$0xff] %v2196
  %2779 = vst [vmem:[%s4 + $0x4a0] sm:$0xff] %v2201
  %2780 = vst [vmem:[%s4 + $0x4a8] sm:$0xff] %v2204
  %2781 = vst [vmem:[%s4 + $0x4b0] sm:$0xff] %v2209
  %2782 = vst [vmem:[%s4 + $0x4b8] sm:$0xff] %v2212
  %2783 = vst [vmem:[%s4 + $0x4c0] sm:$0xff] %v2217
  %2784 = vst [vmem:[%s4 + $0x4c8] sm:$0xff] %v2220
  %2785 = vst [vmem:[%s4 + $0x4d0] sm:$0xff] %v2225
  %2786 = vst [vmem:[%s4 + $0x4d8] sm:$0xff] %v2228
  %2787 = vst [vmem:[%s4 + $0x4e0] sm:$0xff] %v2233
  %2788 = vst [vmem:[%s4 + $0x4e8] sm:$0xff] %v2236
  %2789 = vst [vmem:[%s4 + $0x4f0] sm:$0xff] %v2241
  %2790 = vst [vmem:[%s4 + $0x4f8] sm:$0xff] %v2244
  %2791 = vst [vmem:[%s4 + $0x500] sm:$0xff] %v2249
  %2792 = vst [vmem:[%s4 + $0x508] sm:$0xff] %v2252
  %2793 = vst [vmem:[%s4 + $0x510] sm:$0xff] %v2257
  %2794 = vst [vmem:[%s4 + $0x518] sm:$0xff] %v2260
  %2795 = vst [vmem:[%s4 + $0x520] sm:$0xff] %v2265
  %2796 = vst [vmem:[%s4 + $0x528] sm:$0xff] %v2268
  %2797 = vst [vmem:[%s4 + $0x530] sm:$0xff] %v2273
  %2798 = vst [vmem:[%s4 + $0x538] sm:$0xff] %v2276
  %2799 = vst [vmem:[%s4 + $0x540] sm:$0xff] %v2281
  %2800 = vst [vmem:[%s4 + $0x548] sm:$0xff] %v2284
  %2801 = vst [vmem:[%s4 + $0x550] sm:$0xff] %v2289
  %2802 = vst [vmem:[%s4 + $0x558] sm:$0xff] %v2292
  %2803 = vst [vmem:[%s4 + $0x560] sm:$0xff] %v2297
  %2804 = vst [vmem:[%s4 + $0x568] sm:$0xff] %v2300
  %2805 = vst [vmem:[%s4 + $0x570] sm:$0xff] %v2305
  %2806 = vst [vmem:[%s4 + $0x578] sm:$0xff] %v2308
  %2807 = vst [vmem:[%s4 + $0x580] sm:$0xff] %v2313
  %2808 = vst [vmem:[%s4 + $0x588] sm:$0xff] %v2316
  %2809 = vst [vmem:[%s4 + $0x590] sm:$0xff] %v2321
  %2810 = vst [vmem:[%s4 + $0x598] sm:$0xff] %v2324
  %2811 = vst [vmem:[%s4 + $0x5a0] sm:$0xff] %v2329
  %2812 = vst [vmem:[%s4 + $0x5a8] sm:$0xff] %v2332
  %2813 = vst [vmem:[%s4 + $0x5b0] sm:$0xff] %v2337
  %2814 = vst [vmem:[%s4 + $0x5b8] sm:$0xff] %v2340
  %2815 = vst [vmem:[%s4 + $0x5c0] sm:$0xff] %v2345
  %2816 = vst [vmem:[%s4 + $0x5c8] sm:$0xff] %v2348
  %2817 = vst [vmem:[%s4 + $0x5d0] sm:$0xff] %v2353
  %2818 = vst [vmem:[%s4 + $0x5d8] sm:$0xff] %v2356
  %2819 = vst [vmem:[%s4 + $0x5e0] sm:$0xff] %v2361
  %2820 = vst [vmem:[%s4 + $0x5e8] sm:$0xff] %v2364
  %2821 = vst [vmem:[%s4 + $0x5f0] sm:$0xff] %v2369
  %2822 = vst [vmem:[%s4 + $0x5f8] sm:$0xff] %v2372
  %2823 = vst [vmem:[%s4 + $0x600] sm:$0xff] %v2377
  %2824 = vst [vmem:[%s4 + $0x608] sm:$0xff] %v2380
  %2825 = vst [vmem:[%s4 + $0x610] sm:$0xff] %v2385
  %2826 = vst [vmem:[%s4 + $0x618] sm:$0xff] %v2388
  %2827 = vst [vmem:[%s4 + $0x620] sm:$0xff] %v2393
  %2828 = vst [vmem:[%s4 + $0x628] sm:$0xff] %v2396
  %2829 = vst [vmem:[%s4 + $0x630] sm:$0xff] %v2401
  %2830 = vst [vmem:[%s4 + $0x638] sm:$0xff] %v2404
  %2831 = vst [vmem:[%s4 + $0x640] sm:$0xff] %v2409
  %2832 = vst [vmem:[%s4 + $0x648] sm:$0xff] %v2412
  %2833 = vst [vmem:[%s4 + $0x650] sm:$0xff] %v2417
  %2834 = vst [vmem:[%s4 + $0x658] sm:$0xff] %v2420
  %2835 = vst [vmem:[%s4 + $0x660] sm:$0xff] %v2425
  %2836 = vst [vmem:[%s4 + $0x668] sm:$0xff] %v2428
  %2837 = vst [vmem:[%s4 + $0x670] sm:$0xff] %v2433
  %2838 = vst [vmem:[%s4 + $0x678] sm:$0xff] %v2436
  %2839 = vst [vmem:[%s4 + $0x680] sm:$0xff] %v2441
  %2840 = vst [vmem:[%s4 + $0x688] sm:$0xff] %v2444
  %2841 = vst [vmem:[%s4 + $0x690] sm:$0xff] %v2449
  %2842 = vst [vmem:[%s4 + $0x698] sm:$0xff] %v2452
  %2843 = vst [vmem:[%s4 + $0x6a0] sm:$0xff] %v2457
  %2844 = vst [vmem:[%s4 + $0x6a8] sm:$0xff] %v2460
  %2845 = vst [vmem:[%s4 + $0x6b0] sm:$0xff] %v2465
  %2846 = vst [vmem:[%s4 + $0x6b8] sm:$0xff] %v2468
  %2847 = vst [vmem:[%s4 + $0x6c0] sm:$0xff] %v2473
  %2848 = vst [vmem:[%s4 + $0x6c8] sm:$0xff] %v2476
  %2849 = vst [vmem:[%s4 + $0x6d0] sm:$0xff] %v2481
  %2850 = vst [vmem:[%s4 + $0x6d8] sm:$0xff] %v2484
  %2851 = vst [vmem:[%s4 + $0x6e0] sm:$0xff] %v2489
  %2852 = vst [vmem:[%s4 + $0x6e8] sm:$0xff] %v2492
  %2853 = vst [vmem:[%s4 + $0x6f0] sm:$0xff] %v2497
  %2854 = vst [vmem:[%s4 + $0x6f8] sm:$0xff] %v2500
  %2855 = vst [vmem:[%s4 + $0x700] sm:$0xff] %v2505
  %2856 = vst [vmem:[%s4 + $0x708] sm:$0xff] %v2508
  %2857 = vst [vmem:[%s4 + $0x710] sm:$0xff] %v2513
  %2858 = vst [vmem:[%s4 + $0x718] sm:$0xff] %v2516
  %2859 = vst [vmem:[%s4 + $0x720] sm:$0xff] %v2521
  %2860 = vst [vmem:[%s4 + $0x728] sm:$0xff] %v2524
  %2861 = vst [vmem:[%s4 + $0x730] sm:$0xff] %v2529
  %2862 = vst [vmem:[%s4 + $0x738] sm:$0xff] %v2532
  %2863 = vst [vmem:[%s4 + $0x740] sm:$0xff] %v2537
  %2864 = vst [vmem:[%s4 + $0x748] sm:$0xff] %v2540
  %2865 = vst [vmem:[%s4 + $0x750] sm:$0xff] %v2545
  %2866 = vst [vmem:[%s4 + $0x758] sm:$0xff] %v2548
  %2867 = vst [vmem:[%s4 + $0x760] sm:$0xff] %v2553
  %2868 = vst [vmem:[%s4 + $0x768] sm:$0xff] %v2556
  %2869 = vst [vmem:[%s4 + $0x770] sm:$0xff] %v2561
  %2870 = vst [vmem:[%s4 + $0x778] sm:$0xff] %v2564
  %2871 = vst [vmem:[%s4 + $0x780] sm:$0xff] %v2569
  %2872 = vst [vmem:[%s4 + $0x788] sm:$0xff] %v2572
  %2873 = vst [vmem:[%s4 + $0x790] sm:$0xff] %v2577
  %2874 = vst [vmem:[%s4 + $0x798] sm:$0xff] %v2580
  %2875 = vst [vmem:[%s4 + $0x7a0] sm:$0xff] %v2585
  %2876 = vst [vmem:[%s4 + $0x7a8] sm:$0xff] %v2588
  %2877 = vst [vmem:[%s4 + $0x7b0] sm:$0xff] %v2593
  %2878 = vst [vmem:[%s4 + $0x7b8] sm:$0xff] %v2596
  %2879 = vst [vmem:[%s4 + $0x7c0] sm:$0xff] %v2601
  %2880 = vst [vmem:[%s4 + $0x7c8] sm:$0xff] %v2604
  %2881 = vst [vmem:[%s4 + $0x7d0] sm:$0xff] %v2609
  %2882 = vst [vmem:[%s4 + $0x7d8] sm:$0xff] %v2612
  %2883 = vst [vmem:[%s4 + $0x7e0] sm:$0xff] %v2617
  %2884 = vst [vmem:[%s4 + $0x7e8] sm:$0xff] %v2620
  %2885 = vst [vmem:[%s4 + $0x7f0] sm:$0xff] %v2625
  %2886 = vst [vmem:[%s4 + $0x7f8] sm:$0xff] %v2628
  // Predicated region
  $region18: #{generator_forward.10} parent=0 // pred_check
    _
  $region19: #{generator_forward.10} parent=0 // pred_check_branch
    %2888 = sbr.rel (0) target = $region21
  $region20: #{generator_forward.10} parent=0 // pred_region
    _
  $region21: #{generator_forward.10} parent=0 // pred_fallthru
    _
  // Predicated region
  $region22: #{generator_forward.10} parent=0 // pred_check
    _
  $region23: #{generator_forward.10} parent=0 // pred_check_branch
    %2890 = sbr.rel (0) target = $region25
  $region24: #{generator_forward.10} parent=0 // pred_region
    _
  $region25: #{generator_forward.10} parent=0 // pred_fallthru
    _

// kernel: generator_forward.11
$region0: #{generator_forward.11}
  #allocation0 [shape = 'u32[]', space=smem, size = 0x4, offset = 0x4, fixed_abs, tag = 'smem constant byte address 0x4 - core index']
  #allocation1 [shape = 'u32[144,128]{1,0:T(1,128)}', space=vmem, size = 0x12000, scoped, tag = 'internal scratch']
  %s0 = inlined_call_operand.vmem [shape: f32[192,128], index: 0, kind: input, shape index: {}]
  %s1 = inlined_call_operand.vmem [shape: f32[192,128], index: 1, kind: output, shape index: {}]
  %s2 = sld [smem:[#allocation0]]
  $region14: #{generator_forward.11} parent=0
    _
  %s4 = ssub.s32 1, %s2
  %s5 = scalar_select 0, %s4, %s2
  // Predicated region
  $region2: #{generator_forward.11} parent=0 // pred_check
    _
  $region3: #{generator_forward.11} parent=0 // pred_check_branch
    %7 = sbr.rel (0) target = $region5
  $region4: #{generator_forward.11} parent=0 // pred_region
    _
  $region5: #{generator_forward.11} parent=0 // pred_fallthru
    _
  %v8 = vld [vmem:[%s0] sm:$0xff]
  %v9 = vld [vmem:[%s0 + $0x8] sm:$0xff]
  %v10 = vld [vmem:[%s0 + $0x10] sm:$0xff]
  %v11 = vld [vmem:[%s0 + $0x18] sm:$0xff]
  %v12 = vld [vmem:[%s0 + $0x20] sm:$0xff]
  %v13 = vld [vmem:[%s0 + $0x28] sm:$0xff]
  %v14 = vld [vmem:[%s0 + $0x30] sm:$0xff]
  %v15 = vld [vmem:[%s0 + $0x38] sm:$0xff]
  %v16 = vld [vmem:[%s0 + $0x40] sm:$0xff]
  %v17 = vld [vmem:[%s0 + $0x48] sm:$0xff]
  %v18 = vld [vmem:[%s0 + $0x50] sm:$0xff]
  %v19 = vld [vmem:[%s0 + $0x58] sm:$0xff]
  %v20 = vld [vmem:[%s0 + $0x60] sm:$0xff]
  %v21 = vld [vmem:[%s0 + $0x68] sm:$0xff]
  %v22 = vld [vmem:[%s0 + $0x70] sm:$0xff]
  %v23 = vld [vmem:[%s0 + $0x78] sm:$0xff]
  %v24 = vld [vmem:[%s0 + $0x80] sm:$0xff]
  %v25 = vld [vmem:[%s0 + $0x88] sm:$0xff]
  %v26 = vld [vmem:[%s0 + $0x90] sm:$0xff]
  %v27 = vld [vmem:[%s0 + $0x98] sm:$0xff]
  %v28 = vld [vmem:[%s0 + $0xa0] sm:$0xff]
  %v29 = vld [vmem:[%s0 + $0xa8] sm:$0xff]
  %v30 = vld [vmem:[%s0 + $0xb0] sm:$0xff]
  %v31 = vld [vmem:[%s0 + $0xb8] sm:$0xff]
  %v32 = vtanh.pop %v8
  %v33 = vtanh.pop %v9
  %v34 = vtanh.pop %v10
  %v35 = vtanh.pop %v11
  %v36 = vtanh.pop %v12
  %v37 = vtanh.pop %v13
  %v38 = vtanh.pop %v14
  %v39 = vtanh.pop %v15
  %v40 = vtanh.pop %v16
  %v41 = vtanh.pop %v17
  %v42 = vtanh.pop %v18
  %v43 = vtanh.pop %v19
  %v44 = vtanh.pop %v20
  %v45 = vtanh.pop %v21
  %v46 = vtanh.pop %v22
  %v47 = vtanh.pop %v23
  %v48 = vtanh.pop %v24
  %v49 = vtanh.pop %v25
  %v50 = vtanh.pop %v26
  %v51 = vtanh.pop %v27
  %v52 = vtanh.pop %v28
  %v53 = vtanh.pop %v29
  %v54 = vtanh.pop %v30
  %v55 = vtanh.pop %v31
  %56 = vst [vmem:[%s1] sm:$0xff] %v32
  %57 = vst [vmem:[%s1 + $0x8] sm:$0xff] %v33
  %58 = vst [vmem:[%s1 + $0x10] sm:$0xff] %v34
  %59 = vst [vmem:[%s1 + $0x18] sm:$0xff] %v35
  %60 = vst [vmem:[%s1 + $0x20] sm:$0xff] %v36
  %61 = vst [vmem:[%s1 + $0x28] sm:$0xff] %v37
  %62 = vst [vmem:[%s1 + $0x30] sm:$0xff] %v38
  %63 = vst [vmem:[%s1 + $0x38] sm:$0xff] %v39
  %64 = vst [vmem:[%s1 + $0x40] sm:$0xff] %v40
  %65 = vst [vmem:[%s1 + $0x48] sm:$0xff] %v41
  %66 = vst [vmem:[%s1 + $0x50] sm:$0xff] %v42
  %67 = vst [vmem:[%s1 + $0x58] sm:$0xff] %v43
  %68 = vst [vmem:[%s1 + $0x60] sm:$0xff] %v44
  %69 = vst [vmem:[%s1 + $0x68] sm:$0xff] %v45
  %70 = vst [vmem:[%s1 + $0x70] sm:$0xff] %v46
  %71 = vst [vmem:[%s1 + $0x78] sm:$0xff] %v47
  %72 = vst [vmem:[%s1 + $0x80] sm:$0xff] %v48
  %73 = vst [vmem:[%s1 + $0x88] sm:$0xff] %v49
  %74 = vst [vmem:[%s1 + $0x90] sm:$0xff] %v50
  %75 = vst [vmem:[%s1 + $0x98] sm:$0xff] %v51
  %76 = vst [vmem:[%s1 + $0xa0] sm:$0xff] %v52
  %77 = vst [vmem:[%s1 + $0xa8] sm:$0xff] %v53
  %78 = vst [vmem:[%s1 + $0xb0] sm:$0xff] %v54
  %79 = vst [vmem:[%s1 + $0xb8] sm:$0xff] %v55
  // Predicated region
  $region6: #{generator_forward.11} parent=0 // pred_check
    _
  $region7: #{generator_forward.11} parent=0 // pred_check_branch
    %81 = sbr.rel (0) target = $region9
  $region8: #{generator_forward.11} parent=0 // pred_region
    _
  $region9: #{generator_forward.11} parent=0 // pred_fallthru
    _
  // Predicated region
  $region10: #{generator_forward.11} parent=0 // pred_check
    _
  $region11: #{generator_forward.11} parent=0 // pred_check_branch
    %83 = sbr.rel (0) target = $region13
  $region12: #{generator_forward.11} parent=0 // pred_region
    _
  $region13: #{generator_forward.11} parent=0 // pred_fallthru
    _

</llo_original>
